<compile_context>
chip_gen: v7x
topology: tpu7x:2x2x1
jax: 0.10.0
libtpu: 0.0.40
codegen_flags: <defaults>
</compile_context>

<pallas_src>
import functools

import jax
import jax.numpy as jnp
import numpy as np
from jax.experimental import pallas as pl
from jax.experimental.pallas import tpu as pltpu


def _round_up(x, m):
    return ((x + m - 1) // m) * m


def _choose_block(B, block_b):
    """Pick a batch tile (multiple of 8) with >=2 grid steps when possible."""
    tb = _round_up(max(1, min(block_b, B)), 8)
    if B >= 16:
        # v7x has 2 TensorCores: a single-step "parallel" grid leaves one idle.
        while tb > 8 and _round_up(B, tb) // tb < 2:
            tb = _round_up(max(8, tb // 2), 8)
    B_pad = _round_up(B, tb)
    return tb, B_pad


def _padded_bytes(shape, dtype):
    """Lane/sublane-padded VMEM footprint of one buffer of `shape`."""
    itemsize = jnp.dtype(dtype).itemsize
    sublane = 8 * max(1, 4 // itemsize)       # 8 for f32, 16 for bf16, 32 for i8
    dims = list(shape)
    dims[-1] = _round_up(dims[-1], 128)
    if len(dims) >= 2:
        dims[-2] = _round_up(dims[-2], sublane)
    n = 1
    for d in dims:
        n *= d
    return n * itemsize


def _vmem_limit(total_bytes):
    # Explicit scoped-VMEM budget: avoid per-generation default surprises
    # (16 MiB v5e / 32 MiB v6e,v7x) while staying under v7x's 64 MiB physical.
    return int(min(48 * 1024 * 1024, max(8 * 1024 * 1024, total_bytes)))


# ----------------------------------------------------------------------------
# Kernel 1: conv path (desc_is_avg=True)
#   Raw (tb, L, C_in) bf16 block per grid step.  Conv1d realized as K=5
#   depth-C_in MXU dots on sublane-shifted slices with an f32 accumulator,
#   then bias + ReLU, avg-pool over the l_out positions, and per-row L2 norm.
# ----------------------------------------------------------------------------
def _desc_conv_kernel(x_ref, w_ref, b_ref, o_ref, *, kernel_size, l_out,
                      inv_l_out, eps):
    tb, c_out = o_ref.shape
    c_in = x_ref.shape[-1]

    x = x_ref[...]                                          # (tb, L, C_in) bf16
    acc = jnp.zeros((tb * l_out, c_out), jnp.float32)
    for k in range(kernel_size):                            # 5 depth-C_in dots
        xk = x[:, k:k + l_out, :].reshape(tb * l_out, c_in)
        acc = acc + jnp.dot(xk, w_ref[k],
                            preferred_element_type=jnp.float32)

    # bias + ReLU (Dropout is identity at eval).
    acc = jnp.maximum(acc + b_ref[...], 0.0)                # (tb*l_out, C_out)

    # AdaptiveAvgPool1d(1): mean over the l_out positions of each row.
    pooled = jnp.sum(acc.reshape(tb, l_out, c_out), axis=1) * inv_l_out

    # L2 normalize per row (rsqrt runs on the EUP; epsilon guards zero rows).
    sumsq = jnp.sum(pooled * pooled, axis=-1, keepdims=True)
    inv_norm = jax.lax.rsqrt(jnp.maximum(sumsq, eps))
    o_ref[...] = (pooled * inv_norm).astype(o_ref.dtype)


def desc_encoder_conv(x, weight, bias, *, kernel_size=5, block_b=128,
                      compute_dtype=jnp.bfloat16):
    """Conv path.

    x:      (B, L, C_in)  channels-last (PyTorch's transpose(1,2) is absorbed).
    weight: (K, C_in, C_out)   (= PyTorch conv.weight.permute(2, 1, 0))
    bias:   (C_out,)
    """
    B, L, C_in = x.shape
    K, _, C_out = weight.shape
    assert K == kernel_size
    l_out = L - kernel_size + 1
    assert l_out >= 1
    # Perf note: keep l_out a multiple of 8 (production L=100 -> l_out=96) so
    # the in-kernel (tb, l_out, C) <-> (tb*l_out, C) reshape is a layout no-op.
    out_dtype = x.dtype

    xb = x.astype(compute_dtype)                       # bf16 at the boundary
    wb = weight.astype(compute_dtype)
    bias2d = bias.reshape(1, C_out).astype(jnp.float32)

    tb, B_pad = _choose_block(B, block_b)
    if B_pad != B:
        xb = jnp.pad(xb, ((0, B_pad - B), (0, 0), (0, 0)))

    vmem_bytes = (
        2 * _padded_bytes((tb, L, C_in), compute_dtype)        # x, double-buf
        + _padded_bytes((K, C_in, C_out), compute_dtype)       # weight
        + _padded_bytes((1, C_out), jnp.float32)               # bias
        + 2 * _padded_bytes((tb, C_out), out_dtype)            # out, double-buf
        + 2 * _padded_bytes((tb * l_out, C_out), jnp.float32)  # f32 acc temps
        + 2 * 1024 * 1024)                                     # slack

    kernel = functools.partial(_desc_conv_kernel, kernel_size=K, l_out=l_out,
                               inv_l_out=1.0 / float(l_out), eps=1e-24)
    out = pl.pallas_call(
        kernel,
        out_shape=jax.ShapeDtypeStruct((B_pad, C_out), out_dtype),
        grid_spec=pltpu.PrefetchScalarGridSpec(
            num_scalar_prefetch=0,
            grid=(B_pad // tb,),
            in_specs=[
                pl.BlockSpec((tb, L, C_in), lambda i: (i, 0, 0)),
                # weight/bias: constant block index -> stay VMEM resident.
                pl.BlockSpec((K, C_in, C_out), lambda i: (0, 0, 0)),
                pl.BlockSpec((1, C_out), lambda i: (0, 0)),
            ],
            out_specs=pl.BlockSpec((tb, C_out), lambda i: (i, 0)),
        ),
        compiler_params=pltpu.CompilerParams(
            dimension_semantics=("parallel",),
            vmem_limit_bytes=_vmem_limit(vmem_bytes)),
    )(xb, wb, bias2d)
    return out[:B]


# ----------------------------------------------------------------------------
# Kernel 2: mean path (desc_is_avg=False)
#   Batched masked mean over tokens.  Mask is a 2-D (tb, L_max) iota/compare,
#   broadcast only at the select; sums accumulate in f32 from bf16 inputs.
# ----------------------------------------------------------------------------
def _desc_mean_kernel(x_ref, len_ref, o_ref):
    tb, l_max, _ = x_ref.shape
    n = len_ref[...]                                         # (tb, 1) int32
    idx = jax.lax.broadcasted_iota(jnp.int32, (tb, l_max), 1)
    mask2d = idx < n                                         # (tb, L_max) bool
    x = x_ref[...].astype(jnp.float32)                       # (tb, L_max, E)
    s = jnp.sum(jnp.where(mask2d[:, :, None], x, 0.0), axis=1)   # (tb, E)
    inv = pl.reciprocal(jnp.maximum(n.astype(jnp.float32), 1.0), approx=False)
    o_ref[...] = (s * inv).astype(o_ref.dtype)


def desc_encoder_mean(x_padded, lengths, *, block_b=128,
                      compute_dtype=jnp.bfloat16):
    """x_padded: (B, L_max, E); lengths: (B,) int32 (true tokens per page)."""
    B, L_max, E = x_padded.shape
    out_dtype = x_padded.dtype

    xb = x_padded.astype(compute_dtype)               # bf16 at the boundary
    lengths2d = lengths.reshape(B, 1).astype(jnp.int32)

    tb, B_pad = _choose_block(B, block_b)
    if B_pad != B:
        xb = jnp.pad(xb, ((0, B_pad - B), (0, 0), (0, 0)))
        lengths2d = jnp.pad(lengths2d, ((0, B_pad - B), (0, 0)),
                            constant_values=1)

    vmem_bytes = (
        2 * _padded_bytes((tb, L_max, E), compute_dtype)       # x, double-buf
        + _padded_bytes((tb, L_max, E), jnp.float32)           # f32 masked copy
        + 2 * _padded_bytes((tb, 1), jnp.int32)
        + 2 * _padded_bytes((tb, E), out_dtype)
        + 2 * 1024 * 1024)

    out = pl.pallas_call(
        _desc_mean_kernel,
        out_shape=jax.ShapeDtypeStruct((B_pad, E), out_dtype),
        grid_spec=pltpu.PrefetchScalarGridSpec(
            num_scalar_prefetch=0,
            grid=(B_pad // tb,),
            in_specs=[
                pl.BlockSpec((tb, L_max, E), lambda i: (i, 0, 0)),
                pl.BlockSpec((tb, 1), lambda i: (i, 0)),
            ],
            out_specs=pl.BlockSpec((tb, E), lambda i: (i, 0)),
        ),
        compiler_params=pltpu.CompilerParams(
            dimension_semantics=("parallel",),
            vmem_limit_bytes=_vmem_limit(vmem_bytes)),
    )(xb, lengths2d)
    return out[:B]


# ----------------------------------------------------------------------------
# Pure-JAX references (no torch).  They apply the same bf16 boundary cast as
# the kernels so the comparison isolates kernel correctness.
# ----------------------------------------------------------------------------
def _ref_conv(x, weight, bias, kernel_size=5, compute_dtype=jnp.bfloat16,
              eps=1e-24):
    B, L, C_in = x.shape
    K, _, C_out = weight.shape
    l_out = L - kernel_size + 1
    xb = x.astype(compute_dtype)
    wb = weight.astype(compute_dtype)
    out = jnp.zeros((B, l_out, C_out), jnp.float32)
    for k in range(K):
        out = out + jnp.einsum("blc,cd->bld", xb[:, k:k + l_out, :], wb[k],
                               preferred_element_type=jnp.float32)
    out = jnp.maximum(out + bias[None, None, :].astype(jnp.float32), 0.0)
    pooled = jnp.mean(out, axis=1)
    inv = jax.lax.rsqrt(
        jnp.maximum(jnp.sum(pooled * pooled, axis=1, keepdims=True), eps))
    return (pooled * inv).astype(x.dtype)


def _ref_mean(x_padded, lengths, compute_dtype=jnp.bfloat16):
    xb = x_padded.astype(compute_dtype).astype(jnp.float32)
    idx = jnp.arange(x_padded.shape[1])[None, :, None]
    mask = idx < lengths[:, None, None]
    s = jnp.sum(jnp.where(mask, xb, 0.0), axis=1)
    m = s / jnp.maximum(lengths[:, None], 1).astype(jnp.float32)
    return m.astype(x_padded.dtype)


if __name__ == "__main__":
    key = jax.random.PRNGKey(0)
    k_x, k_w, k_b, k_m, k_l = jax.random.split(key, 5)

    # Small shapes consistent with the module (module pads descriptions to 100
    # tokens; shrunk for the demo).
    B = 64             # batch of descriptions / pages
    L = 20             # padded description length (l_out = 16, sublane aligned)
    WORD_EMBED = 32    # word_embed_len  (conv in-channels)
    DESC_EMBED = 16    # entity_embeds.weight.shape[1] (conv out-channels)
    KSIZE = 5

    # Deterministic synthetic parameters (not a checkpoint load).
    x = jax.random.normal(k_x, (B, L, WORD_EMBED), jnp.float32)
    weight = jax.random.normal(k_w, (KSIZE, WORD_EMBED, DESC_EMBED),
                               jnp.float32) * 0.1
    bias = jax.random.normal(k_b, (DESC_EMBED,), jnp.float32) * 0.05

    # --- desc_is_avg=True path (Conv1d + ReLU + avg-pool + L2 normalize) ---
    out_conv = jax.block_until_ready(
        desc_encoder_conv(x, weight, bias, kernel_size=KSIZE, block_b=128))
    ref_conv = _ref_conv(x, weight, bias, KSIZE)
    np.testing.assert_allclose(np.asarray(out_conv), np.asarray(ref_conv),
                               rtol=2e-3, atol=2e-3)

    # --- desc_is_avg=False path (per-page mean over tokens) ---
    x_pages = jax.random.normal(k_m, (B, L, WORD_EMBED), jnp.float32)
    lengths = jax.random.randint(k_l, (B,), 3, L + 1, jnp.int32)
    out_mean = jax.block_until_ready(
        desc_encoder_mean(x_pages, lengths, block_b=128))
    ref_mean = _ref_mean(x_pages, lengths)
    np.testing.assert_allclose(np.asarray(out_mean), np.asarray(ref_mean),
                               rtol=1e-4, atol=1e-4)

    print("KERNEL_OK")
</pallas_src>

<mosaic_0001>
module attributes {stable_mosaic.version = 11 : i64} {
  func.func @_desc_conv_kernel(%arg0: i32, %arg1: memref<32x20x32xbf16, #tpu.memory_space<vmem>>, %arg2: memref<5x32x16xbf16, #tpu.memory_space<vmem>>, %arg3: memref<1x16xf32, #tpu.memory_space<vmem>>, %arg4: memref<32x16xf32, #tpu.memory_space<vmem>>) attributes {dimension_semantics = [#tpu.dimension_semantics<parallel>], iteration_bounds = array<i64: 2>, scalar_prefetch = 0 : i64, scratch_operands = 0 : i64, tpu.core_type = #tpu.core_type<tc>, window_params = [{transform_indices = @transform_0, window_bounds = array<i64: 32, 20, 32>}, {pipeline_mode = #tpu.pipeline_mode<synchronous>, transform_indices = @transform_1, window_bounds = array<i64: 5, 32, 16>}, {pipeline_mode = #tpu.pipeline_mode<synchronous>, transform_indices = @transform_2, window_bounds = array<i64: 1, 16>}, {transform_indices = @transform_3, window_bounds = array<i64: 32, 16>}]} {
    %c0 = arith.constant 0 : index
    %c0_0 = arith.constant 0 : index
    %c0_1 = arith.constant 0 : index
    %0 = vector.load %arg1[%c0, %c0_0, %c0_1] : memref<32x20x32xbf16, #tpu.memory_space<vmem>>, vector<32x20x32xbf16>
    %cst = arith.constant 0.000000e+00 : f32
    %1 = vector.broadcast %cst : f32 to vector<512x16xf32>
    %2 = vector.extract_strided_slice %0 {offsets = [0, 0, 0], sizes = [32, 16, 32], strides = [1, 1, 1]} : vector<32x20x32xbf16> to vector<32x16x32xbf16>
    %3 = vector.shape_cast %2 : vector<32x16x32xbf16> to vector<512x32xbf16>
    %c0_2 = arith.constant 0 : index
    %c0_3 = arith.constant 0 : index
    %c0_4 = arith.constant 0 : index
    %4 = vector.load %arg2[%c0_2, %c0_3, %c0_4] : memref<5x32x16xbf16, #tpu.memory_space<vmem>>, vector<1x32x16xbf16>
    %5 = vector.shape_cast %4 : vector<1x32x16xbf16> to vector<32x16xbf16>
    %cst_5 = arith.constant dense<0.000000e+00> : vector<512x16xf32>
    %6 = tpu.matmul %3, %5, %cst_5 {dimension_numbers = #tpu.dot_dimension_numbers<[1], [0], [0], [1], [0, 0, 1, 1], [], []>} : vector<512x32xbf16>, vector<32x16xbf16>, vector<512x16xf32> -> vector<512x16xf32>
    %7 = arith.addf %1, %6 : vector<512x16xf32>
    %8 = vector.extract_strided_slice %0 {offsets = [0, 1, 0], sizes = [32, 16, 32], strides = [1, 1, 1]} : vector<32x20x32xbf16> to vector<32x16x32xbf16>
    %9 = vector.shape_cast %8 : vector<32x16x32xbf16> to vector<512x32xbf16>
    %c1 = arith.constant 1 : index
    %c0_6 = arith.constant 0 : index
    %c0_7 = arith.constant 0 : index
    %10 = vector.load %arg2[%c1, %c0_6, %c0_7] : memref<5x32x16xbf16, #tpu.memory_space<vmem>>, vector<1x32x16xbf16>
    %11 = vector.shape_cast %10 : vector<1x32x16xbf16> to vector<32x16xbf16>
    %cst_8 = arith.constant dense<0.000000e+00> : vector<512x16xf32>
    %12 = tpu.matmul %9, %11, %cst_8 {dimension_numbers = #tpu.dot_dimension_numbers<[1], [0], [0], [1], [0, 0, 1, 1], [], []>} : vector<512x32xbf16>, vector<32x16xbf16>, vector<512x16xf32> -> vector<512x16xf32>
    %13 = arith.addf %7, %12 : vector<512x16xf32>
    %14 = vector.extract_strided_slice %0 {offsets = [0, 2, 0], sizes = [32, 16, 32], strides = [1, 1, 1]} : vector<32x20x32xbf16> to vector<32x16x32xbf16>
    %15 = vector.shape_cast %14 : vector<32x16x32xbf16> to vector<512x32xbf16>
    %c2 = arith.constant 2 : index
    %c0_9 = arith.constant 0 : index
    %c0_10 = arith.constant 0 : index
    %16 = vector.load %arg2[%c2, %c0_9, %c0_10] : memref<5x32x16xbf16, #tpu.memory_space<vmem>>, vector<1x32x16xbf16>
    %17 = vector.shape_cast %16 : vector<1x32x16xbf16> to vector<32x16xbf16>
    %cst_11 = arith.constant dense<0.000000e+00> : vector<512x16xf32>
    %18 = tpu.matmul %15, %17, %cst_11 {dimension_numbers = #tpu.dot_dimension_numbers<[1], [0], [0], [1], [0, 0, 1, 1], [], []>} : vector<512x32xbf16>, vector<32x16xbf16>, vector<512x16xf32> -> vector<512x16xf32>
    %19 = arith.addf %13, %18 : vector<512x16xf32>
    %20 = vector.extract_strided_slice %0 {offsets = [0, 3, 0], sizes = [32, 16, 32], strides = [1, 1, 1]} : vector<32x20x32xbf16> to vector<32x16x32xbf16>
    %21 = vector.shape_cast %20 : vector<32x16x32xbf16> to vector<512x32xbf16>
    %c3 = arith.constant 3 : index
    %c0_12 = arith.constant 0 : index
    %c0_13 = arith.constant 0 : index
    %22 = vector.load %arg2[%c3, %c0_12, %c0_13] : memref<5x32x16xbf16, #tpu.memory_space<vmem>>, vector<1x32x16xbf16>
    %23 = vector.shape_cast %22 : vector<1x32x16xbf16> to vector<32x16xbf16>
    %cst_14 = arith.constant dense<0.000000e+00> : vector<512x16xf32>
    %24 = tpu.matmul %21, %23, %cst_14 {dimension_numbers = #tpu.dot_dimension_numbers<[1], [0], [0], [1], [0, 0, 1, 1], [], []>} : vector<512x32xbf16>, vector<32x16xbf16>, vector<512x16xf32> -> vector<512x16xf32>
    %25 = arith.addf %19, %24 : vector<512x16xf32>
    %26 = vector.extract_strided_slice %0 {offsets = [0, 4, 0], sizes = [32, 16, 32], strides = [1, 1, 1]} : vector<32x20x32xbf16> to vector<32x16x32xbf16>
    %27 = vector.shape_cast %26 : vector<32x16x32xbf16> to vector<512x32xbf16>
    %c4 = arith.constant 4 : index
    %c0_15 = arith.constant 0 : index
    %c0_16 = arith.constant 0 : index
    %28 = vector.load %arg2[%c4, %c0_15, %c0_16] : memref<5x32x16xbf16, #tpu.memory_space<vmem>>, vector<1x32x16xbf16>
    %29 = vector.shape_cast %28 : vector<1x32x16xbf16> to vector<32x16xbf16>
    %cst_17 = arith.constant dense<0.000000e+00> : vector<512x16xf32>
    %30 = tpu.matmul %27, %29, %cst_17 {dimension_numbers = #tpu.dot_dimension_numbers<[1], [0], [0], [1], [0, 0, 1, 1], [], []>} : vector<512x32xbf16>, vector<32x16xbf16>, vector<512x16xf32> -> vector<512x16xf32>
    %31 = arith.addf %25, %30 : vector<512x16xf32>
    %c0_18 = arith.constant 0 : index
    %c0_19 = arith.constant 0 : index
    %32 = vector.load %arg3[%c0_18, %c0_19] : memref<1x16xf32, #tpu.memory_space<vmem>>, vector<1x16xf32>
    %33 = vector.broadcast %32 : vector<1x16xf32> to vector<512x16xf32>
    %34 = arith.addf %31, %33 : vector<512x16xf32>
    %cst_20 = arith.constant 0.000000e+00 : f32
    %35 = vector.broadcast %cst_20 : f32 to vector<512x16xf32>
    %36 = arith.maximumf %34, %35 : vector<512x16xf32>
    %37 = vector.shape_cast %36 : vector<512x16xf32> to vector<32x16x16xf32>
    %cst_21 = arith.constant dense<0.000000e+00> : vector<32x16xf32>
    %38 = vector.multi_reduction <add>, %37, %cst_21 [1] : vector<32x16x16xf32> to vector<32x16xf32>
    %cst_22 = arith.constant 6.250000e-02 : f32
    %39 = vector.broadcast %cst_22 : f32 to vector<32x16xf32>
    %40 = arith.mulf %38, %39 : vector<32x16xf32>
    %41 = arith.mulf %40, %40 : vector<32x16xf32>
    %cst_23 = arith.constant dense<0.000000e+00> : vector<32xf32>
    %42 = vector.multi_reduction <add>, %41, %cst_23 [1] : vector<32x16xf32> to vector<32xf32>
    %43 = vector.shape_cast %42 : vector<32xf32> to vector<32x1xf32>
    %cst_24 = arith.constant 1.000000e-24 : f32
    %44 = vector.broadcast %cst_24 : f32 to vector<32x1xf32>
    %45 = arith.maximumf %43, %44 : vector<32x1xf32>
    %46 = math.rsqrt %45 : vector<32x1xf32>
    %47 = vector.broadcast %46 : vector<32x1xf32> to vector<32x16xf32>
    %48 = arith.mulf %40, %47 : vector<32x16xf32>
    %c0_25 = arith.constant 0 : index
    %c0_26 = arith.constant 0 : index
    %49 = vector.load %arg4[%c0_25, %c0_26] : memref<32x16xf32, #tpu.memory_space<vmem>>, vector<32x16xf32>
    tpu.vector_store %arg4[%c0_25, %c0_26], %48 {strides = array<i32>} : memref<32x16xf32, #tpu.memory_space<vmem>>, vector<32x16xf32>,
    return
  }
  func.func @transform_0(%arg0: i32) -> (i32, i32, i32) {
    %c0_i32 = arith.constant 0 : i32
    %c0_i32_0 = arith.constant 0 : i32
    %c0_i32_1 = arith.constant 0 : i32
    return %arg0, %c0_i32, %c0_i32_0 : i32, i32, i32
  }
  func.func @transform_1(%arg0: i32) -> (i32, i32, i32) {
    %c0_i32 = arith.constant 0 : i32
    %c0_i32_0 = arith.constant 0 : i32
    %c0_i32_1 = arith.constant 0 : i32
    %c0_i32_2 = arith.constant 0 : i32
    return %c0_i32, %c0_i32_0, %c0_i32_1 : i32, i32, i32
  }
  func.func @transform_2(%arg0: i32) -> (i32, i32) {
    %c0_i32 = arith.constant 0 : i32
    %c0_i32_0 = arith.constant 0 : i32
    %c0_i32_1 = arith.constant 0 : i32
    return %c0_i32, %c0_i32_0 : i32, i32
  }
  func.func @transform_3(%arg0: i32) -> (i32, i32) {
    %c0_i32 = arith.constant 0 : i32
    %c0_i32_0 = arith.constant 0 : i32
    return %arg0, %c0_i32 : i32, i32
  }
}

</mosaic_0001>

<llo_original>
// kernel: tpu_custom_call.1
$region0: #{tpu_custom_call.1}
  #allocation0 [shape = 'u32[]', space=smem, size = 0x4, offset = 0x4, fixed_abs, tag = 'smem constant byte address 0x4 - core index']
  #allocation1 [shape = 'u32[144,128]{1,0:T(1,128)}', space=vmem, size = 0x12000, scoped, tag = 'internal scratch']
  %s0 = inlined_call_operand.vmem [shape: bf16[64,20,32], index: 0, kind: input, shape index: {}]
  %s1 = inlined_call_operand.vmem [shape: bf16[5,32,16], index: 1, kind: input, shape index: {}]
  %s2 = inlined_call_operand.vmem [shape: f32[1,16], index: 2, kind: input, shape index: {}]
  %s3 = inlined_call_operand.vmem [shape: f32[64,16], index: 3, kind: output, shape index: {}]
  %s4 = sld [smem:[#allocation0]]
  $region45: #{tpu_custom_call.1} parent=0
    _
  %s6 = ssub.s32 1, %s4
  %s7 = scalar_select 0, %s6, %s4
  loop: start=0, step=1, limit=4
  $region2: #{tpu_custom_call.1} parent=0 // loop_pre_header
    _
  $region3: #{tpu_custom_call.1} parent=0 // loop_header
    %s9 = sphi 0, %s13
    %p10 = scmp.ge.s32.totalorder %s9, 4
    %s19 = sphi 0, %s21
    %s22 = sphi 0, %s19
    %s23 = sphi 0, %s22
    %s39 = sphi 0, %s23
    %s43 = sphi 0, %s43
    %s45 = sphi 0, %s43
    %s46 = sphi 0, %s45
    %s60 = sphi 0, %s46
    %s64 = sphi 0, %s64
    %s66 = sphi 0, %s64
    %s67 = sphi 0, %s66
    %s81 = sphi 0, %s67
    %s87 = sphi 0, %s89
    %s90 = sphi 0, %s87
    %s91 = sphi 0, %s90
    %s107 = sphi 0, %s91
  $region4: #{tpu_custom_call.1} parent=0 // loop_header_branch
    %12 = sbr.rel (%p10) target = $region8
  $region5: #{tpu_custom_call.1} parent=0 // loop_body
    %s14 = ssub.s32 %s9, 1
    %s15 = ssub.s32 %s9, 2
    %s16 = sadd.s32 %s9, 1
    %s17 = ssub.s32 %s9, %s16
    %p18 = scmp.eq.s32.totalorder %s17, 0
    %s20 = sadd.s32 %s19, 1
    %s21 = scalar_select %p18, %s19, %s20
    %p24 = pneg %p18
    %p25 = scmp.eq.s32.totalorder %s9, 1
    %p26 = por %p24, %p25
    %p27 = scmp.ne.s32.totalorder %s19, %s22
    %p28 = scmp.eq.s32.totalorder %s9, 0
    %p29 = por %p27, %p28
    %p30 = scmp.ne.s32.totalorder %s19, %s22
    %p31 = scmp.eq.s32.totalorder %s14, 1
    %p32 = por %p30, %p31
    %p33 = scmp.ne.s32.totalorder %s22, %s23
    %p34 = scmp.eq.s32.totalorder %s14, 0
    %p35 = por %p33, %p34
    %p36 = scmp.ne.s32.totalorder %s22, %s23
    %p37 = scmp.eq.s32.totalorder %s15, 1
    %p38 = por %p36, %p37
    %p40 = scmp.ne.s32.totalorder %s23, %s39
    %p41 = scmp.eq.s32.totalorder %s15, 0
    %p42 = por %p40, %p41
    %s44 = sadd.s32 %s43, 1
    %p47 = scmp.eq.s32.totalorder %s9, 1
    %p48 = scmp.ne.s32.totalorder %s43, %s45
    %p49 = scmp.eq.s32.totalorder %s9, 0
    %p50 = por %p48, %p49
    %p51 = scmp.ne.s32.totalorder %s43, %s45
    %p52 = scmp.eq.s32.totalorder %s14, 1
    %p53 = por %p51, %p52
    %p54 = scmp.ne.s32.totalorder %s45, %s46
    %p55 = scmp.eq.s32.totalorder %s14, 0
    %p56 = por %p54, %p55
    %p57 = scmp.ne.s32.totalorder %s45, %s46
    %p58 = scmp.eq.s32.totalorder %s15, 1
    %p59 = por %p57, %p58
    %p61 = scmp.ne.s32.totalorder %s46, %s60
    %p62 = scmp.eq.s32.totalorder %s15, 0
    %p63 = por %p61, %p62
    %s65 = sadd.s32 %s64, 1
    %p68 = scmp.eq.s32.totalorder %s9, 1
    %p69 = scmp.ne.s32.totalorder %s64, %s66
    %p70 = scmp.eq.s32.totalorder %s9, 0
    %p71 = por %p69, %p70
    %p72 = scmp.ne.s32.totalorder %s64, %s66
    %p73 = scmp.eq.s32.totalorder %s14, 1
    %p74 = por %p72, %p73
    %p75 = scmp.ne.s32.totalorder %s66, %s67
    %p76 = scmp.eq.s32.totalorder %s14, 0
    %p77 = por %p75, %p76
    %p78 = scmp.ne.s32.totalorder %s66, %s67
    %p79 = scmp.eq.s32.totalorder %s15, 1
    %p80 = por %p78, %p79
    %p82 = scmp.ne.s32.totalorder %s67, %s81
    %p83 = scmp.eq.s32.totalorder %s15, 0
    %p84 = por %p82, %p83
    %s85 = ssub.s32 %s9, %s16
    %p86 = scmp.eq.s32.totalorder %s85, 0
    %s88 = sadd.s32 %s87, 1
    %s89 = scalar_select %p86, %s87, %s88
    %p92 = pneg %p86
    %p93 = scmp.eq.s32.totalorder %s9, 1
    %p94 = por %p92, %p93
    %p95 = scmp.ne.s32.totalorder %s87, %s90
    %p96 = scmp.eq.s32.totalorder %s9, 0
    %p97 = por %p95, %p96
    %p98 = scmp.ne.s32.totalorder %s87, %s90
    %p99 = scmp.eq.s32.totalorder %s14, 1
    %p100 = por %p98, %p99
    %p101 = scmp.ne.s32.totalorder %s90, %s91
    %p102 = scmp.eq.s32.totalorder %s14, 0
    %p103 = por %p101, %p102
    %p104 = scmp.ne.s32.totalorder %s90, %s91
    %p105 = scmp.eq.s32.totalorder %s15, 1
    %p106 = por %p104, %p105
    %p108 = scmp.ne.s32.totalorder %s91, %s107
    %p109 = scmp.eq.s32.totalorder %s15, 0
    %p110 = por %p108, %p109
    %p111 = scmp.le.s32.totalorder 1, %s9
    %p112 = scmp.lt.s32.totalorder %s9, 3
    %p113 = pnand %p111, %p112
    %p114 = pneg %p113
    // Predicated region
    $region9: #{tpu_custom_call.1} parent=5 // pred_check
      _
    $region10: #{tpu_custom_call.1} parent=5 // pred_check_branch
      %116 = sbr.rel (%p113) target = $region12
    $region11: #{tpu_custom_call.1} parent=5 // pred_region
      %s117 = ssub.s32 %s9, 1
      // Predicated region
      $region13: #{tpu_custom_call.1} parent=11 // pred_check
        %p118 = pneg %p56
      $region14: #{tpu_custom_call.1} parent=11 // pred_check_branch
        %120 = sbr.rel (%p118) target = $region16
      $region15: #{tpu_custom_call.1} parent=11 // pred_region
        _
      $region16: #{tpu_custom_call.1} parent=11 // pred_fallthru
        _
      // Predicated region
      $region17: #{tpu_custom_call.1} parent=11 // pred_check
        %p121 = pneg %p77
      $region18: #{tpu_custom_call.1} parent=11 // pred_check_branch
        %123 = sbr.rel (%p121) target = $region20
      $region19: #{tpu_custom_call.1} parent=11 // pred_region
        _
      $region20: #{tpu_custom_call.1} parent=11 // pred_fallthru
        _
    $region12: #{tpu_custom_call.1} parent=5 // pred_fallthru
      _
    %p124 = scmp.lt.s32.totalorder %s9, 2
    // Predicated region
    $region21: #{tpu_custom_call.1} parent=5 // pred_check
      %p125 = pneg %p124
    $region22: #{tpu_custom_call.1} parent=5 // pred_check_branch
      %127 = sbr.rel (%p125) target = $region24
    $region23: #{tpu_custom_call.1} parent=5 // pred_region
      // Predicated region
      $region25: #{tpu_custom_call.1} parent=23 // pred_check
        %p128 = pneg %p29
      $region26: #{tpu_custom_call.1} parent=23 // pred_check_branch
        %130 = sbr.rel (%p128) target = $region28
      $region27: #{tpu_custom_call.1} parent=23 // pred_region
        %s131 = smul.u32 32, %s9
        %p132 = scmp.lt.s32.totalorder %s131, 63
        %s133 = scalar_select %p132, %s131, 63
        %s134 = smul.addr %s133, 3
        %s135 = smul.addr %s134, 4
        %s136 = scalar_lea.vmem %s0, %s135
        %s137 = smul.u32 32, %s9
      $region28: #{tpu_custom_call.1} parent=23 // pred_fallthru
        _
    $region24: #{tpu_custom_call.1} parent=5 // pred_fallthru
      _
    %p138 = scmp.le.s32.totalorder 1, %s9
    %p139 = scmp.lt.s32.totalorder %s9, 3
    %p140 = pnand %p138, %p139
    %p141 = pneg %p140
    // Predicated region
    $region29: #{tpu_custom_call.1} parent=5 // pred_check
      _
    $region30: #{tpu_custom_call.1} parent=5 // pred_check_branch
      %143 = sbr.rel (%p140) target = $region32
    $region31: #{tpu_custom_call.1} parent=5 // pred_region
      %s144 = ssub.s32 %s9, 1
      %s145 = smul.u32 32, %s14
      %p146 = scmp.lt.s32.totalorder %s145, 63
      %s147 = scalar_select %p146, %s145, 63
      %s148 = smul.addr %s147, 3
      %s149 = smul.addr %s148, 4
      %s150 = scalar_lea.vmem %s0, %s149
      %p151 = pneg %p35
      %p152 = pneg %p32
      %p153 = pneg %p56
      %p154 = pneg %p53
      %p155 = pneg %p77
      %p156 = pneg %p74
      %p157 = pneg %p103
      %p158 = pneg %p100
      %s159 = smul.u32 4, %s14
      %p160 = scmp.lt.s32.totalorder %s159, 7
      %s161 = scalar_select %p160, %s159, 7
      %s162 = smul.addr %s161, 8
      %s163 = scalar_lea.vmem %s3, %s162
      %s164 = smul.u32 32, %s14
      %p165 = scmp.lt.s32.totalorder %s164, 63
      %s166 = scalar_select %p165, %s164, 63
      %s167 = smul.addr %s166, 3
      %s168 = smul.addr %s167, 4
      %s169 = scalar_lea.vmem %s0, %s168
      %s170 = smul.u32 32, %s14
      %s171 = smul.u32 4, %s14
      %p172 = scmp.lt.s32.totalorder %s171, 7
      %s173 = scalar_select %p172, %s171, 7
      %s174 = smul.addr %s173, 8
      %s175 = scalar_lea.vmem %s3, %s174
      %s176 = smul.u32 4, %s14
      %v178 = vld [vmem:[%s169] sm:$0xf]
      %v179 = vld [vmem:[%s169 + $0x4] sm:$0xf]
      %v180 = vld [vmem:[%s169 + $0x8] sm:$0x3]
      %v181 = vld [vmem:[%s169 + $0xc] sm:$0xf]
      %v182 = vld [vmem:[%s169 + $0x10] sm:$0xf]
      %v183 = vld [vmem:[%s169 + $0x14] sm:$0x3]
      %v184 = vld [vmem:[%s169 + $0x18] sm:$0xf]
      %v185 = vld [vmem:[%s169 + $0x1c] sm:$0xf]
      %v186 = vld [vmem:[%s169 + $0x20] sm:$0x3]
      %v187 = vld [vmem:[%s169 + $0x24] sm:$0xf]
      %v188 = vld [vmem:[%s169 + $0x28] sm:$0xf]
      %v189 = vld [vmem:[%s169 + $0x2c] sm:$0x3]
      %v190 = vld [vmem:[%s169 + $0x30] sm:$0xf]
      %v191 = vld [vmem:[%s169 + $0x34] sm:$0xf]
      %v192 = vld [vmem:[%s169 + $0x38] sm:$0x3]
      %v193 = vld [vmem:[%s169 + $0x3c] sm:$0xf]
      %v194 = vld [vmem:[%s169 + $0x40] sm:$0xf]
      %v195 = vld [vmem:[%s169 + $0x44] sm:$0x3]
      %v196 = vld [vmem:[%s169 + $0x48] sm:$0xf]
      %v197 = vld [vmem:[%s169 + $0x4c] sm:$0xf]
      %v198 = vld [vmem:[%s169 + $0x50] sm:$0x3]
      %v199 = vld [vmem:[%s169 + $0x54] sm:$0xf]
      %v200 = vld [vmem:[%s169 + $0x58] sm:$0xf]
      %v201 = vld [vmem:[%s169 + $0x5c] sm:$0x3]
      %v202 = vld [vmem:[%s169 + $0x60] sm:$0xf]
      %v203 = vld [vmem:[%s169 + $0x64] sm:$0xf]
      %v204 = vld [vmem:[%s169 + $0x68] sm:$0x3]
      %v205 = vld [vmem:[%s169 + $0x6c] sm:$0xf]
      %v206 = vld [vmem:[%s169 + $0x70] sm:$0xf]
      %v207 = vld [vmem:[%s169 + $0x74] sm:$0x3]
      %v208 = vld [vmem:[%s169 + $0x78] sm:$0xf]
      %v209 = vld [vmem:[%s169 + $0x7c] sm:$0xf]
      %v210 = vld [vmem:[%s169 + $0x80] sm:$0x3]
      %v211 = vld [vmem:[%s169 + $0x84] sm:$0xf]
      %v212 = vld [vmem:[%s169 + $0x88] sm:$0xf]
      %v213 = vld [vmem:[%s169 + $0x8c] sm:$0x3]
      %v214 = vld [vmem:[%s169 + $0x90] sm:$0xf]
      %v215 = vld [vmem:[%s169 + $0x94] sm:$0xf]
      %v216 = vld [vmem:[%s169 + $0x98] sm:$0x3]
      %v217 = vld [vmem:[%s169 + $0x9c] sm:$0xf]
      %v218 = vld [vmem:[%s169 + $0xa0] sm:$0xf]
      %v219 = vld [vmem:[%s169 + $0xa4] sm:$0x3]
      %v220 = vld [vmem:[%s169 + $0xa8] sm:$0xf]
      %v221 = vld [vmem:[%s169 + $0xac] sm:$0xf]
      %v222 = vld [vmem:[%s169 + $0xb0] sm:$0x3]
      %v223 = vld [vmem:[%s169 + $0xb4] sm:$0xf]
      %v224 = vld [vmem:[%s169 + $0xb8] sm:$0xf]
      %v225 = vld [vmem:[%s169 + $0xbc] sm:$0x3]
      %v226 = vld [vmem:[%s169 + $0xc0] sm:$0xf]
      %v227 = vld [vmem:[%s169 + $0xc4] sm:$0xf]
      %v228 = vld [vmem:[%s169 + $0xc8] sm:$0x3]
      %v229 = vld [vmem:[%s169 + $0xcc] sm:$0xf]
      %v230 = vld [vmem:[%s169 + $0xd0] sm:$0xf]
      %v231 = vld [vmem:[%s169 + $0xd4] sm:$0x3]
      %v232 = vld [vmem:[%s169 + $0xd8] sm:$0xf]
      %v233 = vld [vmem:[%s169 + $0xdc] sm:$0xf]
      %v234 = vld [vmem:[%s169 + $0xe0] sm:$0x3]
      %v235 = vld [vmem:[%s169 + $0xe4] sm:$0xf]
      %v236 = vld [vmem:[%s169 + $0xe8] sm:$0xf]
      %v237 = vld [vmem:[%s169 + $0xec] sm:$0x3]
      %v238 = vld [vmem:[%s169 + $0xf0] sm:$0xf]
      %v239 = vld [vmem:[%s169 + $0xf4] sm:$0xf]
      %v240 = vld [vmem:[%s169 + $0xf8] sm:$0x3]
      %v241 = vld [vmem:[%s169 + $0xfc] sm:$0xf]
      %v242 = vld [vmem:[%s169 + $0x100] sm:$0xf]
      %v243 = vld [vmem:[%s169 + $0x104] sm:$0x3]
      %v244 = vld [vmem:[%s169 + $0x108] sm:$0xf]
      %v245 = vld [vmem:[%s169 + $0x10c] sm:$0xf]
      %v246 = vld [vmem:[%s169 + $0x110] sm:$0x3]
      %v247 = vld [vmem:[%s169 + $0x114] sm:$0xf]
      %v248 = vld [vmem:[%s169 + $0x118] sm:$0xf]
      %v249 = vld [vmem:[%s169 + $0x11c] sm:$0x3]
      %v250 = vld [vmem:[%s169 + $0x120] sm:$0xf]
      %v251 = vld [vmem:[%s169 + $0x124] sm:$0xf]
      %v252 = vld [vmem:[%s169 + $0x128] sm:$0x3]
      %v253 = vld [vmem:[%s169 + $0x12c] sm:$0xf]
      %v254 = vld [vmem:[%s169 + $0x130] sm:$0xf]
      %v255 = vld [vmem:[%s169 + $0x134] sm:$0x3]
      %v256 = vld [vmem:[%s169 + $0x138] sm:$0xf]
      %v257 = vld [vmem:[%s169 + $0x13c] sm:$0xf]
      %v258 = vld [vmem:[%s169 + $0x140] sm:$0x3]
      %v259 = vld [vmem:[%s169 + $0x144] sm:$0xf]
      %v260 = vld [vmem:[%s169 + $0x148] sm:$0xf]
      %v261 = vld [vmem:[%s169 + $0x14c] sm:$0x3]
      %v262 = vld [vmem:[%s169 + $0x150] sm:$0xf]
      %v263 = vld [vmem:[%s169 + $0x154] sm:$0xf]
      %v264 = vld [vmem:[%s169 + $0x158] sm:$0x3]
      %v265 = vld [vmem:[%s169 + $0x15c] sm:$0xf]
      %v266 = vld [vmem:[%s169 + $0x160] sm:$0xf]
      %v267 = vld [vmem:[%s169 + $0x164] sm:$0x3]
      %v268 = vld [vmem:[%s169 + $0x168] sm:$0xf]
      %v269 = vld [vmem:[%s169 + $0x16c] sm:$0xf]
      %v270 = vld [vmem:[%s169 + $0x170] sm:$0x3]
      %v271 = vld [vmem:[%s169 + $0x174] sm:$0xf]
      %v272 = vld [vmem:[%s169 + $0x178] sm:$0xf]
      %v273 = vld [vmem:[%s169 + $0x17c] sm:$0x3]
      %v274 = vld [vmem:[%s1] sm:$0xf]
      %v275 = vld [vmem:[%s1 + $0x4] sm:$0xf]
      %v276 = vld [vmem:[%s1 + $0x8] sm:$0xf]
      %v277 = vld [vmem:[%s1 + $0xc] sm:$0xf]
      %vm278 = vsmask.f32 3328
      %vm279 = vsmask.f32 7440
      %vm280 = vmor %vm278, %vm279
      %v282 = vshrl.u32 %v178, 16
      %v284 = vrot.slane %v282, 4
      %v285 = vshll.u32 %v178, 16
      %v287 = vrot.slane %v285, 5
      %v288 = vor.u32 %v284, %v287
      %v289 = vrot.slane %v288, 4
      %v291 = vshll.u32 %v179, 16
      %v293 = vrot.slane %v291, 5
      %v294 = vsel %vm280, %v289, %v293
      %v295 = vshrl.u32 %v179, 16
      %v297 = vrot.slane %v295, 4
      %v298 = vor.u32 %v297, %v293
      %v299 = vrot.slane %v298, 4
      %v301 = vshll.u32 %v180, 16
      %v303 = vrot.slane %v301, 5
      %v304 = vsel %vm280, %v299, %v303
      %v306 = vshrl.u32 %v181, 16
      %v308 = vrot.slane %v306, 4
      %v309 = vshll.u32 %v181, 16
      %v311 = vrot.slane %v309, 5
      %v312 = vor.u32 %v308, %v311
      %v313 = vrot.slane %v312, 4
      %v315 = vshll.u32 %v182, 16
      %v317 = vrot.slane %v315, 5
      %v318 = vsel %vm280, %v313, %v317
      %v319 = vshrl.u32 %v182, 16
      %v321 = vrot.slane %v319, 4
      %v322 = vor.u32 %v321, %v317
      %v323 = vrot.slane %v322, 4
      %v325 = vshll.u32 %v183, 16
      %v327 = vrot.slane %v325, 5
      %v328 = vsel %vm280, %v323, %v327
      %v330 = vshrl.u32 %v184, 16
      %v332 = vrot.slane %v330, 4
      %v333 = vshll.u32 %v184, 16
      %v335 = vrot.slane %v333, 5
      %v336 = vor.u32 %v332, %v335
      %v337 = vrot.slane %v336, 4
      %v339 = vshll.u32 %v185, 16
      %v341 = vrot.slane %v339, 5
      %v342 = vsel %vm280, %v337, %v341
      %v343 = vshrl.u32 %v185, 16
      %v345 = vrot.slane %v343, 4
      %v346 = vor.u32 %v345, %v341
      %v347 = vrot.slane %v346, 4
      %v349 = vshll.u32 %v186, 16
      %v351 = vrot.slane %v349, 5
      %v352 = vsel %vm280, %v347, %v351
      %v354 = vshrl.u32 %v187, 16
      %v356 = vrot.slane %v354, 4
      %v357 = vshll.u32 %v187, 16
      %v359 = vrot.slane %v357, 5
      %v360 = vor.u32 %v356, %v359
      %v361 = vrot.slane %v360, 4
      %v363 = vshll.u32 %v188, 16
      %v365 = vrot.slane %v363, 5
      %v366 = vsel %vm280, %v361, %v365
      %v367 = vshrl.u32 %v188, 16
      %v369 = vrot.slane %v367, 4
      %v370 = vor.u32 %v369, %v365
      %v371 = vrot.slane %v370, 4
      %v373 = vshll.u32 %v189, 16
      %v375 = vrot.slane %v373, 5
      %v376 = vsel %vm280, %v371, %v375
      %v378 = vshrl.u32 %v190, 16
      %v380 = vrot.slane %v378, 4
      %v381 = vshll.u32 %v190, 16
      %v383 = vrot.slane %v381, 5
      %v384 = vor.u32 %v380, %v383
      %v385 = vrot.slane %v384, 4
      %v387 = vshll.u32 %v191, 16
      %v389 = vrot.slane %v387, 5
      %v390 = vsel %vm280, %v385, %v389
      %v391 = vshrl.u32 %v191, 16
      %v393 = vrot.slane %v391, 4
      %v394 = vor.u32 %v393, %v389
      %v395 = vrot.slane %v394, 4
      %v397 = vshll.u32 %v192, 16
      %v399 = vrot.slane %v397, 5
      %v400 = vsel %vm280, %v395, %v399
      %v402 = vshrl.u32 %v193, 16
      %v404 = vrot.slane %v402, 4
      %v405 = vshll.u32 %v193, 16
      %v407 = vrot.slane %v405, 5
      %v408 = vor.u32 %v404, %v407
      %v409 = vrot.slane %v408, 4
      %v411 = vshll.u32 %v194, 16
      %v413 = vrot.slane %v411, 5
      %v414 = vsel %vm280, %v409, %v413
      %v415 = vshrl.u32 %v194, 16
      %v417 = vrot.slane %v415, 4
      %v418 = vor.u32 %v417, %v413
      %v419 = vrot.slane %v418, 4
      %v421 = vshll.u32 %v195, 16
      %v423 = vrot.slane %v421, 5
      %v424 = vsel %vm280, %v419, %v423
      %v426 = vshrl.u32 %v196, 16
      %v428 = vrot.slane %v426, 4
      %v429 = vshll.u32 %v196, 16
      %v431 = vrot.slane %v429, 5
      %v432 = vor.u32 %v428, %v431
      %v433 = vrot.slane %v432, 4
      %v435 = vshll.u32 %v197, 16
      %v437 = vrot.slane %v435, 5
      %v438 = vsel %vm280, %v433, %v437
      %v439 = vshrl.u32 %v197, 16
      %v441 = vrot.slane %v439, 4
      %v442 = vor.u32 %v441, %v437
      %v443 = vrot.slane %v442, 4
      %v445 = vshll.u32 %v198, 16
      %v447 = vrot.slane %v445, 5
      %v448 = vsel %vm280, %v443, %v447
      %v450 = vshrl.u32 %v199, 16
      %v452 = vrot.slane %v450, 4
      %v453 = vshll.u32 %v199, 16
      %v455 = vrot.slane %v453, 5
      %v456 = vor.u32 %v452, %v455
      %v457 = vrot.slane %v456, 4
      %v459 = vshll.u32 %v200, 16
      %v461 = vrot.slane %v459, 5
      %v462 = vsel %vm280, %v457, %v461
      %v463 = vshrl.u32 %v200, 16
      %v465 = vrot.slane %v463, 4
      %v466 = vor.u32 %v465, %v461
      %v467 = vrot.slane %v466, 4
      %v469 = vshll.u32 %v201, 16
      %v471 = vrot.slane %v469, 5
      %v472 = vsel %vm280, %v467, %v471
      %v474 = vshrl.u32 %v202, 16
      %v476 = vrot.slane %v474, 4
      %v477 = vshll.u32 %v202, 16
      %v479 = vrot.slane %v477, 5
      %v480 = vor.u32 %v476, %v479
      %v481 = vrot.slane %v480, 4
      %v483 = vshll.u32 %v203, 16
      %v485 = vrot.slane %v483, 5
      %v486 = vsel %vm280, %v481, %v485
      %v487 = vshrl.u32 %v203, 16
      %v489 = vrot.slane %v487, 4
      %v490 = vor.u32 %v489, %v485
      %v491 = vrot.slane %v490, 4
      %v493 = vshll.u32 %v204, 16
      %v495 = vrot.slane %v493, 5
      %v496 = vsel %vm280, %v491, %v495
      %v498 = vshrl.u32 %v205, 16
      %v500 = vrot.slane %v498, 4
      %v501 = vshll.u32 %v205, 16
      %v503 = vrot.slane %v501, 5
      %v504 = vor.u32 %v500, %v503
      %v505 = vrot.slane %v504, 4
      %v507 = vshll.u32 %v206, 16
      %v509 = vrot.slane %v507, 5
      %v510 = vsel %vm280, %v505, %v509
      %v511 = vshrl.u32 %v206, 16
      %v513 = vrot.slane %v511, 4
      %v514 = vor.u32 %v513, %v509
      %v515 = vrot.slane %v514, 4
      %v517 = vshll.u32 %v207, 16
      %v519 = vrot.slane %v517, 5
      %v520 = vsel %vm280, %v515, %v519
      %v522 = vshrl.u32 %v208, 16
      %v524 = vrot.slane %v522, 4
      %v525 = vshll.u32 %v208, 16
      %v527 = vrot.slane %v525, 5
      %v528 = vor.u32 %v524, %v527
      %v529 = vrot.slane %v528, 4
      %v531 = vshll.u32 %v209, 16
      %v533 = vrot.slane %v531, 5
      %v534 = vsel %vm280, %v529, %v533
      %v535 = vshrl.u32 %v209, 16
      %v537 = vrot.slane %v535, 4
      %v538 = vor.u32 %v537, %v533
      %v539 = vrot.slane %v538, 4
      %v541 = vshll.u32 %v210, 16
      %v543 = vrot.slane %v541, 5
      %v544 = vsel %vm280, %v539, %v543
      %v546 = vshrl.u32 %v211, 16
      %v548 = vrot.slane %v546, 4
      %v549 = vshll.u32 %v211, 16
      %v551 = vrot.slane %v549, 5
      %v552 = vor.u32 %v548, %v551
      %v553 = vrot.slane %v552, 4
      %v555 = vshll.u32 %v212, 16
      %v557 = vrot.slane %v555, 5
      %v558 = vsel %vm280, %v553, %v557
      %v559 = vshrl.u32 %v212, 16
      %v561 = vrot.slane %v559, 4
      %v562 = vor.u32 %v561, %v557
      %v563 = vrot.slane %v562, 4
      %v565 = vshll.u32 %v213, 16
      %v567 = vrot.slane %v565, 5
      %v568 = vsel %vm280, %v563, %v567
      %v570 = vshrl.u32 %v214, 16
      %v572 = vrot.slane %v570, 4
      %v573 = vshll.u32 %v214, 16
      %v575 = vrot.slane %v573, 5
      %v576 = vor.u32 %v572, %v575
      %v577 = vrot.slane %v576, 4
      %v579 = vshll.u32 %v215, 16
      %v581 = vrot.slane %v579, 5
      %v582 = vsel %vm280, %v577, %v581
      %v583 = vshrl.u32 %v215, 16
      %v585 = vrot.slane %v583, 4
      %v586 = vor.u32 %v585, %v581
      %v587 = vrot.slane %v586, 4
      %v589 = vshll.u32 %v216, 16
      %v591 = vrot.slane %v589, 5
      %v592 = vsel %vm280, %v587, %v591
      %v594 = vshrl.u32 %v217, 16
      %v596 = vrot.slane %v594, 4
      %v597 = vshll.u32 %v217, 16
      %v599 = vrot.slane %v597, 5
      %v600 = vor.u32 %v596, %v599
      %v601 = vrot.slane %v600, 4
      %v603 = vshll.u32 %v218, 16
      %v605 = vrot.slane %v603, 5
      %v606 = vsel %vm280, %v601, %v605
      %v607 = vshrl.u32 %v218, 16
      %v609 = vrot.slane %v607, 4
      %v610 = vor.u32 %v609, %v605
      %v611 = vrot.slane %v610, 4
      %v613 = vshll.u32 %v219, 16
      %v615 = vrot.slane %v613, 5
      %v616 = vsel %vm280, %v611, %v615
      %v618 = vshrl.u32 %v220, 16
      %v620 = vrot.slane %v618, 4
      %v621 = vshll.u32 %v220, 16
      %v623 = vrot.slane %v621, 5
      %v624 = vor.u32 %v620, %v623
      %v625 = vrot.slane %v624, 4
      %v627 = vshll.u32 %v221, 16
      %v629 = vrot.slane %v627, 5
      %v630 = vsel %vm280, %v625, %v629
      %v631 = vshrl.u32 %v221, 16
      %v633 = vrot.slane %v631, 4
      %v634 = vor.u32 %v633, %v629
      %v635 = vrot.slane %v634, 4
      %v637 = vshll.u32 %v222, 16
      %v639 = vrot.slane %v637, 5
      %v640 = vsel %vm280, %v635, %v639
      %v642 = vshrl.u32 %v223, 16
      %v644 = vrot.slane %v642, 4
      %v645 = vshll.u32 %v223, 16
      %v647 = vrot.slane %v645, 5
      %v648 = vor.u32 %v644, %v647
      %v649 = vrot.slane %v648, 4
      %v651 = vshll.u32 %v224, 16
      %v653 = vrot.slane %v651, 5
      %v654 = vsel %vm280, %v649, %v653
      %v655 = vshrl.u32 %v224, 16
      %v657 = vrot.slane %v655, 4
      %v658 = vor.u32 %v657, %v653
      %v659 = vrot.slane %v658, 4
      %v661 = vshll.u32 %v225, 16
      %v663 = vrot.slane %v661, 5
      %v664 = vsel %vm280, %v659, %v663
      %v666 = vshrl.u32 %v226, 16
      %v668 = vrot.slane %v666, 4
      %v669 = vshll.u32 %v226, 16
      %v671 = vrot.slane %v669, 5
      %v672 = vor.u32 %v668, %v671
      %v673 = vrot.slane %v672, 4
      %v675 = vshll.u32 %v227, 16
      %v677 = vrot.slane %v675, 5
      %v678 = vsel %vm280, %v673, %v677
      %v679 = vshrl.u32 %v227, 16
      %v681 = vrot.slane %v679, 4
      %v682 = vor.u32 %v681, %v677
      %v683 = vrot.slane %v682, 4
      %v685 = vshll.u32 %v228, 16
      %v687 = vrot.slane %v685, 5
      %v688 = vsel %vm280, %v683, %v687
      %v690 = vshrl.u32 %v229, 16
      %v692 = vrot.slane %v690, 4
      %v693 = vshll.u32 %v229, 16
      %v695 = vrot.slane %v693, 5
      %v696 = vor.u32 %v692, %v695
      %v697 = vrot.slane %v696, 4
      %v699 = vshll.u32 %v230, 16
      %v701 = vrot.slane %v699, 5
      %v702 = vsel %vm280, %v697, %v701
      %v703 = vshrl.u32 %v230, 16
      %v705 = vrot.slane %v703, 4
      %v706 = vor.u32 %v705, %v701
      %v707 = vrot.slane %v706, 4
      %v709 = vshll.u32 %v231, 16
      %v711 = vrot.slane %v709, 5
      %v712 = vsel %vm280, %v707, %v711
      %v714 = vshrl.u32 %v232, 16
      %v716 = vrot.slane %v714, 4
      %v717 = vshll.u32 %v232, 16
      %v719 = vrot.slane %v717, 5
      %v720 = vor.u32 %v716, %v719
      %v721 = vrot.slane %v720, 4
      %v723 = vshll.u32 %v233, 16
      %v725 = vrot.slane %v723, 5
      %v726 = vsel %vm280, %v721, %v725
      %v727 = vshrl.u32 %v233, 16
      %v729 = vrot.slane %v727, 4
      %v730 = vor.u32 %v729, %v725
      %v731 = vrot.slane %v730, 4
      %v733 = vshll.u32 %v234, 16
      %v735 = vrot.slane %v733, 5
      %v736 = vsel %vm280, %v731, %v735
      %v738 = vshrl.u32 %v235, 16
      %v740 = vrot.slane %v738, 4
      %v741 = vshll.u32 %v235, 16
      %v743 = vrot.slane %v741, 5
      %v744 = vor.u32 %v740, %v743
      %v745 = vrot.slane %v744, 4
      %v747 = vshll.u32 %v236, 16
      %v749 = vrot.slane %v747, 5
      %v750 = vsel %vm280, %v745, %v749
      %v751 = vshrl.u32 %v236, 16
      %v753 = vrot.slane %v751, 4
      %v754 = vor.u32 %v753, %v749
      %v755 = vrot.slane %v754, 4
      %v757 = vshll.u32 %v237, 16
      %v759 = vrot.slane %v757, 5
      %v760 = vsel %vm280, %v755, %v759
      %v762 = vshrl.u32 %v238, 16
      %v764 = vrot.slane %v762, 4
      %v765 = vshll.u32 %v238, 16
      %v767 = vrot.slane %v765, 5
      %v768 = vor.u32 %v764, %v767
      %v769 = vrot.slane %v768, 4
      %v771 = vshll.u32 %v239, 16
      %v773 = vrot.slane %v771, 5
      %v774 = vsel %vm280, %v769, %v773
      %v775 = vshrl.u32 %v239, 16
      %v777 = vrot.slane %v775, 4
      %v778 = vor.u32 %v777, %v773
      %v779 = vrot.slane %v778, 4
      %v781 = vshll.u32 %v240, 16
      %v783 = vrot.slane %v781, 5
      %v784 = vsel %vm280, %v779, %v783
      %v786 = vshrl.u32 %v241, 16
      %v788 = vrot.slane %v786, 4
      %v789 = vshll.u32 %v241, 16
      %v791 = vrot.slane %v789, 5
      %v792 = vor.u32 %v788, %v791
      %v793 = vrot.slane %v792, 4
      %v795 = vshll.u32 %v242, 16
      %v797 = vrot.slane %v795, 5
      %v798 = vsel %vm280, %v793, %v797
      %v799 = vshrl.u32 %v242, 16
      %v801 = vrot.slane %v799, 4
      %v802 = vor.u32 %v801, %v797
      %v803 = vrot.slane %v802, 4
      %v805 = vshll.u32 %v243, 16
      %v807 = vrot.slane %v805, 5
      %v808 = vsel %vm280, %v803, %v807
      %v810 = vshrl.u32 %v244, 16
      %v812 = vrot.slane %v810, 4
      %v813 = vshll.u32 %v244, 16
      %v815 = vrot.slane %v813, 5
      %v816 = vor.u32 %v812, %v815
      %v817 = vrot.slane %v816, 4
      %v819 = vshll.u32 %v245, 16
      %v821 = vrot.slane %v819, 5
      %v822 = vsel %vm280, %v817, %v821
      %v823 = vshrl.u32 %v245, 16
      %v825 = vrot.slane %v823, 4
      %v826 = vor.u32 %v825, %v821
      %v827 = vrot.slane %v826, 4
      %v829 = vshll.u32 %v246, 16
      %v831 = vrot.slane %v829, 5
      %v832 = vsel %vm280, %v827, %v831
      %v834 = vshrl.u32 %v247, 16
      %v836 = vrot.slane %v834, 4
      %v837 = vshll.u32 %v247, 16
      %v839 = vrot.slane %v837, 5
      %v840 = vor.u32 %v836, %v839
      %v841 = vrot.slane %v840, 4
      %v843 = vshll.u32 %v248, 16
      %v845 = vrot.slane %v843, 5
      %v846 = vsel %vm280, %v841, %v845
      %v847 = vshrl.u32 %v248, 16
      %v849 = vrot.slane %v847, 4
      %v850 = vor.u32 %v849, %v845
      %v851 = vrot.slane %v850, 4
      %v853 = vshll.u32 %v249, 16
      %v855 = vrot.slane %v853, 5
      %v856 = vsel %vm280, %v851, %v855
      %v858 = vshrl.u32 %v250, 16
      %v860 = vrot.slane %v858, 4
      %v861 = vshll.u32 %v250, 16
      %v863 = vrot.slane %v861, 5
      %v864 = vor.u32 %v860, %v863
      %v865 = vrot.slane %v864, 4
      %v867 = vshll.u32 %v251, 16
      %v869 = vrot.slane %v867, 5
      %v870 = vsel %vm280, %v865, %v869
      %v871 = vshrl.u32 %v251, 16
      %v873 = vrot.slane %v871, 4
      %v874 = vor.u32 %v873, %v869
      %v875 = vrot.slane %v874, 4
      %v877 = vshll.u32 %v252, 16
      %v879 = vrot.slane %v877, 5
      %v880 = vsel %vm280, %v875, %v879
      %v882 = vshrl.u32 %v253, 16
      %v884 = vrot.slane %v882, 4
      %v885 = vshll.u32 %v253, 16
      %v887 = vrot.slane %v885, 5
      %v888 = vor.u32 %v884, %v887
      %v889 = vrot.slane %v888, 4
      %v891 = vshll.u32 %v254, 16
      %v893 = vrot.slane %v891, 5
      %v894 = vsel %vm280, %v889, %v893
      %v895 = vshrl.u32 %v254, 16
      %v897 = vrot.slane %v895, 4
      %v898 = vor.u32 %v897, %v893
      %v899 = vrot.slane %v898, 4
      %v901 = vshll.u32 %v255, 16
      %v903 = vrot.slane %v901, 5
      %v904 = vsel %vm280, %v899, %v903
      %v906 = vshrl.u32 %v256, 16
      %v908 = vrot.slane %v906, 4
      %v909 = vshll.u32 %v256, 16
      %v911 = vrot.slane %v909, 5
      %v912 = vor.u32 %v908, %v911
      %v913 = vrot.slane %v912, 4
      %v915 = vshll.u32 %v257, 16
      %v917 = vrot.slane %v915, 5
      %v918 = vsel %vm280, %v913, %v917
      %v919 = vshrl.u32 %v257, 16
      %v921 = vrot.slane %v919, 4
      %v922 = vor.u32 %v921, %v917
      %v923 = vrot.slane %v922, 4
      %v925 = vshll.u32 %v258, 16
      %v927 = vrot.slane %v925, 5
      %v928 = vsel %vm280, %v923, %v927
      %v930 = vshrl.u32 %v259, 16
      %v932 = vrot.slane %v930, 4
      %v933 = vshll.u32 %v259, 16
      %v935 = vrot.slane %v933, 5
      %v936 = vor.u32 %v932, %v935
      %v937 = vrot.slane %v936, 4
      %v939 = vshll.u32 %v260, 16
      %v941 = vrot.slane %v939, 5
      %v942 = vsel %vm280, %v937, %v941
      %v943 = vshrl.u32 %v260, 16
      %v945 = vrot.slane %v943, 4
      %v946 = vor.u32 %v945, %v941
      %v947 = vrot.slane %v946, 4
      %v949 = vshll.u32 %v261, 16
      %v951 = vrot.slane %v949, 5
      %v952 = vsel %vm280, %v947, %v951
      %v954 = vshrl.u32 %v262, 16
      %v956 = vrot.slane %v954, 4
      %v957 = vshll.u32 %v262, 16
      %v959 = vrot.slane %v957, 5
      %v960 = vor.u32 %v956, %v959
      %v961 = vrot.slane %v960, 4
      %v963 = vshll.u32 %v263, 16
      %v965 = vrot.slane %v963, 5
      %v966 = vsel %vm280, %v961, %v965
      %v967 = vshrl.u32 %v263, 16
      %v969 = vrot.slane %v967, 4
      %v970 = vor.u32 %v969, %v965
      %v971 = vrot.slane %v970, 4
      %v973 = vshll.u32 %v264, 16
      %v975 = vrot.slane %v973, 5
      %v976 = vsel %vm280, %v971, %v975
      %v978 = vshrl.u32 %v265, 16
      %v980 = vrot.slane %v978, 4
      %v981 = vshll.u32 %v265, 16
      %v983 = vrot.slane %v981, 5
      %v984 = vor.u32 %v980, %v983
      %v985 = vrot.slane %v984, 4
      %v987 = vshll.u32 %v266, 16
      %v989 = vrot.slane %v987, 5
      %v990 = vsel %vm280, %v985, %v989
      %v991 = vshrl.u32 %v266, 16
      %v993 = vrot.slane %v991, 4
      %v994 = vor.u32 %v993, %v989
      %v995 = vrot.slane %v994, 4
      %v997 = vshll.u32 %v267, 16
      %v999 = vrot.slane %v997, 5
      %v1000 = vsel %vm280, %v995, %v999
      %v1002 = vshrl.u32 %v268, 16
      %v1004 = vrot.slane %v1002, 4
      %v1005 = vshll.u32 %v268, 16
      %v1007 = vrot.slane %v1005, 5
      %v1008 = vor.u32 %v1004, %v1007
      %v1009 = vrot.slane %v1008, 4
      %v1011 = vshll.u32 %v269, 16
      %v1013 = vrot.slane %v1011, 5
      %v1014 = vsel %vm280, %v1009, %v1013
      %v1015 = vshrl.u32 %v269, 16
      %v1017 = vrot.slane %v1015, 4
      %v1018 = vor.u32 %v1017, %v1013
      %v1019 = vrot.slane %v1018, 4
      %v1021 = vshll.u32 %v270, 16
      %v1023 = vrot.slane %v1021, 5
      %v1024 = vsel %vm280, %v1019, %v1023
      %v1026 = vshrl.u32 %v271, 16
      %v1028 = vrot.slane %v1026, 4
      %v1029 = vshll.u32 %v271, 16
      %v1031 = vrot.slane %v1029, 5
      %v1032 = vor.u32 %v1028, %v1031
      %v1033 = vrot.slane %v1032, 4
      %v1035 = vshll.u32 %v272, 16
      %v1037 = vrot.slane %v1035, 5
      %v1038 = vsel %vm280, %v1033, %v1037
      %v1039 = vshrl.u32 %v272, 16
      %v1041 = vrot.slane %v1039, 4
      %v1042 = vor.u32 %v1041, %v1037
      %v1043 = vrot.slane %v1042, 4
      %v1045 = vshll.u32 %v273, 16
      %v1047 = vrot.slane %v1045, 5
      %v1048 = vsel %vm280, %v1043, %v1047
      %s1049 = scalar_lea.vmem %s1, 16
      %v1050 = vld [vmem:[%s1049] sm:$0xf]
      %v1051 = vld [vmem:[%s1049 + $0x4] sm:$0xf]
      %v1052 = vld [vmem:[%s1049 + $0x8] sm:$0xf]
      %v1053 = vld [vmem:[%s1049 + $0xc] sm:$0xf]
      %v1054 = vunpack.c.l.b16 %v294
      %v1055 = vunpack.c.l.b16 %v304
      %v1056 = vunpack.c.l.b16 %v318
      %v1057 = vunpack.c.l.b16 %v328
      %v1058 = vunpack.c.l.b16 %v342
      %v1059 = vunpack.c.l.b16 %v352
      %v1060 = vunpack.c.l.b16 %v366
      %v1061 = vunpack.c.l.b16 %v376
      %v1062 = vunpack.c.l.b16 %v390
      %v1063 = vunpack.c.l.b16 %v400
      %v1064 = vunpack.c.l.b16 %v414
      %v1065 = vunpack.c.l.b16 %v424
      %v1066 = vunpack.c.l.b16 %v438
      %v1067 = vunpack.c.l.b16 %v448
      %v1068 = vunpack.c.l.b16 %v462
      %v1069 = vunpack.c.l.b16 %v472
      %v1070 = vunpack.c.l.b16 %v486
      %v1071 = vunpack.c.l.b16 %v496
      %v1072 = vunpack.c.l.b16 %v510
      %v1073 = vunpack.c.l.b16 %v520
      %v1074 = vunpack.c.l.b16 %v534
      %v1075 = vunpack.c.l.b16 %v544
      %v1076 = vunpack.c.l.b16 %v558
      %v1077 = vunpack.c.l.b16 %v568
      %v1078 = vunpack.c.l.b16 %v582
      %v1079 = vunpack.c.l.b16 %v592
      %v1080 = vunpack.c.l.b16 %v606
      %v1081 = vunpack.c.l.b16 %v616
      %v1082 = vunpack.c.l.b16 %v630
      %v1083 = vunpack.c.l.b16 %v640
      %v1084 = vunpack.c.l.b16 %v654
      %v1085 = vunpack.c.l.b16 %v664
      %v1086 = vunpack.c.l.b16 %v678
      %v1087 = vunpack.c.l.b16 %v688
      %v1088 = vunpack.c.l.b16 %v702
      %v1089 = vunpack.c.l.b16 %v712
      %v1090 = vunpack.c.l.b16 %v726
      %v1091 = vunpack.c.l.b16 %v736
      %v1092 = vunpack.c.l.b16 %v750
      %v1093 = vunpack.c.l.b16 %v760
      %v1094 = vunpack.c.l.b16 %v774
      %v1095 = vunpack.c.l.b16 %v784
      %v1096 = vunpack.c.l.b16 %v798
      %v1097 = vunpack.c.l.b16 %v808
      %v1098 = vunpack.c.l.b16 %v822
      %v1099 = vunpack.c.l.b16 %v832
      %v1100 = vunpack.c.l.b16 %v846
      %v1101 = vunpack.c.l.b16 %v856
      %v1102 = vunpack.c.l.b16 %v870
      %v1103 = vunpack.c.l.b16 %v880
      %v1104 = vunpack.c.l.b16 %v894
      %v1105 = vunpack.c.l.b16 %v904
      %v1106 = vunpack.c.l.b16 %v918
      %v1107 = vunpack.c.l.b16 %v928
      %v1108 = vunpack.c.l.b16 %v942
      %v1109 = vunpack.c.l.b16 %v952
      %v1110 = vunpack.c.l.b16 %v966
      %v1111 = vunpack.c.l.b16 %v976
      %v1112 = vunpack.c.l.b16 %v990
      %v1113 = vunpack.c.l.b16 %v1000
      %v1114 = vunpack.c.l.b16 %v1014
      %v1115 = vunpack.c.l.b16 %v1024
      %v1116 = vunpack.c.l.b16 %v1038
      %v1117 = vunpack.c.l.b16 %v1048
      %v1118 = vpack.c.b16 %v1055, %v1054
      %v1119 = vpack.c.b16 %v1057, %v1056
      %v1120 = vpack.c.b16 %v1059, %v1058
      %v1121 = vpack.c.b16 %v1061, %v1060
      %v1122 = vpack.c.b16 %v1063, %v1062
      %v1123 = vpack.c.b16 %v1065, %v1064
      %v1124 = vpack.c.b16 %v1067, %v1066
      %v1125 = vpack.c.b16 %v1069, %v1068
      %v1126 = vpack.c.b16 %v1071, %v1070
      %v1127 = vpack.c.b16 %v1073, %v1072
      %v1128 = vpack.c.b16 %v1075, %v1074
      %v1129 = vpack.c.b16 %v1077, %v1076
      %v1130 = vpack.c.b16 %v1079, %v1078
      %v1131 = vpack.c.b16 %v1081, %v1080
      %v1132 = vpack.c.b16 %v1083, %v1082
      %v1133 = vpack.c.b16 %v1085, %v1084
      %v1134 = vpack.c.b16 %v1087, %v1086
      %v1135 = vpack.c.b16 %v1089, %v1088
      %v1136 = vpack.c.b16 %v1091, %v1090
      %v1137 = vpack.c.b16 %v1093, %v1092
      %v1138 = vpack.c.b16 %v1095, %v1094
      %v1139 = vpack.c.b16 %v1097, %v1096
      %v1140 = vpack.c.b16 %v1099, %v1098
      %v1141 = vpack.c.b16 %v1101, %v1100
      %v1142 = vpack.c.b16 %v1103, %v1102
      %v1143 = vpack.c.b16 %v1105, %v1104
      %v1144 = vpack.c.b16 %v1107, %v1106
      %v1145 = vpack.c.b16 %v1109, %v1108
      %v1146 = vpack.c.b16 %v1111, %v1110
      %v1147 = vpack.c.b16 %v1113, %v1112
      %v1148 = vpack.c.b16 %v1115, %v1114
      %v1149 = vpack.c.b16 %v1117, %v1116
      %v1154 = vunpack.c.l.b16 %v1050
      %v1155 = vunpack.c.l.b16 %v1051
      %v1156 = vunpack.c.l.b16 %v1052
      %v1157 = vunpack.c.l.b16 %v1053
      %v1158 = vpack.c.b16 %v1155, %v1154
      %v1159 = vpack.c.b16 %v1157, %v1156
      %vm1162 = vcmask 261120
      %v1164 = vsel %vm1162, %v1118, 0
      %v1167 = vsel %vm1162, %v1119, 0
      %v1170 = vsel %vm1162, %v1120, 0
      %v1173 = vsel %vm1162, %v1121, 0
      %v1176 = vsel %vm1162, %v1122, 0
      %v1179 = vsel %vm1162, %v1123, 0
      %v1182 = vsel %vm1162, %v1124, 0
      %v1185 = vsel %vm1162, %v1125, 0
      %v1188 = vsel %vm1162, %v1126, 0
      %v1191 = vsel %vm1162, %v1127, 0
      %v1194 = vsel %vm1162, %v1128, 0
      %v1197 = vsel %vm1162, %v1129, 0
      %v1200 = vsel %vm1162, %v1130, 0
      %v1203 = vsel %vm1162, %v1131, 0
      %v1206 = vsel %vm1162, %v1132, 0
      %v1209 = vsel %vm1162, %v1133, 0
      %v1212 = vsel %vm1162, %v1134, 0
      %v1215 = vsel %vm1162, %v1135, 0
      %v1218 = vsel %vm1162, %v1136, 0
      %v1221 = vsel %vm1162, %v1137, 0
      %v1224 = vsel %vm1162, %v1138, 0
      %v1227 = vsel %vm1162, %v1139, 0
      %v1230 = vsel %vm1162, %v1140, 0
      %v1233 = vsel %vm1162, %v1141, 0
      %v1236 = vsel %vm1162, %v1142, 0
      %v1239 = vsel %vm1162, %v1143, 0
      %v1242 = vsel %vm1162, %v1144, 0
      %v1245 = vsel %vm1162, %v1145, 0
      %v1248 = vsel %vm1162, %v1146, 0
      %v1251 = vsel %vm1162, %v1147, 0
      %v1254 = vsel %vm1162, %v1148, 0
      %v1257 = vsel %vm1162, %v1149, 0
      %1259 = vmatprep.subr.bf16.mxu0 0
      %1260 = vmatpush1.bf16.msra.mxu0 %v1158
      %1261 = vmatprep.subr.bf16.mxu0 0
      %1262 = vmatpush1.bf16.msra.mxu0 %v1159
      %1263 = vmatprep.subr.bf16.mxu0 0
      %1264 = vmatpush1.bf16.msra.mxu0 0
      %1265 = vmatprep.subr.bf16.mxu0 0
      %1266 = vmatpush1.bf16.msra.mxu0 0
      %1267 = vmatprep.subr.bf16.mxu0 0
      %1268 = vmatpush1.bf16.msra.mxu0 0
      %1269 = vmatprep.subr.bf16.mxu0 0
      %1270 = vmatpush1.bf16.msra.mxu0 0
      %1271 = vmatprep.subr.bf16.mxu0 0
      %1272 = vmatpush1.bf16.msra.mxu0 0
      %1273 = vmatprep.subr.bf16.mxu0 0
      %1274 = vmatpush1.bf16.msra.mxu0 0
      %1275 = vmatprep.subr.bf16.mxu0 0
      %1276 = vmatpush1.bf16.msra.mxu0 0
      %1277 = vmatprep.subr.bf16.mxu0 0
      %1278 = vmatpush1.bf16.msra.mxu0 0
      %1279 = vmatprep.subr.bf16.mxu0 0
      %1280 = vmatpush1.bf16.msra.mxu0 0
      %1281 = vmatprep.subr.bf16.mxu0 0
      %1282 = vmatpush1.bf16.msra.mxu0 0
      %1283 = vmatprep.subr.bf16.mxu0 0
      %1284 = vmatpush1.bf16.msra.mxu0 0
      %1285 = vmatprep.subr.bf16.mxu0 0
      %1286 = vmatpush1.bf16.msra.mxu0 0
      %1287 = vmatprep.subr.bf16.mxu0 0
      %1288 = vmatpush1.bf16.msra.mxu0 0
      %1289 = vmatprep.subr.bf16.mxu0 0
      %1290 = vmatpush1.bf16.msra.mxu0 0
      %1291 = vmatprep.mubr.bf16.mxu0 0
      %1292 = vmatmul.mubr.bf16.gmra.mrb[0].mxu0 %v1164
      %v1293 = vpop.f32.mrb[0].mxu0
      %v1294 = vadd.f32 0.0, %v1293
      %v1295 = vpop.f32.mrb[0].mxu0
      %v1296 = vpop.f32.mrb[0].mxu0
      %v1297 = vadd.f32 0.0, %v1296
      %v1298 = vpop.f32.mrb[0].mxu0
      %1299 = vmatprep.mubr.bf16.mxu0 0
      %1300 = vmatmul.mubr.bf16.gmra.mrb[0].mxu0 %v1167
      %v1301 = vpop.f32.mrb[0].mxu0
      %v1302 = vadd.f32 0.0, %v1301
      %v1303 = vpop.f32.mrb[0].mxu0
      %v1304 = vpop.f32.mrb[0].mxu0
      %v1305 = vadd.f32 0.0, %v1304
      %v1306 = vpop.f32.mrb[0].mxu0
      %1307 = vmatprep.mubr.bf16.mxu0 0
      %1308 = vmatmul.mubr.bf16.gmra.mrb[0].mxu0 %v1170
      %v1309 = vpop.f32.mrb[0].mxu0
      %v1310 = vadd.f32 0.0, %v1309
      %v1311 = vpop.f32.mrb[0].mxu0
      %v1312 = vpop.f32.mrb[0].mxu0
      %v1313 = vadd.f32 0.0, %v1312
      %v1314 = vpop.f32.mrb[0].mxu0
      %1315 = vmatprep.mubr.bf16.mxu0 0
      %1316 = vmatmul.mubr.bf16.gmra.mrb[0].mxu0 %v1173
      %v1317 = vpop.f32.mrb[0].mxu0
      %v1318 = vadd.f32 0.0, %v1317
      %v1319 = vpop.f32.mrb[0].mxu0
      %v1320 = vpop.f32.mrb[0].mxu0
      %v1321 = vadd.f32 0.0, %v1320
      %v1322 = vpop.f32.mrb[0].mxu0
      %1323 = vmatprep.mubr.bf16.mxu0 0
      %1324 = vmatmul.mubr.bf16.gmra.mrb[0].mxu0 %v1176
      %v1325 = vpop.f32.mrb[0].mxu0
      %v1326 = vadd.f32 0.0, %v1325
      %v1327 = vpop.f32.mrb[0].mxu0
      %v1328 = vpop.f32.mrb[0].mxu0
      %v1329 = vadd.f32 0.0, %v1328
      %v1330 = vpop.f32.mrb[0].mxu0
      %1331 = vmatprep.mubr.bf16.mxu0 0
      %1332 = vmatmul.mubr.bf16.gmra.mrb[0].mxu0 %v1179
      %v1333 = vpop.f32.mrb[0].mxu0
      %v1334 = vadd.f32 0.0, %v1333
      %v1335 = vpop.f32.mrb[0].mxu0
      %v1336 = vpop.f32.mrb[0].mxu0
      %v1337 = vadd.f32 0.0, %v1336
      %v1338 = vpop.f32.mrb[0].mxu0
      %1339 = vmatprep.mubr.bf16.mxu0 0
      %1340 = vmatmul.mubr.bf16.gmra.mrb[0].mxu0 %v1182
      %v1341 = vpop.f32.mrb[0].mxu0
      %v1342 = vadd.f32 0.0, %v1341
      %v1343 = vpop.f32.mrb[0].mxu0
      %v1344 = vpop.f32.mrb[0].mxu0
      %v1345 = vadd.f32 0.0, %v1344
      %v1346 = vpop.f32.mrb[0].mxu0
      %1347 = vmatprep.mubr.bf16.mxu0 0
      %1348 = vmatmul.mubr.bf16.gmra.mrb[0].mxu0 %v1185
      %v1349 = vpop.f32.mrb[0].mxu0
      %v1350 = vadd.f32 0.0, %v1349
      %v1351 = vpop.f32.mrb[0].mxu0
      %v1352 = vpop.f32.mrb[0].mxu0
      %v1353 = vadd.f32 0.0, %v1352
      %v1354 = vpop.f32.mrb[0].mxu0
      %1355 = vmatprep.mubr.bf16.mxu0 0
      %1356 = vmatmul.mubr.bf16.gmra.mrb[0].mxu0 %v1188
      %v1357 = vpop.f32.mrb[0].mxu0
      %v1358 = vadd.f32 0.0, %v1357
      %v1359 = vpop.f32.mrb[0].mxu0
      %v1360 = vpop.f32.mrb[0].mxu0
      %v1361 = vadd.f32 0.0, %v1360
      %v1362 = vpop.f32.mrb[0].mxu0
      %1363 = vmatprep.mubr.bf16.mxu0 0
      %1364 = vmatmul.mubr.bf16.gmra.mrb[0].mxu0 %v1191
      %v1365 = vpop.f32.mrb[0].mxu0
      %v1366 = vadd.f32 0.0, %v1365
      %v1367 = vpop.f32.mrb[0].mxu0
      %v1368 = vpop.f32.mrb[0].mxu0
      %v1369 = vadd.f32 0.0, %v1368
      %v1370 = vpop.f32.mrb[0].mxu0
      %1371 = vmatprep.mubr.bf16.mxu0 0
      %1372 = vmatmul.mubr.bf16.gmra.mrb[0].mxu0 %v1194
      %v1373 = vpop.f32.mrb[0].mxu0
      %v1374 = vadd.f32 0.0, %v1373
      %v1375 = vpop.f32.mrb[0].mxu0
      %v1376 = vpop.f32.mrb[0].mxu0
      %v1377 = vadd.f32 0.0, %v1376
      %v1378 = vpop.f32.mrb[0].mxu0
      %1379 = vmatprep.mubr.bf16.mxu0 0
      %1380 = vmatmul.mubr.bf16.gmra.mrb[0].mxu0 %v1197
      %v1381 = vpop.f32.mrb[0].mxu0
      %v1382 = vadd.f32 0.0, %v1381
      %v1383 = vpop.f32.mrb[0].mxu0
      %v1384 = vpop.f32.mrb[0].mxu0
      %v1385 = vadd.f32 0.0, %v1384
      %v1386 = vpop.f32.mrb[0].mxu0
      %1387 = vmatprep.mubr.bf16.mxu0 0
      %1388 = vmatmul.mubr.bf16.gmra.mrb[0].mxu0 %v1200
      %v1389 = vpop.f32.mrb[0].mxu0
      %v1390 = vadd.f32 0.0, %v1389
      %v1391 = vpop.f32.mrb[0].mxu0
      %v1392 = vpop.f32.mrb[0].mxu0
      %v1393 = vadd.f32 0.0, %v1392
      %v1394 = vpop.f32.mrb[0].mxu0
      %1395 = vmatprep.mubr.bf16.mxu0 0
      %1396 = vmatmul.mubr.bf16.gmra.mrb[0].mxu0 %v1203
      %v1397 = vpop.f32.mrb[0].mxu0
      %v1398 = vadd.f32 0.0, %v1397
      %v1399 = vpop.f32.mrb[0].mxu0
      %v1400 = vpop.f32.mrb[0].mxu0
      %v1401 = vadd.f32 0.0, %v1400
      %v1402 = vpop.f32.mrb[0].mxu0
      %1403 = vmatprep.mubr.bf16.mxu0 0
      %1404 = vmatmul.mubr.bf16.gmra.mrb[0].mxu0 %v1206
      %v1405 = vpop.f32.mrb[0].mxu0
      %v1406 = vadd.f32 0.0, %v1405
      %v1407 = vpop.f32.mrb[0].mxu0
      %v1408 = vpop.f32.mrb[0].mxu0
      %v1409 = vadd.f32 0.0, %v1408
      %v1410 = vpop.f32.mrb[0].mxu0
      %1411 = vmatprep.mubr.bf16.mxu0 0
      %1412 = vmatmul.mubr.bf16.gmra.mrb[0].mxu0 %v1209
      %v1413 = vpop.f32.mrb[0].mxu0
      %v1414 = vadd.f32 0.0, %v1413
      %v1415 = vpop.f32.mrb[0].mxu0
      %v1416 = vpop.f32.mrb[0].mxu0
      %v1417 = vadd.f32 0.0, %v1416
      %v1418 = vpop.f32.mrb[0].mxu0
      %1419 = vmatprep.mubr.bf16.mxu0 0
      %1420 = vmatmul.mubr.bf16.gmra.mrb[0].mxu0 %v1212
      %v1421 = vpop.f32.mrb[0].mxu0
      %v1422 = vadd.f32 0.0, %v1421
      %v1423 = vpop.f32.mrb[0].mxu0
      %v1424 = vpop.f32.mrb[0].mxu0
      %v1425 = vadd.f32 0.0, %v1424
      %v1426 = vpop.f32.mrb[0].mxu0
      %1427 = vmatprep.mubr.bf16.mxu0 0
      %1428 = vmatmul.mubr.bf16.gmra.mrb[0].mxu0 %v1215
      %v1429 = vpop.f32.mrb[0].mxu0
      %v1430 = vadd.f32 0.0, %v1429
      %v1431 = vpop.f32.mrb[0].mxu0
      %v1432 = vpop.f32.mrb[0].mxu0
      %v1433 = vadd.f32 0.0, %v1432
      %v1434 = vpop.f32.mrb[0].mxu0
      %1435 = vmatprep.mubr.bf16.mxu0 0
      %1436 = vmatmul.mubr.bf16.gmra.mrb[0].mxu0 %v1218
      %v1437 = vpop.f32.mrb[0].mxu0
      %v1438 = vadd.f32 0.0, %v1437
      %v1439 = vpop.f32.mrb[0].mxu0
      %v1440 = vpop.f32.mrb[0].mxu0
      %v1441 = vadd.f32 0.0, %v1440
      %v1442 = vpop.f32.mrb[0].mxu0
      %1443 = vmatprep.mubr.bf16.mxu0 0
      %1444 = vmatmul.mubr.bf16.gmra.mrb[0].mxu0 %v1221
      %v1445 = vpop.f32.mrb[0].mxu0
      %v1446 = vadd.f32 0.0, %v1445
      %v1447 = vpop.f32.mrb[0].mxu0
      %v1448 = vpop.f32.mrb[0].mxu0
      %v1449 = vadd.f32 0.0, %v1448
      %v1450 = vpop.f32.mrb[0].mxu0
      %1451 = vmatprep.mubr.bf16.mxu0 0
      %1452 = vmatmul.mubr.bf16.gmra.mrb[0].mxu0 %v1224
      %v1453 = vpop.f32.mrb[0].mxu0
      %v1454 = vadd.f32 0.0, %v1453
      %v1455 = vpop.f32.mrb[0].mxu0
      %v1456 = vpop.f32.mrb[0].mxu0
      %v1457 = vadd.f32 0.0, %v1456
      %v1458 = vpop.f32.mrb[0].mxu0
      %1459 = vmatprep.mubr.bf16.mxu0 0
      %1460 = vmatmul.mubr.bf16.gmra.mrb[0].mxu0 %v1227
      %v1461 = vpop.f32.mrb[0].mxu0
      %v1462 = vadd.f32 0.0, %v1461
      %v1463 = vpop.f32.mrb[0].mxu0
      %v1464 = vpop.f32.mrb[0].mxu0
      %v1465 = vadd.f32 0.0, %v1464
      %v1466 = vpop.f32.mrb[0].mxu0
      %1467 = vmatprep.mubr.bf16.mxu0 0
      %1468 = vmatmul.mubr.bf16.gmra.mrb[0].mxu0 %v1230
      %v1469 = vpop.f32.mrb[0].mxu0
      %v1470 = vadd.f32 0.0, %v1469
      %v1471 = vpop.f32.mrb[0].mxu0
      %v1472 = vpop.f32.mrb[0].mxu0
      %v1473 = vadd.f32 0.0, %v1472
      %v1474 = vpop.f32.mrb[0].mxu0
      %1475 = vmatprep.mubr.bf16.mxu0 0
      %1476 = vmatmul.mubr.bf16.gmra.mrb[0].mxu0 %v1233
      %v1477 = vpop.f32.mrb[0].mxu0
      %v1478 = vadd.f32 0.0, %v1477
      %v1479 = vpop.f32.mrb[0].mxu0
      %v1480 = vpop.f32.mrb[0].mxu0
      %v1481 = vadd.f32 0.0, %v1480
      %v1482 = vpop.f32.mrb[0].mxu0
      %1483 = vmatprep.mubr.bf16.mxu0 0
      %1484 = vmatmul.mubr.bf16.gmra.mrb[0].mxu0 %v1236
      %v1485 = vpop.f32.mrb[0].mxu0
      %v1486 = vadd.f32 0.0, %v1485
      %v1487 = vpop.f32.mrb[0].mxu0
      %v1488 = vpop.f32.mrb[0].mxu0
      %v1489 = vadd.f32 0.0, %v1488
      %v1490 = vpop.f32.mrb[0].mxu0
      %1491 = vmatprep.mubr.bf16.mxu0 0
      %1492 = vmatmul.mubr.bf16.gmra.mrb[0].mxu0 %v1239
      %v1493 = vpop.f32.mrb[0].mxu0
      %v1494 = vadd.f32 0.0, %v1493
      %v1495 = vpop.f32.mrb[0].mxu0
      %v1496 = vpop.f32.mrb[0].mxu0
      %v1497 = vadd.f32 0.0, %v1496
      %v1498 = vpop.f32.mrb[0].mxu0
      %1499 = vmatprep.mubr.bf16.mxu0 0
      %1500 = vmatmul.mubr.bf16.gmra.mrb[0].mxu0 %v1242
      %v1501 = vpop.f32.mrb[0].mxu0
      %v1502 = vadd.f32 0.0, %v1501
      %v1503 = vpop.f32.mrb[0].mxu0
      %v1504 = vpop.f32.mrb[0].mxu0
      %v1505 = vadd.f32 0.0, %v1504
      %v1506 = vpop.f32.mrb[0].mxu0
      %1507 = vmatprep.mubr.bf16.mxu0 0
      %1508 = vmatmul.mubr.bf16.gmra.mrb[0].mxu0 %v1245
      %v1509 = vpop.f32.mrb[0].mxu0
      %v1510 = vadd.f32 0.0, %v1509
      %v1511 = vpop.f32.mrb[0].mxu0
      %v1512 = vpop.f32.mrb[0].mxu0
      %v1513 = vadd.f32 0.0, %v1512
      %v1514 = vpop.f32.mrb[0].mxu0
      %1515 = vmatprep.mubr.bf16.mxu0 0
      %1516 = vmatmul.mubr.bf16.gmra.mrb[0].mxu0 %v1248
      %v1517 = vpop.f32.mrb[0].mxu0
      %v1518 = vadd.f32 0.0, %v1517
      %v1519 = vpop.f32.mrb[0].mxu0
      %v1520 = vpop.f32.mrb[0].mxu0
      %v1521 = vadd.f32 0.0, %v1520
      %v1522 = vpop.f32.mrb[0].mxu0
      %1523 = vmatprep.mubr.bf16.mxu0 0
      %1524 = vmatmul.mubr.bf16.gmra.mrb[0].mxu0 %v1251
      %v1525 = vpop.f32.mrb[0].mxu0
      %v1526 = vadd.f32 0.0, %v1525
      %v1527 = vpop.f32.mrb[0].mxu0
      %v1528 = vpop.f32.mrb[0].mxu0
      %v1529 = vadd.f32 0.0, %v1528
      %v1530 = vpop.f32.mrb[0].mxu0
      %1531 = vmatprep.mubr.bf16.mxu0 0
      %1532 = vmatmul.mubr.bf16.gmra.mrb[0].mxu0 %v1254
      %v1533 = vpop.f32.mrb[0].mxu0
      %v1534 = vadd.f32 0.0, %v1533
      %v1535 = vpop.f32.mrb[0].mxu0
      %v1536 = vpop.f32.mrb[0].mxu0
      %v1537 = vadd.f32 0.0, %v1536
      %v1538 = vpop.f32.mrb[0].mxu0
      %1539 = vmatprep.mubr.bf16.mxu0 0
      %1540 = vmatmul.mubr.bf16.gmra.mrb[0].mxu0 %v1257
      %v1541 = vpop.f32.mrb[0].mxu0
      %v1542 = vadd.f32 0.0, %v1541
      %v1543 = vpop.f32.mrb[0].mxu0
      %v1544 = vpop.f32.mrb[0].mxu0
      %v1545 = vadd.f32 0.0, %v1544
      %v1546 = vpop.f32.mrb[0].mxu0
      %1547 = vdwg.mxu0
      %v1612 = vunpack.c.l.b16 %v178
      %v1613 = vunpack.c.l.b16 %v179
      %v1614 = vunpack.c.l.b16 %v181
      %v1615 = vunpack.c.l.b16 %v182
      %v1616 = vunpack.c.l.b16 %v184
      %v1617 = vunpack.c.l.b16 %v185
      %v1618 = vunpack.c.l.b16 %v187
      %v1619 = vunpack.c.l.b16 %v188
      %v1620 = vunpack.c.l.b16 %v190
      %v1621 = vunpack.c.l.b16 %v191
      %v1622 = vunpack.c.l.b16 %v193
      %v1623 = vunpack.c.l.b16 %v194
      %v1624 = vunpack.c.l.b16 %v196
      %v1625 = vunpack.c.l.b16 %v197
      %v1626 = vunpack.c.l.b16 %v199
      %v1627 = vunpack.c.l.b16 %v200
      %v1628 = vunpack.c.l.b16 %v202
      %v1629 = vunpack.c.l.b16 %v203
      %v1630 = vunpack.c.l.b16 %v205
      %v1631 = vunpack.c.l.b16 %v206
      %v1632 = vunpack.c.l.b16 %v208
      %v1633 = vunpack.c.l.b16 %v209
      %v1634 = vunpack.c.l.b16 %v211
      %v1635 = vunpack.c.l.b16 %v212
      %v1636 = vunpack.c.l.b16 %v214
      %v1637 = vunpack.c.l.b16 %v215
      %v1638 = vunpack.c.l.b16 %v217
      %v1639 = vunpack.c.l.b16 %v218
      %v1640 = vunpack.c.l.b16 %v220
      %v1641 = vunpack.c.l.b16 %v221
      %v1642 = vunpack.c.l.b16 %v223
      %v1643 = vunpack.c.l.b16 %v224
      %v1644 = vunpack.c.l.b16 %v226
      %v1645 = vunpack.c.l.b16 %v227
      %v1646 = vunpack.c.l.b16 %v229
      %v1647 = vunpack.c.l.b16 %v230
      %v1648 = vunpack.c.l.b16 %v232
      %v1649 = vunpack.c.l.b16 %v233
      %v1650 = vunpack.c.l.b16 %v235
      %v1651 = vunpack.c.l.b16 %v236
      %v1652 = vunpack.c.l.b16 %v238
      %v1653 = vunpack.c.l.b16 %v239
      %v1654 = vunpack.c.l.b16 %v241
      %v1655 = vunpack.c.l.b16 %v242
      %v1656 = vunpack.c.l.b16 %v244
      %v1657 = vunpack.c.l.b16 %v245
      %v1658 = vunpack.c.l.b16 %v247
      %v1659 = vunpack.c.l.b16 %v248
      %v1660 = vunpack.c.l.b16 %v250
      %v1661 = vunpack.c.l.b16 %v251
      %v1662 = vunpack.c.l.b16 %v253
      %v1663 = vunpack.c.l.b16 %v254
      %v1664 = vunpack.c.l.b16 %v256
      %v1665 = vunpack.c.l.b16 %v257
      %v1666 = vunpack.c.l.b16 %v259
      %v1667 = vunpack.c.l.b16 %v260
      %v1668 = vunpack.c.l.b16 %v262
      %v1669 = vunpack.c.l.b16 %v263
      %v1670 = vunpack.c.l.b16 %v265
      %v1671 = vunpack.c.l.b16 %v266
      %v1672 = vunpack.c.l.b16 %v268
      %v1673 = vunpack.c.l.b16 %v269
      %v1674 = vunpack.c.l.b16 %v271
      %v1675 = vunpack.c.l.b16 %v272
      %v1676 = vpack.c.b16 %v1613, %v1612
      %v1677 = vpack.c.b16 %v1615, %v1614
      %v1678 = vpack.c.b16 %v1617, %v1616
      %v1679 = vpack.c.b16 %v1619, %v1618
      %v1680 = vpack.c.b16 %v1621, %v1620
      %v1681 = vpack.c.b16 %v1623, %v1622
      %v1682 = vpack.c.b16 %v1625, %v1624
      %v1683 = vpack.c.b16 %v1627, %v1626
      %v1684 = vpack.c.b16 %v1629, %v1628
      %v1685 = vpack.c.b16 %v1631, %v1630
      %v1686 = vpack.c.b16 %v1633, %v1632
      %v1687 = vpack.c.b16 %v1635, %v1634
      %v1688 = vpack.c.b16 %v1637, %v1636
      %v1689 = vpack.c.b16 %v1639, %v1638
      %v1690 = vpack.c.b16 %v1641, %v1640
      %v1691 = vpack.c.b16 %v1643, %v1642
      %v1692 = vpack.c.b16 %v1645, %v1644
      %v1693 = vpack.c.b16 %v1647, %v1646
      %v1694 = vpack.c.b16 %v1649, %v1648
      %v1695 = vpack.c.b16 %v1651, %v1650
      %v1696 = vpack.c.b16 %v1653, %v1652
      %v1697 = vpack.c.b16 %v1655, %v1654
      %v1698 = vpack.c.b16 %v1657, %v1656
      %v1699 = vpack.c.b16 %v1659, %v1658
      %v1700 = vpack.c.b16 %v1661, %v1660
      %v1701 = vpack.c.b16 %v1663, %v1662
      %v1702 = vpack.c.b16 %v1665, %v1664
      %v1703 = vpack.c.b16 %v1667, %v1666
      %v1704 = vpack.c.b16 %v1669, %v1668
      %v1705 = vpack.c.b16 %v1671, %v1670
      %v1706 = vpack.c.b16 %v1673, %v1672
      %v1707 = vpack.c.b16 %v1675, %v1674
      %v1712 = vunpack.c.l.b16 %v274
      %v1713 = vunpack.c.l.b16 %v275
      %v1714 = vunpack.c.l.b16 %v276
      %v1715 = vunpack.c.l.b16 %v277
      %v1716 = vpack.c.b16 %v1713, %v1712
      %v1717 = vpack.c.b16 %v1715, %v1714
      %v1721 = vsel %vm1162, %v1676, 0
      %v1724 = vsel %vm1162, %v1677, 0
      %v1727 = vsel %vm1162, %v1678, 0
      %v1730 = vsel %vm1162, %v1679, 0
      %v1733 = vsel %vm1162, %v1680, 0
      %v1736 = vsel %vm1162, %v1681, 0
      %v1739 = vsel %vm1162, %v1682, 0
      %v1742 = vsel %vm1162, %v1683, 0
      %v1745 = vsel %vm1162, %v1684, 0
      %v1748 = vsel %vm1162, %v1685, 0
      %v1751 = vsel %vm1162, %v1686, 0
      %v1754 = vsel %vm1162, %v1687, 0
      %v1757 = vsel %vm1162, %v1688, 0
      %v1760 = vsel %vm1162, %v1689, 0
      %v1763 = vsel %vm1162, %v1690, 0
      %v1766 = vsel %vm1162, %v1691, 0
      %v1769 = vsel %vm1162, %v1692, 0
      %v1772 = vsel %vm1162, %v1693, 0
      %v1775 = vsel %vm1162, %v1694, 0
      %v1778 = vsel %vm1162, %v1695, 0
      %v1781 = vsel %vm1162, %v1696, 0
      %v1784 = vsel %vm1162, %v1697, 0
      %v1787 = vsel %vm1162, %v1698, 0
      %v1790 = vsel %vm1162, %v1699, 0
      %v1793 = vsel %vm1162, %v1700, 0
      %v1796 = vsel %vm1162, %v1701, 0
      %v1799 = vsel %vm1162, %v1702, 0
      %v1802 = vsel %vm1162, %v1703, 0
      %v1805 = vsel %vm1162, %v1704, 0
      %v1808 = vsel %vm1162, %v1705, 0
      %v1811 = vsel %vm1162, %v1706, 0
      %v1814 = vsel %vm1162, %v1707, 0
      %1816 = vmatprep.subr.bf16.mxu0 0
      %1817 = vmatpush1.bf16.msra.mxu0 %v1716
      %1818 = vmatprep.subr.bf16.mxu0 0
      %1819 = vmatpush1.bf16.msra.mxu0 %v1717
      %1820 = vmatprep.subr.bf16.mxu0 0
      %1821 = vmatpush1.bf16.msra.mxu0 0
      %1822 = vmatprep.subr.bf16.mxu0 0
      %1823 = vmatpush1.bf16.msra.mxu0 0
      %1824 = vmatprep.subr.bf16.mxu0 0
      %1825 = vmatpush1.bf16.msra.mxu0 0
      %1826 = vmatprep.subr.bf16.mxu0 0
      %1827 = vmatpush1.bf16.msra.mxu0 0
      %1828 = vmatprep.subr.bf16.mxu0 0
      %1829 = vmatpush1.bf16.msra.mxu0 0
      %1830 = vmatprep.subr.bf16.mxu0 0
      %1831 = vmatpush1.bf16.msra.mxu0 0
      %1832 = vmatprep.subr.bf16.mxu0 0
      %1833 = vmatpush1.bf16.msra.mxu0 0
      %1834 = vmatprep.subr.bf16.mxu0 0
      %1835 = vmatpush1.bf16.msra.mxu0 0
      %1836 = vmatprep.subr.bf16.mxu0 0
      %1837 = vmatpush1.bf16.msra.mxu0 0
      %1838 = vmatprep.subr.bf16.mxu0 0
      %1839 = vmatpush1.bf16.msra.mxu0 0
      %1840 = vmatprep.subr.bf16.mxu0 0
      %1841 = vmatpush1.bf16.msra.mxu0 0
      %1842 = vmatprep.subr.bf16.mxu0 0
      %1843 = vmatpush1.bf16.msra.mxu0 0
      %1844 = vmatprep.subr.bf16.mxu0 0
      %1845 = vmatpush1.bf16.msra.mxu0 0
      %1846 = vmatprep.subr.bf16.mxu0 0
      %1847 = vmatpush1.bf16.msra.mxu0 0
      %1848 = vmatprep.mubr.bf16.mxu0 0
      %1849 = vmatmul.mubr.bf16.gmra.mrb[0].mxu0 %v1721
      %v1850 = vpop.f32.mrb[0].mxu0
      %v1851 = vadd.f32 %v1294, %v1850
      %v1852 = vpop.f32.mrb[0].mxu0
      %v1853 = vpop.f32.mrb[0].mxu0
      %v1854 = vadd.f32 %v1297, %v1853
      %v1855 = vpop.f32.mrb[0].mxu0
      %1856 = vmatprep.mubr.bf16.mxu0 0
      %1857 = vmatmul.mubr.bf16.gmra.mrb[0].mxu0 %v1724
      %v1858 = vpop.f32.mrb[0].mxu0
      %v1859 = vadd.f32 %v1302, %v1858
      %v1860 = vpop.f32.mrb[0].mxu0
      %v1861 = vpop.f32.mrb[0].mxu0
      %v1862 = vadd.f32 %v1305, %v1861
      %v1863 = vpop.f32.mrb[0].mxu0
      %1864 = vmatprep.mubr.bf16.mxu0 0
      %1865 = vmatmul.mubr.bf16.gmra.mrb[0].mxu0 %v1727
      %v1866 = vpop.f32.mrb[0].mxu0
      %v1867 = vadd.f32 %v1310, %v1866
      %v1868 = vpop.f32.mrb[0].mxu0
      %v1869 = vpop.f32.mrb[0].mxu0
      %v1870 = vadd.f32 %v1313, %v1869
      %v1871 = vpop.f32.mrb[0].mxu0
      %1872 = vmatprep.mubr.bf16.mxu0 0
      %1873 = vmatmul.mubr.bf16.gmra.mrb[0].mxu0 %v1730
      %v1874 = vpop.f32.mrb[0].mxu0
      %v1875 = vadd.f32 %v1318, %v1874
      %v1876 = vpop.f32.mrb[0].mxu0
      %v1877 = vpop.f32.mrb[0].mxu0
      %v1878 = vadd.f32 %v1321, %v1877
      %v1879 = vpop.f32.mrb[0].mxu0
      %1880 = vmatprep.mubr.bf16.mxu0 0
      %1881 = vmatmul.mubr.bf16.gmra.mrb[0].mxu0 %v1733
      %v1882 = vpop.f32.mrb[0].mxu0
      %v1883 = vadd.f32 %v1326, %v1882
      %v1884 = vpop.f32.mrb[0].mxu0
      %v1885 = vpop.f32.mrb[0].mxu0
      %v1886 = vadd.f32 %v1329, %v1885
      %v1887 = vpop.f32.mrb[0].mxu0
      %1888 = vmatprep.mubr.bf16.mxu0 0
      %1889 = vmatmul.mubr.bf16.gmra.mrb[0].mxu0 %v1736
      %v1890 = vpop.f32.mrb[0].mxu0
      %v1891 = vadd.f32 %v1334, %v1890
      %v1892 = vpop.f32.mrb[0].mxu0
      %v1893 = vpop.f32.mrb[0].mxu0
      %v1894 = vadd.f32 %v1337, %v1893
      %v1895 = vpop.f32.mrb[0].mxu0
      %1896 = vmatprep.mubr.bf16.mxu0 0
      %1897 = vmatmul.mubr.bf16.gmra.mrb[0].mxu0 %v1739
      %v1898 = vpop.f32.mrb[0].mxu0
      %v1899 = vadd.f32 %v1342, %v1898
      %v1900 = vpop.f32.mrb[0].mxu0
      %v1901 = vpop.f32.mrb[0].mxu0
      %v1902 = vadd.f32 %v1345, %v1901
      %v1903 = vpop.f32.mrb[0].mxu0
      %1904 = vmatprep.mubr.bf16.mxu0 0
      %1905 = vmatmul.mubr.bf16.gmra.mrb[0].mxu0 %v1742
      %v1906 = vpop.f32.mrb[0].mxu0
      %v1907 = vadd.f32 %v1350, %v1906
      %v1908 = vpop.f32.mrb[0].mxu0
      %v1909 = vpop.f32.mrb[0].mxu0
      %v1910 = vadd.f32 %v1353, %v1909
      %v1911 = vpop.f32.mrb[0].mxu0
      %1912 = vmatprep.mubr.bf16.mxu0 0
      %1913 = vmatmul.mubr.bf16.gmra.mrb[0].mxu0 %v1745
      %v1914 = vpop.f32.mrb[0].mxu0
      %v1915 = vadd.f32 %v1358, %v1914
      %v1916 = vpop.f32.mrb[0].mxu0
      %v1917 = vpop.f32.mrb[0].mxu0
      %v1918 = vadd.f32 %v1361, %v1917
      %v1919 = vpop.f32.mrb[0].mxu0
      %1920 = vmatprep.mubr.bf16.mxu0 0
      %1921 = vmatmul.mubr.bf16.gmra.mrb[0].mxu0 %v1748
      %v1922 = vpop.f32.mrb[0].mxu0
      %v1923 = vadd.f32 %v1366, %v1922
      %v1924 = vpop.f32.mrb[0].mxu0
      %v1925 = vpop.f32.mrb[0].mxu0
      %v1926 = vadd.f32 %v1369, %v1925
      %v1927 = vpop.f32.mrb[0].mxu0
      %1928 = vmatprep.mubr.bf16.mxu0 0
      %1929 = vmatmul.mubr.bf16.gmra.mrb[0].mxu0 %v1751
      %v1930 = vpop.f32.mrb[0].mxu0
      %v1931 = vadd.f32 %v1374, %v1930
      %v1932 = vpop.f32.mrb[0].mxu0
      %v1933 = vpop.f32.mrb[0].mxu0
      %v1934 = vadd.f32 %v1377, %v1933
      %v1935 = vpop.f32.mrb[0].mxu0
      %1936 = vmatprep.mubr.bf16.mxu0 0
      %1937 = vmatmul.mubr.bf16.gmra.mrb[0].mxu0 %v1754
      %v1938 = vpop.f32.mrb[0].mxu0
      %v1939 = vadd.f32 %v1382, %v1938
      %v1940 = vpop.f32.mrb[0].mxu0
      %v1941 = vpop.f32.mrb[0].mxu0
      %v1942 = vadd.f32 %v1385, %v1941
      %v1943 = vpop.f32.mrb[0].mxu0
      %1944 = vmatprep.mubr.bf16.mxu0 0
      %1945 = vmatmul.mubr.bf16.gmra.mrb[0].mxu0 %v1757
      %v1946 = vpop.f32.mrb[0].mxu0
      %v1947 = vadd.f32 %v1390, %v1946
      %v1948 = vpop.f32.mrb[0].mxu0
      %v1949 = vpop.f32.mrb[0].mxu0
      %v1950 = vadd.f32 %v1393, %v1949
      %v1951 = vpop.f32.mrb[0].mxu0
      %1952 = vmatprep.mubr.bf16.mxu0 0
      %1953 = vmatmul.mubr.bf16.gmra.mrb[0].mxu0 %v1760
      %v1954 = vpop.f32.mrb[0].mxu0
      %v1955 = vadd.f32 %v1398, %v1954
      %v1956 = vpop.f32.mrb[0].mxu0
      %v1957 = vpop.f32.mrb[0].mxu0
      %v1958 = vadd.f32 %v1401, %v1957
      %v1959 = vpop.f32.mrb[0].mxu0
      %1960 = vmatprep.mubr.bf16.mxu0 0
      %1961 = vmatmul.mubr.bf16.gmra.mrb[0].mxu0 %v1763
      %v1962 = vpop.f32.mrb[0].mxu0
      %v1963 = vadd.f32 %v1406, %v1962
      %v1964 = vpop.f32.mrb[0].mxu0
      %v1965 = vpop.f32.mrb[0].mxu0
      %v1966 = vadd.f32 %v1409, %v1965
      %v1967 = vpop.f32.mrb[0].mxu0
      %1968 = vmatprep.mubr.bf16.mxu0 0
      %1969 = vmatmul.mubr.bf16.gmra.mrb[0].mxu0 %v1766
      %v1970 = vpop.f32.mrb[0].mxu0
      %v1971 = vadd.f32 %v1414, %v1970
      %v1972 = vpop.f32.mrb[0].mxu0
      %v1973 = vpop.f32.mrb[0].mxu0
      %v1974 = vadd.f32 %v1417, %v1973
      %v1975 = vpop.f32.mrb[0].mxu0
      %1976 = vmatprep.mubr.bf16.mxu0 0
      %1977 = vmatmul.mubr.bf16.gmra.mrb[0].mxu0 %v1769
      %v1978 = vpop.f32.mrb[0].mxu0
      %v1979 = vadd.f32 %v1422, %v1978
      %v1980 = vpop.f32.mrb[0].mxu0
      %v1981 = vpop.f32.mrb[0].mxu0
      %v1982 = vadd.f32 %v1425, %v1981
      %v1983 = vpop.f32.mrb[0].mxu0
      %1984 = vmatprep.mubr.bf16.mxu0 0
      %1985 = vmatmul.mubr.bf16.gmra.mrb[0].mxu0 %v1772
      %v1986 = vpop.f32.mrb[0].mxu0
      %v1987 = vadd.f32 %v1430, %v1986
      %v1988 = vpop.f32.mrb[0].mxu0
      %v1989 = vpop.f32.mrb[0].mxu0
      %v1990 = vadd.f32 %v1433, %v1989
      %v1991 = vpop.f32.mrb[0].mxu0
      %1992 = vmatprep.mubr.bf16.mxu0 0
      %1993 = vmatmul.mubr.bf16.gmra.mrb[0].mxu0 %v1775
      %v1994 = vpop.f32.mrb[0].mxu0
      %v1995 = vadd.f32 %v1438, %v1994
      %v1996 = vpop.f32.mrb[0].mxu0
      %v1997 = vpop.f32.mrb[0].mxu0
      %v1998 = vadd.f32 %v1441, %v1997
      %v1999 = vpop.f32.mrb[0].mxu0
      %2000 = vmatprep.mubr.bf16.mxu0 0
      %2001 = vmatmul.mubr.bf16.gmra.mrb[0].mxu0 %v1778
      %v2002 = vpop.f32.mrb[0].mxu0
      %v2003 = vadd.f32 %v1446, %v2002
      %v2004 = vpop.f32.mrb[0].mxu0
      %v2005 = vpop.f32.mrb[0].mxu0
      %v2006 = vadd.f32 %v1449, %v2005
      %v2007 = vpop.f32.mrb[0].mxu0
      %2008 = vmatprep.mubr.bf16.mxu0 0
      %2009 = vmatmul.mubr.bf16.gmra.mrb[0].mxu0 %v1781
      %v2010 = vpop.f32.mrb[0].mxu0
      %v2011 = vadd.f32 %v1454, %v2010
      %v2012 = vpop.f32.mrb[0].mxu0
      %v2013 = vpop.f32.mrb[0].mxu0
      %v2014 = vadd.f32 %v1457, %v2013
      %v2015 = vpop.f32.mrb[0].mxu0
      %2016 = vmatprep.mubr.bf16.mxu0 0
      %2017 = vmatmul.mubr.bf16.gmra.mrb[0].mxu0 %v1784
      %v2018 = vpop.f32.mrb[0].mxu0
      %v2019 = vadd.f32 %v1462, %v2018
      %v2020 = vpop.f32.mrb[0].mxu0
      %v2021 = vpop.f32.mrb[0].mxu0
      %v2022 = vadd.f32 %v1465, %v2021
      %v2023 = vpop.f32.mrb[0].mxu0
      %2024 = vmatprep.mubr.bf16.mxu0 0
      %2025 = vmatmul.mubr.bf16.gmra.mrb[0].mxu0 %v1787
      %v2026 = vpop.f32.mrb[0].mxu0
      %v2027 = vadd.f32 %v1470, %v2026
      %v2028 = vpop.f32.mrb[0].mxu0
      %v2029 = vpop.f32.mrb[0].mxu0
      %v2030 = vadd.f32 %v1473, %v2029
      %v2031 = vpop.f32.mrb[0].mxu0
      %2032 = vmatprep.mubr.bf16.mxu0 0
      %2033 = vmatmul.mubr.bf16.gmra.mrb[0].mxu0 %v1790
      %v2034 = vpop.f32.mrb[0].mxu0
      %v2035 = vadd.f32 %v1478, %v2034
      %v2036 = vpop.f32.mrb[0].mxu0
      %v2037 = vpop.f32.mrb[0].mxu0
      %v2038 = vadd.f32 %v1481, %v2037
      %v2039 = vpop.f32.mrb[0].mxu0
      %2040 = vmatprep.mubr.bf16.mxu0 0
      %2041 = vmatmul.mubr.bf16.gmra.mrb[0].mxu0 %v1793
      %v2042 = vpop.f32.mrb[0].mxu0
      %v2043 = vadd.f32 %v1486, %v2042
      %v2044 = vpop.f32.mrb[0].mxu0
      %v2045 = vpop.f32.mrb[0].mxu0
      %v2046 = vadd.f32 %v1489, %v2045
      %v2047 = vpop.f32.mrb[0].mxu0
      %2048 = vmatprep.mubr.bf16.mxu0 0
      %2049 = vmatmul.mubr.bf16.gmra.mrb[0].mxu0 %v1796
      %v2050 = vpop.f32.mrb[0].mxu0
      %v2051 = vadd.f32 %v1494, %v2050
      %v2052 = vpop.f32.mrb[0].mxu0
      %v2053 = vpop.f32.mrb[0].mxu0
      %v2054 = vadd.f32 %v1497, %v2053
      %v2055 = vpop.f32.mrb[0].mxu0
      %2056 = vmatprep.mubr.bf16.mxu0 0
      %2057 = vmatmul.mubr.bf16.gmra.mrb[0].mxu0 %v1799
      %v2058 = vpop.f32.mrb[0].mxu0
      %v2059 = vadd.f32 %v1502, %v2058
      %v2060 = vpop.f32.mrb[0].mxu0
      %v2061 = vpop.f32.mrb[0].mxu0
      %v2062 = vadd.f32 %v1505, %v2061
      %v2063 = vpop.f32.mrb[0].mxu0
      %2064 = vmatprep.mubr.bf16.mxu0 0
      %2065 = vmatmul.mubr.bf16.gmra.mrb[0].mxu0 %v1802
      %v2066 = vpop.f32.mrb[0].mxu0
      %v2067 = vadd.f32 %v1510, %v2066
      %v2068 = vpop.f32.mrb[0].mxu0
      %v2069 = vpop.f32.mrb[0].mxu0
      %v2070 = vadd.f32 %v1513, %v2069
      %v2071 = vpop.f32.mrb[0].mxu0
      %2072 = vmatprep.mubr.bf16.mxu0 0
      %2073 = vmatmul.mubr.bf16.gmra.mrb[0].mxu0 %v1805
      %v2074 = vpop.f32.mrb[0].mxu0
      %v2075 = vadd.f32 %v1518, %v2074
      %v2076 = vpop.f32.mrb[0].mxu0
      %v2077 = vpop.f32.mrb[0].mxu0
      %v2078 = vadd.f32 %v1521, %v2077
      %v2079 = vpop.f32.mrb[0].mxu0
      %2080 = vmatprep.mubr.bf16.mxu0 0
      %2081 = vmatmul.mubr.bf16.gmra.mrb[0].mxu0 %v1808
      %v2082 = vpop.f32.mrb[0].mxu0
      %v2083 = vadd.f32 %v1526, %v2082
      %v2084 = vpop.f32.mrb[0].mxu0
      %v2085 = vpop.f32.mrb[0].mxu0
      %v2086 = vadd.f32 %v1529, %v2085
      %v2087 = vpop.f32.mrb[0].mxu0
      %2088 = vmatprep.mubr.bf16.mxu0 0
      %2089 = vmatmul.mubr.bf16.gmra.mrb[0].mxu0 %v1811
      %v2090 = vpop.f32.mrb[0].mxu0
      %v2091 = vadd.f32 %v1534, %v2090
      %v2092 = vpop.f32.mrb[0].mxu0
      %v2093 = vpop.f32.mrb[0].mxu0
      %v2094 = vadd.f32 %v1537, %v2093
      %v2095 = vpop.f32.mrb[0].mxu0
      %2096 = vmatprep.mubr.bf16.mxu0 0
      %2097 = vmatmul.mubr.bf16.gmra.mrb[0].mxu0 %v1814
      %v2098 = vpop.f32.mrb[0].mxu0
      %v2099 = vadd.f32 %v1542, %v2098
      %v2100 = vpop.f32.mrb[0].mxu0
      %v2101 = vpop.f32.mrb[0].mxu0
      %v2102 = vadd.f32 %v1545, %v2101
      %v2103 = vpop.f32.mrb[0].mxu0
      %2104 = vdwg.mxu0
      %vm2137 = vcmask 1042432
      %vm2138 = vcmask 1046532
      %vm2139 = vmor %vm2137, %vm2138
      %v2140 = vrot.slane %v178, 5
      %v2141 = vrot.slane %v2140, 4
      %v2142 = vrot.slane %v179, 5
      %v2143 = vsel %vm2139, %v2141, %v2142
      %v2144 = vrot.slane %v2142, 4
      %v2145 = vrot.slane %v180, 5
      %v2146 = vsel %vm2139, %v2144, %v2145
      %v2147 = vrot.slane %v181, 5
      %v2148 = vrot.slane %v2147, 4
      %v2149 = vrot.slane %v182, 5
      %v2150 = vsel %vm2139, %v2148, %v2149
      %v2151 = vrot.slane %v2149, 4
      %v2152 = vrot.slane %v183, 5
      %v2153 = vsel %vm2139, %v2151, %v2152
      %v2154 = vrot.slane %v184, 5
      %v2155 = vrot.slane %v2154, 4
      %v2156 = vrot.slane %v185, 5
      %v2157 = vsel %vm2139, %v2155, %v2156
      %v2158 = vrot.slane %v2156, 4
      %v2159 = vrot.slane %v186, 5
      %v2160 = vsel %vm2139, %v2158, %v2159
      %v2161 = vrot.slane %v187, 5
      %v2162 = vrot.slane %v2161, 4
      %v2163 = vrot.slane %v188, 5
      %v2164 = vsel %vm2139, %v2162, %v2163
      %v2165 = vrot.slane %v2163, 4
      %v2166 = vrot.slane %v189, 5
      %v2167 = vsel %vm2139, %v2165, %v2166
      %v2168 = vrot.slane %v190, 5
      %v2169 = vrot.slane %v2168, 4
      %v2170 = vrot.slane %v191, 5
      %v2171 = vsel %vm2139, %v2169, %v2170
      %v2172 = vrot.slane %v2170, 4
      %v2173 = vrot.slane %v192, 5
      %v2174 = vsel %vm2139, %v2172, %v2173
      %v2175 = vrot.slane %v193, 5
      %v2176 = vrot.slane %v2175, 4
      %v2177 = vrot.slane %v194, 5
      %v2178 = vsel %vm2139, %v2176, %v2177
      %v2179 = vrot.slane %v2177, 4
      %v2180 = vrot.slane %v195, 5
      %v2181 = vsel %vm2139, %v2179, %v2180
      %v2182 = vrot.slane %v196, 5
      %v2183 = vrot.slane %v2182, 4
      %v2184 = vrot.slane %v197, 5
      %v2185 = vsel %vm2139, %v2183, %v2184
      %v2186 = vrot.slane %v2184, 4
      %v2187 = vrot.slane %v198, 5
      %v2188 = vsel %vm2139, %v2186, %v2187
      %v2189 = vrot.slane %v199, 5
      %v2190 = vrot.slane %v2189, 4
      %v2191 = vrot.slane %v200, 5
      %v2192 = vsel %vm2139, %v2190, %v2191
      %v2193 = vrot.slane %v2191, 4
      %v2194 = vrot.slane %v201, 5
      %v2195 = vsel %vm2139, %v2193, %v2194
      %v2196 = vrot.slane %v202, 5
      %v2197 = vrot.slane %v2196, 4
      %v2198 = vrot.slane %v203, 5
      %v2199 = vsel %vm2139, %v2197, %v2198
      %v2200 = vrot.slane %v2198, 4
      %v2201 = vrot.slane %v204, 5
      %v2202 = vsel %vm2139, %v2200, %v2201
      %v2203 = vrot.slane %v205, 5
      %v2204 = vrot.slane %v2203, 4
      %v2205 = vrot.slane %v206, 5
      %v2206 = vsel %vm2139, %v2204, %v2205
      %v2207 = vrot.slane %v2205, 4
      %v2208 = vrot.slane %v207, 5
      %v2209 = vsel %vm2139, %v2207, %v2208
      %v2210 = vrot.slane %v208, 5
      %v2211 = vrot.slane %v2210, 4
      %v2212 = vrot.slane %v209, 5
      %v2213 = vsel %vm2139, %v2211, %v2212
      %v2214 = vrot.slane %v2212, 4
      %v2215 = vrot.slane %v210, 5
      %v2216 = vsel %vm2139, %v2214, %v2215
      %v2217 = vrot.slane %v211, 5
      %v2218 = vrot.slane %v2217, 4
      %v2219 = vrot.slane %v212, 5
      %v2220 = vsel %vm2139, %v2218, %v2219
      %v2221 = vrot.slane %v2219, 4
      %v2222 = vrot.slane %v213, 5
      %v2223 = vsel %vm2139, %v2221, %v2222
      %v2224 = vrot.slane %v214, 5
      %v2225 = vrot.slane %v2224, 4
      %v2226 = vrot.slane %v215, 5
      %v2227 = vsel %vm2139, %v2225, %v2226
      %v2228 = vrot.slane %v2226, 4
      %v2229 = vrot.slane %v216, 5
      %v2230 = vsel %vm2139, %v2228, %v2229
      %v2231 = vrot.slane %v217, 5
      %v2232 = vrot.slane %v2231, 4
      %v2233 = vrot.slane %v218, 5
      %v2234 = vsel %vm2139, %v2232, %v2233
      %v2235 = vrot.slane %v2233, 4
      %v2236 = vrot.slane %v219, 5
      %v2237 = vsel %vm2139, %v2235, %v2236
      %v2238 = vrot.slane %v220, 5
      %v2239 = vrot.slane %v2238, 4
      %v2240 = vrot.slane %v221, 5
      %v2241 = vsel %vm2139, %v2239, %v2240
      %v2242 = vrot.slane %v2240, 4
      %v2243 = vrot.slane %v222, 5
      %v2244 = vsel %vm2139, %v2242, %v2243
      %v2245 = vrot.slane %v223, 5
      %v2246 = vrot.slane %v2245, 4
      %v2247 = vrot.slane %v224, 5
      %v2248 = vsel %vm2139, %v2246, %v2247
      %v2249 = vrot.slane %v2247, 4
      %v2250 = vrot.slane %v225, 5
      %v2251 = vsel %vm2139, %v2249, %v2250
      %v2252 = vrot.slane %v226, 5
      %v2253 = vrot.slane %v2252, 4
      %v2254 = vrot.slane %v227, 5
      %v2255 = vsel %vm2139, %v2253, %v2254
      %v2256 = vrot.slane %v2254, 4
      %v2257 = vrot.slane %v228, 5
      %v2258 = vsel %vm2139, %v2256, %v2257
      %v2259 = vrot.slane %v229, 5
      %v2260 = vrot.slane %v2259, 4
      %v2261 = vrot.slane %v230, 5
      %v2262 = vsel %vm2139, %v2260, %v2261
      %v2263 = vrot.slane %v2261, 4
      %v2264 = vrot.slane %v231, 5
      %v2265 = vsel %vm2139, %v2263, %v2264
      %v2266 = vrot.slane %v232, 5
      %v2267 = vrot.slane %v2266, 4
      %v2268 = vrot.slane %v233, 5
      %v2269 = vsel %vm2139, %v2267, %v2268
      %v2270 = vrot.slane %v2268, 4
      %v2271 = vrot.slane %v234, 5
      %v2272 = vsel %vm2139, %v2270, %v2271
      %v2273 = vrot.slane %v235, 5
      %v2274 = vrot.slane %v2273, 4
      %v2275 = vrot.slane %v236, 5
      %v2276 = vsel %vm2139, %v2274, %v2275
      %v2277 = vrot.slane %v2275, 4
      %v2278 = vrot.slane %v237, 5
      %v2279 = vsel %vm2139, %v2277, %v2278
      %v2280 = vrot.slane %v238, 5
      %v2281 = vrot.slane %v2280, 4
      %v2282 = vrot.slane %v239, 5
      %v2283 = vsel %vm2139, %v2281, %v2282
      %v2284 = vrot.slane %v2282, 4
      %v2285 = vrot.slane %v240, 5
      %v2286 = vsel %vm2139, %v2284, %v2285
      %v2287 = vrot.slane %v241, 5
      %v2288 = vrot.slane %v2287, 4
      %v2289 = vrot.slane %v242, 5
      %v2290 = vsel %vm2139, %v2288, %v2289
      %v2291 = vrot.slane %v2289, 4
      %v2292 = vrot.slane %v243, 5
      %v2293 = vsel %vm2139, %v2291, %v2292
      %v2294 = vrot.slane %v244, 5
      %v2295 = vrot.slane %v2294, 4
      %v2296 = vrot.slane %v245, 5
      %v2297 = vsel %vm2139, %v2295, %v2296
      %v2298 = vrot.slane %v2296, 4
      %v2299 = vrot.slane %v246, 5
      %v2300 = vsel %vm2139, %v2298, %v2299
      %v2301 = vrot.slane %v247, 5
      %v2302 = vrot.slane %v2301, 4
      %v2303 = vrot.slane %v248, 5
      %v2304 = vsel %vm2139, %v2302, %v2303
      %v2305 = vrot.slane %v2303, 4
      %v2306 = vrot.slane %v249, 5
      %v2307 = vsel %vm2139, %v2305, %v2306
      %v2308 = vrot.slane %v250, 5
      %v2309 = vrot.slane %v2308, 4
      %v2310 = vrot.slane %v251, 5
      %v2311 = vsel %vm2139, %v2309, %v2310
      %v2312 = vrot.slane %v2310, 4
      %v2313 = vrot.slane %v252, 5
      %v2314 = vsel %vm2139, %v2312, %v2313
      %v2315 = vrot.slane %v253, 5
      %v2316 = vrot.slane %v2315, 4
      %v2317 = vrot.slane %v254, 5
      %v2318 = vsel %vm2139, %v2316, %v2317
      %v2319 = vrot.slane %v2317, 4
      %v2320 = vrot.slane %v255, 5
      %v2321 = vsel %vm2139, %v2319, %v2320
      %v2322 = vrot.slane %v256, 5
      %v2323 = vrot.slane %v2322, 4
      %v2324 = vrot.slane %v257, 5
      %v2325 = vsel %vm2139, %v2323, %v2324
      %v2326 = vrot.slane %v2324, 4
      %v2327 = vrot.slane %v258, 5
      %v2328 = vsel %vm2139, %v2326, %v2327
      %v2329 = vrot.slane %v259, 5
      %v2330 = vrot.slane %v2329, 4
      %v2331 = vrot.slane %v260, 5
      %v2332 = vsel %vm2139, %v2330, %v2331
      %v2333 = vrot.slane %v2331, 4
      %v2334 = vrot.slane %v261, 5
      %v2335 = vsel %vm2139, %v2333, %v2334
      %v2336 = vrot.slane %v262, 5
      %v2337 = vrot.slane %v2336, 4
      %v2338 = vrot.slane %v263, 5
      %v2339 = vsel %vm2139, %v2337, %v2338
      %v2340 = vrot.slane %v2338, 4
      %v2341 = vrot.slane %v264, 5
      %v2342 = vsel %vm2139, %v2340, %v2341
      %v2343 = vrot.slane %v265, 5
      %v2344 = vrot.slane %v2343, 4
      %v2345 = vrot.slane %v266, 5
      %v2346 = vsel %vm2139, %v2344, %v2345
      %v2347 = vrot.slane %v2345, 4
      %v2348 = vrot.slane %v267, 5
      %v2349 = vsel %vm2139, %v2347, %v2348
      %v2350 = vrot.slane %v268, 5
      %v2351 = vrot.slane %v2350, 4
      %v2352 = vrot.slane %v269, 5
      %v2353 = vsel %vm2139, %v2351, %v2352
      %v2354 = vrot.slane %v2352, 4
      %v2355 = vrot.slane %v270, 5
      %v2356 = vsel %vm2139, %v2354, %v2355
      %v2357 = vrot.slane %v271, 5
      %v2358 = vrot.slane %v2357, 4
      %v2359 = vrot.slane %v272, 5
      %v2360 = vsel %vm2139, %v2358, %v2359
      %v2361 = vrot.slane %v2359, 4
      %v2362 = vrot.slane %v273, 5
      %v2363 = vsel %vm2139, %v2361, %v2362
      %s2364 = scalar_lea.vmem %s1, 32
      %v2365 = vld [vmem:[%s2364] sm:$0xf]
      %v2366 = vld [vmem:[%s2364 + $0x4] sm:$0xf]
      %v2367 = vld [vmem:[%s2364 + $0x8] sm:$0xf]
      %v2368 = vld [vmem:[%s2364 + $0xc] sm:$0xf]
      %v2369 = vunpack.c.l.b16 %v2143
      %v2370 = vunpack.c.l.b16 %v2146
      %v2371 = vunpack.c.l.b16 %v2150
      %v2372 = vunpack.c.l.b16 %v2153
      %v2373 = vunpack.c.l.b16 %v2157
      %v2374 = vunpack.c.l.b16 %v2160
      %v2375 = vunpack.c.l.b16 %v2164
      %v2376 = vunpack.c.l.b16 %v2167
      %v2377 = vunpack.c.l.b16 %v2171
      %v2378 = vunpack.c.l.b16 %v2174
      %v2379 = vunpack.c.l.b16 %v2178
      %v2380 = vunpack.c.l.b16 %v2181
      %v2381 = vunpack.c.l.b16 %v2185
      %v2382 = vunpack.c.l.b16 %v2188
      %v2383 = vunpack.c.l.b16 %v2192
      %v2384 = vunpack.c.l.b16 %v2195
      %v2385 = vunpack.c.l.b16 %v2199
      %v2386 = vunpack.c.l.b16 %v2202
      %v2387 = vunpack.c.l.b16 %v2206
      %v2388 = vunpack.c.l.b16 %v2209
      %v2389 = vunpack.c.l.b16 %v2213
      %v2390 = vunpack.c.l.b16 %v2216
      %v2391 = vunpack.c.l.b16 %v2220
      %v2392 = vunpack.c.l.b16 %v2223
      %v2393 = vunpack.c.l.b16 %v2227
      %v2394 = vunpack.c.l.b16 %v2230
      %v2395 = vunpack.c.l.b16 %v2234
      %v2396 = vunpack.c.l.b16 %v2237
      %v2397 = vunpack.c.l.b16 %v2241
      %v2398 = vunpack.c.l.b16 %v2244
      %v2399 = vunpack.c.l.b16 %v2248
      %v2400 = vunpack.c.l.b16 %v2251
      %v2401 = vunpack.c.l.b16 %v2255
      %v2402 = vunpack.c.l.b16 %v2258
      %v2403 = vunpack.c.l.b16 %v2262
      %v2404 = vunpack.c.l.b16 %v2265
      %v2405 = vunpack.c.l.b16 %v2269
      %v2406 = vunpack.c.l.b16 %v2272
      %v2407 = vunpack.c.l.b16 %v2276
      %v2408 = vunpack.c.l.b16 %v2279
      %v2409 = vunpack.c.l.b16 %v2283
      %v2410 = vunpack.c.l.b16 %v2286
      %v2411 = vunpack.c.l.b16 %v2290
      %v2412 = vunpack.c.l.b16 %v2293
      %v2413 = vunpack.c.l.b16 %v2297
      %v2414 = vunpack.c.l.b16 %v2300
      %v2415 = vunpack.c.l.b16 %v2304
      %v2416 = vunpack.c.l.b16 %v2307
      %v2417 = vunpack.c.l.b16 %v2311
      %v2418 = vunpack.c.l.b16 %v2314
      %v2419 = vunpack.c.l.b16 %v2318
      %v2420 = vunpack.c.l.b16 %v2321
      %v2421 = vunpack.c.l.b16 %v2325
      %v2422 = vunpack.c.l.b16 %v2328
      %v2423 = vunpack.c.l.b16 %v2332
      %v2424 = vunpack.c.l.b16 %v2335
      %v2425 = vunpack.c.l.b16 %v2339
      %v2426 = vunpack.c.l.b16 %v2342
      %v2427 = vunpack.c.l.b16 %v2346
      %v2428 = vunpack.c.l.b16 %v2349
      %v2429 = vunpack.c.l.b16 %v2353
      %v2430 = vunpack.c.l.b16 %v2356
      %v2431 = vunpack.c.l.b16 %v2360
      %v2432 = vunpack.c.l.b16 %v2363
      %v2433 = vpack.c.b16 %v2370, %v2369
      %v2434 = vpack.c.b16 %v2372, %v2371
      %v2435 = vpack.c.b16 %v2374, %v2373
      %v2436 = vpack.c.b16 %v2376, %v2375
      %v2437 = vpack.c.b16 %v2378, %v2377
      %v2438 = vpack.c.b16 %v2380, %v2379
      %v2439 = vpack.c.b16 %v2382, %v2381
      %v2440 = vpack.c.b16 %v2384, %v2383
      %v2441 = vpack.c.b16 %v2386, %v2385
      %v2442 = vpack.c.b16 %v2388, %v2387
      %v2443 = vpack.c.b16 %v2390, %v2389
      %v2444 = vpack.c.b16 %v2392, %v2391
      %v2445 = vpack.c.b16 %v2394, %v2393
      %v2446 = vpack.c.b16 %v2396, %v2395
      %v2447 = vpack.c.b16 %v2398, %v2397
      %v2448 = vpack.c.b16 %v2400, %v2399
      %v2449 = vpack.c.b16 %v2402, %v2401
      %v2450 = vpack.c.b16 %v2404, %v2403
      %v2451 = vpack.c.b16 %v2406, %v2405
      %v2452 = vpack.c.b16 %v2408, %v2407
      %v2453 = vpack.c.b16 %v2410, %v2409
      %v2454 = vpack.c.b16 %v2412, %v2411
      %v2455 = vpack.c.b16 %v2414, %v2413
      %v2456 = vpack.c.b16 %v2416, %v2415
      %v2457 = vpack.c.b16 %v2418, %v2417
      %v2458 = vpack.c.b16 %v2420, %v2419
      %v2459 = vpack.c.b16 %v2422, %v2421
      %v2460 = vpack.c.b16 %v2424, %v2423
      %v2461 = vpack.c.b16 %v2426, %v2425
      %v2462 = vpack.c.b16 %v2428, %v2427
      %v2463 = vpack.c.b16 %v2430, %v2429
      %v2464 = vpack.c.b16 %v2432, %v2431
      %v2469 = vunpack.c.l.b16 %v2365
      %v2470 = vunpack.c.l.b16 %v2366
      %v2471 = vunpack.c.l.b16 %v2367
      %v2472 = vunpack.c.l.b16 %v2368
      %v2473 = vpack.c.b16 %v2470, %v2469
      %v2474 = vpack.c.b16 %v2472, %v2471
      %v2478 = vsel %vm1162, %v2433, 0
      %v2481 = vsel %vm1162, %v2434, 0
      %v2484 = vsel %vm1162, %v2435, 0
      %v2487 = vsel %vm1162, %v2436, 0
      %v2490 = vsel %vm1162, %v2437, 0
      %v2493 = vsel %vm1162, %v2438, 0
      %v2496 = vsel %vm1162, %v2439, 0
      %v2499 = vsel %vm1162, %v2440, 0
      %v2502 = vsel %vm1162, %v2441, 0
      %v2505 = vsel %vm1162, %v2442, 0
      %v2508 = vsel %vm1162, %v2443, 0
      %v2511 = vsel %vm1162, %v2444, 0
      %v2514 = vsel %vm1162, %v2445, 0
      %v2517 = vsel %vm1162, %v2446, 0
      %v2520 = vsel %vm1162, %v2447, 0
      %v2523 = vsel %vm1162, %v2448, 0
      %v2526 = vsel %vm1162, %v2449, 0
      %v2529 = vsel %vm1162, %v2450, 0
      %v2532 = vsel %vm1162, %v2451, 0
      %v2535 = vsel %vm1162, %v2452, 0
      %v2538 = vsel %vm1162, %v2453, 0
      %v2541 = vsel %vm1162, %v2454, 0
      %v2544 = vsel %vm1162, %v2455, 0
      %v2547 = vsel %vm1162, %v2456, 0
      %v2550 = vsel %vm1162, %v2457, 0
      %v2553 = vsel %vm1162, %v2458, 0
      %v2556 = vsel %vm1162, %v2459, 0
      %v2559 = vsel %vm1162, %v2460, 0
      %v2562 = vsel %vm1162, %v2461, 0
      %v2565 = vsel %vm1162, %v2462, 0
      %v2568 = vsel %vm1162, %v2463, 0
      %v2571 = vsel %vm1162, %v2464, 0
      %2573 = vmatprep.subr.bf16.mxu0 0
      %2574 = vmatpush1.bf16.msra.mxu0 %v2473
      %2575 = vmatprep.subr.bf16.mxu0 0
      %2576 = vmatpush1.bf16.msra.mxu0 %v2474
      %2577 = vmatprep.subr.bf16.mxu0 0
      %2578 = vmatpush1.bf16.msra.mxu0 0
      %2579 = vmatprep.subr.bf16.mxu0 0
      %2580 = vmatpush1.bf16.msra.mxu0 0
      %2581 = vmatprep.subr.bf16.mxu0 0
      %2582 = vmatpush1.bf16.msra.mxu0 0
      %2583 = vmatprep.subr.bf16.mxu0 0
      %2584 = vmatpush1.bf16.msra.mxu0 0
      %2585 = vmatprep.subr.bf16.mxu0 0
      %2586 = vmatpush1.bf16.msra.mxu0 0
      %2587 = vmatprep.subr.bf16.mxu0 0
      %2588 = vmatpush1.bf16.msra.mxu0 0
      %2589 = vmatprep.subr.bf16.mxu0 0
      %2590 = vmatpush1.bf16.msra.mxu0 0
      %2591 = vmatprep.subr.bf16.mxu0 0
      %2592 = vmatpush1.bf16.msra.mxu0 0
      %2593 = vmatprep.subr.bf16.mxu0 0
      %2594 = vmatpush1.bf16.msra.mxu0 0
      %2595 = vmatprep.subr.bf16.mxu0 0
      %2596 = vmatpush1.bf16.msra.mxu0 0
      %2597 = vmatprep.subr.bf16.mxu0 0
      %2598 = vmatpush1.bf16.msra.mxu0 0
      %2599 = vmatprep.subr.bf16.mxu0 0
      %2600 = vmatpush1.bf16.msra.mxu0 0
      %2601 = vmatprep.subr.bf16.mxu0 0
      %2602 = vmatpush1.bf16.msra.mxu0 0
      %2603 = vmatprep.subr.bf16.mxu0 0
      %2604 = vmatpush1.bf16.msra.mxu0 0
      %2605 = vmatprep.mubr.bf16.mxu0 0
      %2606 = vmatmul.mubr.bf16.gmra.mrb[0].mxu0 %v2478
      %v2607 = vpop.f32.mrb[0].mxu0
      %v2608 = vadd.f32 0.0, %v2607
      %v2609 = vpop.f32.mrb[0].mxu0
      %v2610 = vpop.f32.mrb[0].mxu0
      %v2611 = vadd.f32 0.0, %v2610
      %v2612 = vpop.f32.mrb[0].mxu0
      %2613 = vmatprep.mubr.bf16.mxu0 0
      %2614 = vmatmul.mubr.bf16.gmra.mrb[0].mxu0 %v2481
      %v2615 = vpop.f32.mrb[0].mxu0
      %v2616 = vadd.f32 0.0, %v2615
      %v2617 = vpop.f32.mrb[0].mxu0
      %v2618 = vpop.f32.mrb[0].mxu0
      %v2619 = vadd.f32 0.0, %v2618
      %v2620 = vpop.f32.mrb[0].mxu0
      %2621 = vmatprep.mubr.bf16.mxu0 0
      %2622 = vmatmul.mubr.bf16.gmra.mrb[0].mxu0 %v2484
      %v2623 = vpop.f32.mrb[0].mxu0
      %v2624 = vadd.f32 0.0, %v2623
      %v2625 = vpop.f32.mrb[0].mxu0
      %v2626 = vpop.f32.mrb[0].mxu0
      %v2627 = vadd.f32 0.0, %v2626
      %v2628 = vpop.f32.mrb[0].mxu0
      %2629 = vmatprep.mubr.bf16.mxu0 0
      %2630 = vmatmul.mubr.bf16.gmra.mrb[0].mxu0 %v2487
      %v2631 = vpop.f32.mrb[0].mxu0
      %v2632 = vadd.f32 0.0, %v2631
      %v2633 = vpop.f32.mrb[0].mxu0
      %v2634 = vpop.f32.mrb[0].mxu0
      %v2635 = vadd.f32 0.0, %v2634
      %v2636 = vpop.f32.mrb[0].mxu0
      %2637 = vmatprep.mubr.bf16.mxu0 0
      %2638 = vmatmul.mubr.bf16.gmra.mrb[0].mxu0 %v2490
      %v2639 = vpop.f32.mrb[0].mxu0
      %v2640 = vadd.f32 0.0, %v2639
      %v2641 = vpop.f32.mrb[0].mxu0
      %v2642 = vpop.f32.mrb[0].mxu0
      %v2643 = vadd.f32 0.0, %v2642
      %v2644 = vpop.f32.mrb[0].mxu0
      %2645 = vmatprep.mubr.bf16.mxu0 0
      %2646 = vmatmul.mubr.bf16.gmra.mrb[0].mxu0 %v2493
      %v2647 = vpop.f32.mrb[0].mxu0
      %v2648 = vadd.f32 0.0, %v2647
      %v2649 = vpop.f32.mrb[0].mxu0
      %v2650 = vpop.f32.mrb[0].mxu0
      %v2651 = vadd.f32 0.0, %v2650
      %v2652 = vpop.f32.mrb[0].mxu0
      %2653 = vmatprep.mubr.bf16.mxu0 0
      %2654 = vmatmul.mubr.bf16.gmra.mrb[0].mxu0 %v2496
      %v2655 = vpop.f32.mrb[0].mxu0
      %v2656 = vadd.f32 0.0, %v2655
      %v2657 = vpop.f32.mrb[0].mxu0
      %v2658 = vpop.f32.mrb[0].mxu0
      %v2659 = vadd.f32 0.0, %v2658
      %v2660 = vpop.f32.mrb[0].mxu0
      %2661 = vmatprep.mubr.bf16.mxu0 0
      %2662 = vmatmul.mubr.bf16.gmra.mrb[0].mxu0 %v2499
      %v2663 = vpop.f32.mrb[0].mxu0
      %v2664 = vadd.f32 0.0, %v2663
      %v2665 = vpop.f32.mrb[0].mxu0
      %v2666 = vpop.f32.mrb[0].mxu0
      %v2667 = vadd.f32 0.0, %v2666
      %v2668 = vpop.f32.mrb[0].mxu0
      %2669 = vmatprep.mubr.bf16.mxu0 0
      %2670 = vmatmul.mubr.bf16.gmra.mrb[0].mxu0 %v2502
      %v2671 = vpop.f32.mrb[0].mxu0
      %v2672 = vadd.f32 0.0, %v2671
      %v2673 = vpop.f32.mrb[0].mxu0
      %v2674 = vpop.f32.mrb[0].mxu0
      %v2675 = vadd.f32 0.0, %v2674
      %v2676 = vpop.f32.mrb[0].mxu0
      %2677 = vmatprep.mubr.bf16.mxu0 0
      %2678 = vmatmul.mubr.bf16.gmra.mrb[0].mxu0 %v2505
      %v2679 = vpop.f32.mrb[0].mxu0
      %v2680 = vadd.f32 0.0, %v2679
      %v2681 = vpop.f32.mrb[0].mxu0
      %v2682 = vpop.f32.mrb[0].mxu0
      %v2683 = vadd.f32 0.0, %v2682
      %v2684 = vpop.f32.mrb[0].mxu0
      %2685 = vmatprep.mubr.bf16.mxu0 0
      %2686 = vmatmul.mubr.bf16.gmra.mrb[0].mxu0 %v2508
      %v2687 = vpop.f32.mrb[0].mxu0
      %v2688 = vadd.f32 0.0, %v2687
      %v2689 = vpop.f32.mrb[0].mxu0
      %v2690 = vpop.f32.mrb[0].mxu0
      %v2691 = vadd.f32 0.0, %v2690
      %v2692 = vpop.f32.mrb[0].mxu0
      %2693 = vmatprep.mubr.bf16.mxu0 0
      %2694 = vmatmul.mubr.bf16.gmra.mrb[0].mxu0 %v2511
      %v2695 = vpop.f32.mrb[0].mxu0
      %v2696 = vadd.f32 0.0, %v2695
      %v2697 = vpop.f32.mrb[0].mxu0
      %v2698 = vpop.f32.mrb[0].mxu0
      %v2699 = vadd.f32 0.0, %v2698
      %v2700 = vpop.f32.mrb[0].mxu0
      %2701 = vmatprep.mubr.bf16.mxu0 0
      %2702 = vmatmul.mubr.bf16.gmra.mrb[0].mxu0 %v2514
      %v2703 = vpop.f32.mrb[0].mxu0
      %v2704 = vadd.f32 0.0, %v2703
      %v2705 = vpop.f32.mrb[0].mxu0
      %v2706 = vpop.f32.mrb[0].mxu0
      %v2707 = vadd.f32 0.0, %v2706
      %v2708 = vpop.f32.mrb[0].mxu0
      %2709 = vmatprep.mubr.bf16.mxu0 0
      %2710 = vmatmul.mubr.bf16.gmra.mrb[0].mxu0 %v2517
      %v2711 = vpop.f32.mrb[0].mxu0
      %v2712 = vadd.f32 0.0, %v2711
      %v2713 = vpop.f32.mrb[0].mxu0
      %v2714 = vpop.f32.mrb[0].mxu0
      %v2715 = vadd.f32 0.0, %v2714
      %v2716 = vpop.f32.mrb[0].mxu0
      %2717 = vmatprep.mubr.bf16.mxu0 0
      %2718 = vmatmul.mubr.bf16.gmra.mrb[0].mxu0 %v2520
      %v2719 = vpop.f32.mrb[0].mxu0
      %v2720 = vadd.f32 0.0, %v2719
      %v2721 = vpop.f32.mrb[0].mxu0
      %v2722 = vpop.f32.mrb[0].mxu0
      %v2723 = vadd.f32 0.0, %v2722
      %v2724 = vpop.f32.mrb[0].mxu0
      %2725 = vmatprep.mubr.bf16.mxu0 0
      %2726 = vmatmul.mubr.bf16.gmra.mrb[0].mxu0 %v2523
      %v2727 = vpop.f32.mrb[0].mxu0
      %v2728 = vadd.f32 0.0, %v2727
      %v2729 = vpop.f32.mrb[0].mxu0
      %v2730 = vpop.f32.mrb[0].mxu0
      %v2731 = vadd.f32 0.0, %v2730
      %v2732 = vpop.f32.mrb[0].mxu0
      %2733 = vmatprep.mubr.bf16.mxu0 0
      %2734 = vmatmul.mubr.bf16.gmra.mrb[0].mxu0 %v2526
      %v2735 = vpop.f32.mrb[0].mxu0
      %v2736 = vadd.f32 0.0, %v2735
      %v2737 = vpop.f32.mrb[0].mxu0
      %v2738 = vpop.f32.mrb[0].mxu0
      %v2739 = vadd.f32 0.0, %v2738
      %v2740 = vpop.f32.mrb[0].mxu0
      %2741 = vmatprep.mubr.bf16.mxu0 0
      %2742 = vmatmul.mubr.bf16.gmra.mrb[0].mxu0 %v2529
      %v2743 = vpop.f32.mrb[0].mxu0
      %v2744 = vadd.f32 0.0, %v2743
      %v2745 = vpop.f32.mrb[0].mxu0
      %v2746 = vpop.f32.mrb[0].mxu0
      %v2747 = vadd.f32 0.0, %v2746
      %v2748 = vpop.f32.mrb[0].mxu0
      %2749 = vmatprep.mubr.bf16.mxu0 0
      %2750 = vmatmul.mubr.bf16.gmra.mrb[0].mxu0 %v2532
      %v2751 = vpop.f32.mrb[0].mxu0
      %v2752 = vadd.f32 0.0, %v2751
      %v2753 = vpop.f32.mrb[0].mxu0
      %v2754 = vpop.f32.mrb[0].mxu0
      %v2755 = vadd.f32 0.0, %v2754
      %v2756 = vpop.f32.mrb[0].mxu0
      %2757 = vmatprep.mubr.bf16.mxu0 0
      %2758 = vmatmul.mubr.bf16.gmra.mrb[0].mxu0 %v2535
      %v2759 = vpop.f32.mrb[0].mxu0
      %v2760 = vadd.f32 0.0, %v2759
      %v2761 = vpop.f32.mrb[0].mxu0
      %v2762 = vpop.f32.mrb[0].mxu0
      %v2763 = vadd.f32 0.0, %v2762
      %v2764 = vpop.f32.mrb[0].mxu0
      %2765 = vmatprep.mubr.bf16.mxu0 0
      %2766 = vmatmul.mubr.bf16.gmra.mrb[0].mxu0 %v2538
      %v2767 = vpop.f32.mrb[0].mxu0
      %v2768 = vadd.f32 0.0, %v2767
      %v2769 = vpop.f32.mrb[0].mxu0
      %v2770 = vpop.f32.mrb[0].mxu0
      %v2771 = vadd.f32 0.0, %v2770
      %v2772 = vpop.f32.mrb[0].mxu0
      %2773 = vmatprep.mubr.bf16.mxu0 0
      %2774 = vmatmul.mubr.bf16.gmra.mrb[0].mxu0 %v2541
      %v2775 = vpop.f32.mrb[0].mxu0
      %v2776 = vadd.f32 0.0, %v2775
      %v2777 = vpop.f32.mrb[0].mxu0
      %v2778 = vpop.f32.mrb[0].mxu0
      %v2779 = vadd.f32 0.0, %v2778
      %v2780 = vpop.f32.mrb[0].mxu0
      %2781 = vmatprep.mubr.bf16.mxu0 0
      %2782 = vmatmul.mubr.bf16.gmra.mrb[0].mxu0 %v2544
      %v2783 = vpop.f32.mrb[0].mxu0
      %v2784 = vadd.f32 0.0, %v2783
      %v2785 = vpop.f32.mrb[0].mxu0
      %v2786 = vpop.f32.mrb[0].mxu0
      %v2787 = vadd.f32 0.0, %v2786
      %v2788 = vpop.f32.mrb[0].mxu0
      %2789 = vmatprep.mubr.bf16.mxu0 0
      %2790 = vmatmul.mubr.bf16.gmra.mrb[0].mxu0 %v2547
      %v2791 = vpop.f32.mrb[0].mxu0
      %v2792 = vadd.f32 0.0, %v2791
      %v2793 = vpop.f32.mrb[0].mxu0
      %v2794 = vpop.f32.mrb[0].mxu0
      %v2795 = vadd.f32 0.0, %v2794
      %v2796 = vpop.f32.mrb[0].mxu0
      %2797 = vmatprep.mubr.bf16.mxu0 0
      %2798 = vmatmul.mubr.bf16.gmra.mrb[0].mxu0 %v2550
      %v2799 = vpop.f32.mrb[0].mxu0
      %v2800 = vadd.f32 0.0, %v2799
      %v2801 = vpop.f32.mrb[0].mxu0
      %v2802 = vpop.f32.mrb[0].mxu0
      %v2803 = vadd.f32 0.0, %v2802
      %v2804 = vpop.f32.mrb[0].mxu0
      %2805 = vmatprep.mubr.bf16.mxu0 0
      %2806 = vmatmul.mubr.bf16.gmra.mrb[0].mxu0 %v2553
      %v2807 = vpop.f32.mrb[0].mxu0
      %v2808 = vadd.f32 0.0, %v2807
      %v2809 = vpop.f32.mrb[0].mxu0
      %v2810 = vpop.f32.mrb[0].mxu0
      %v2811 = vadd.f32 0.0, %v2810
      %v2812 = vpop.f32.mrb[0].mxu0
      %2813 = vmatprep.mubr.bf16.mxu0 0
      %2814 = vmatmul.mubr.bf16.gmra.mrb[0].mxu0 %v2556
      %v2815 = vpop.f32.mrb[0].mxu0
      %v2816 = vadd.f32 0.0, %v2815
      %v2817 = vpop.f32.mrb[0].mxu0
      %v2818 = vpop.f32.mrb[0].mxu0
      %v2819 = vadd.f32 0.0, %v2818
      %v2820 = vpop.f32.mrb[0].mxu0
      %2821 = vmatprep.mubr.bf16.mxu0 0
      %2822 = vmatmul.mubr.bf16.gmra.mrb[0].mxu0 %v2559
      %v2823 = vpop.f32.mrb[0].mxu0
      %v2824 = vadd.f32 0.0, %v2823
      %v2825 = vpop.f32.mrb[0].mxu0
      %v2826 = vpop.f32.mrb[0].mxu0
      %v2827 = vadd.f32 0.0, %v2826
      %v2828 = vpop.f32.mrb[0].mxu0
      %2829 = vmatprep.mubr.bf16.mxu0 0
      %2830 = vmatmul.mubr.bf16.gmra.mrb[0].mxu0 %v2562
      %v2831 = vpop.f32.mrb[0].mxu0
      %v2832 = vadd.f32 0.0, %v2831
      %v2833 = vpop.f32.mrb[0].mxu0
      %v2834 = vpop.f32.mrb[0].mxu0
      %v2835 = vadd.f32 0.0, %v2834
      %v2836 = vpop.f32.mrb[0].mxu0
      %2837 = vmatprep.mubr.bf16.mxu0 0
      %2838 = vmatmul.mubr.bf16.gmra.mrb[0].mxu0 %v2565
      %v2839 = vpop.f32.mrb[0].mxu0
      %v2840 = vadd.f32 0.0, %v2839
      %v2841 = vpop.f32.mrb[0].mxu0
      %v2842 = vpop.f32.mrb[0].mxu0
      %v2843 = vadd.f32 0.0, %v2842
      %v2844 = vpop.f32.mrb[0].mxu0
      %2845 = vmatprep.mubr.bf16.mxu0 0
      %2846 = vmatmul.mubr.bf16.gmra.mrb[0].mxu0 %v2568
      %v2847 = vpop.f32.mrb[0].mxu0
      %v2848 = vadd.f32 0.0, %v2847
      %v2849 = vpop.f32.mrb[0].mxu0
      %v2850 = vpop.f32.mrb[0].mxu0
      %v2851 = vadd.f32 0.0, %v2850
      %v2852 = vpop.f32.mrb[0].mxu0
      %2853 = vmatprep.mubr.bf16.mxu0 0
      %2854 = vmatmul.mubr.bf16.gmra.mrb[0].mxu0 %v2571
      %v2855 = vpop.f32.mrb[0].mxu0
      %v2856 = vadd.f32 0.0, %v2855
      %v2857 = vpop.f32.mrb[0].mxu0
      %v2858 = vpop.f32.mrb[0].mxu0
      %v2859 = vadd.f32 0.0, %v2858
      %v2860 = vpop.f32.mrb[0].mxu0
      %2861 = vdwg.mxu0
      %v2862 = vadd.f32 %v1851, %v2608
      %v2863 = vadd.f32 %v1854, %v2611
      %v2864 = vadd.f32 %v1859, %v2616
      %v2865 = vadd.f32 %v1862, %v2619
      %v2866 = vadd.f32 %v1867, %v2624
      %v2867 = vadd.f32 %v1870, %v2627
      %v2868 = vadd.f32 %v1875, %v2632
      %v2869 = vadd.f32 %v1878, %v2635
      %v2870 = vadd.f32 %v1883, %v2640
      %v2871 = vadd.f32 %v1886, %v2643
      %v2872 = vadd.f32 %v1891, %v2648
      %v2873 = vadd.f32 %v1894, %v2651
      %v2874 = vadd.f32 %v1899, %v2656
      %v2875 = vadd.f32 %v1902, %v2659
      %v2876 = vadd.f32 %v1907, %v2664
      %v2877 = vadd.f32 %v1910, %v2667
      %v2878 = vadd.f32 %v1915, %v2672
      %v2879 = vadd.f32 %v1918, %v2675
      %v2880 = vadd.f32 %v1923, %v2680
      %v2881 = vadd.f32 %v1926, %v2683
      %v2882 = vadd.f32 %v1931, %v2688
      %v2883 = vadd.f32 %v1934, %v2691
      %v2884 = vadd.f32 %v1939, %v2696
      %v2885 = vadd.f32 %v1942, %v2699
      %v2886 = vadd.f32 %v1947, %v2704
      %v2887 = vadd.f32 %v1950, %v2707
      %v2888 = vadd.f32 %v1955, %v2712
      %v2889 = vadd.f32 %v1958, %v2715
      %v2890 = vadd.f32 %v1963, %v2720
      %v2891 = vadd.f32 %v1966, %v2723
      %v2892 = vadd.f32 %v1971, %v2728
      %v2893 = vadd.f32 %v1974, %v2731
      %v2894 = vadd.f32 %v1979, %v2736
      %v2895 = vadd.f32 %v1982, %v2739
      %v2896 = vadd.f32 %v1987, %v2744
      %v2897 = vadd.f32 %v1990, %v2747
      %v2898 = vadd.f32 %v1995, %v2752
      %v2899 = vadd.f32 %v1998, %v2755
      %v2900 = vadd.f32 %v2003, %v2760
      %v2901 = vadd.f32 %v2006, %v2763
      %v2902 = vadd.f32 %v2011, %v2768
      %v2903 = vadd.f32 %v2014, %v2771
      %v2904 = vadd.f32 %v2019, %v2776
      %v2905 = vadd.f32 %v2022, %v2779
      %v2906 = vadd.f32 %v2027, %v2784
      %v2907 = vadd.f32 %v2030, %v2787
      %v2908 = vadd.f32 %v2035, %v2792
      %v2909 = vadd.f32 %v2038, %v2795
      %v2910 = vadd.f32 %v2043, %v2800
      %v2911 = vadd.f32 %v2046, %v2803
      %v2912 = vadd.f32 %v2051, %v2808
      %v2913 = vadd.f32 %v2054, %v2811
      %v2914 = vadd.f32 %v2059, %v2816
      %v2915 = vadd.f32 %v2062, %v2819
      %v2916 = vadd.f32 %v2067, %v2824
      %v2917 = vadd.f32 %v2070, %v2827
      %v2918 = vadd.f32 %v2075, %v2832
      %v2919 = vadd.f32 %v2078, %v2835
      %v2920 = vadd.f32 %v2083, %v2840
      %v2921 = vadd.f32 %v2086, %v2843
      %v2922 = vadd.f32 %v2091, %v2848
      %v2923 = vadd.f32 %v2094, %v2851
      %v2924 = vadd.f32 %v2099, %v2856
      %v2925 = vadd.f32 %v2102, %v2859
      %vm2926 = vsmask.f32 2304
      %vm2927 = vsmask.f32 6416
      %vm2928 = vmor %vm2926, %vm2927
      %v2929 = vrot.slane %v282, 5
      %v2930 = vrot.slane %v285, 6
      %v2931 = vor.u32 %v2929, %v2930
      %v2932 = vrot.slane %v2931, 4
      %v2933 = vrot.slane %v295, 5
      %v2934 = vrot.slane %v291, 6
      %v2935 = vor.u32 %v2933, %v2934
      %v2936 = vsel %vm2928, %v2932, %v2935
      %v2937 = vrot.slane %v2935, 4
      %v2938 = vshrl.u32 %v180, 16
      %v2940 = vrot.slane %v2938, 5
      %v2941 = vrot.slane %v301, 6
      %v2942 = vor.u32 %v2940, %v2941
      %v2943 = vsel %vm2928, %v2937, %v2942
      %v2944 = vrot.slane %v306, 5
      %v2945 = vrot.slane %v309, 6
      %v2946 = vor.u32 %v2944, %v2945
      %v2947 = vrot.slane %v2946, 4
      %v2948 = vrot.slane %v319, 5
      %v2949 = vrot.slane %v315, 6
      %v2950 = vor.u32 %v2948, %v2949
      %v2951 = vsel %vm2928, %v2947, %v2950
      %v2952 = vrot.slane %v2950, 4
      %v2953 = vshrl.u32 %v183, 16
      %v2955 = vrot.slane %v2953, 5
      %v2956 = vrot.slane %v325, 6
      %v2957 = vor.u32 %v2955, %v2956
      %v2958 = vsel %vm2928, %v2952, %v2957
      %v2959 = vrot.slane %v330, 5
      %v2960 = vrot.slane %v333, 6
      %v2961 = vor.u32 %v2959, %v2960
      %v2962 = vrot.slane %v2961, 4
      %v2963 = vrot.slane %v343, 5
      %v2964 = vrot.slane %v339, 6
      %v2965 = vor.u32 %v2963, %v2964
      %v2966 = vsel %vm2928, %v2962, %v2965
      %v2967 = vrot.slane %v2965, 4
      %v2968 = vshrl.u32 %v186, 16
      %v2970 = vrot.slane %v2968, 5
      %v2971 = vrot.slane %v349, 6
      %v2972 = vor.u32 %v2970, %v2971
      %v2973 = vsel %vm2928, %v2967, %v2972
      %v2974 = vrot.slane %v354, 5
      %v2975 = vrot.slane %v357, 6
      %v2976 = vor.u32 %v2974, %v2975
      %v2977 = vrot.slane %v2976, 4
      %v2978 = vrot.slane %v367, 5
      %v2979 = vrot.slane %v363, 6
      %v2980 = vor.u32 %v2978, %v2979
      %v2981 = vsel %vm2928, %v2977, %v2980
      %v2982 = vrot.slane %v2980, 4
      %v2983 = vshrl.u32 %v189, 16
      %v2985 = vrot.slane %v2983, 5
      %v2986 = vrot.slane %v373, 6
      %v2987 = vor.u32 %v2985, %v2986
      %v2988 = vsel %vm2928, %v2982, %v2987
      %v2989 = vrot.slane %v378, 5
      %v2990 = vrot.slane %v381, 6
      %v2991 = vor.u32 %v2989, %v2990
      %v2992 = vrot.slane %v2991, 4
      %v2993 = vrot.slane %v391, 5
      %v2994 = vrot.slane %v387, 6
      %v2995 = vor.u32 %v2993, %v2994
      %v2996 = vsel %vm2928, %v2992, %v2995
      %v2997 = vrot.slane %v2995, 4
      %v2998 = vshrl.u32 %v192, 16
      %v3000 = vrot.slane %v2998, 5
      %v3001 = vrot.slane %v397, 6
      %v3002 = vor.u32 %v3000, %v3001
      %v3003 = vsel %vm2928, %v2997, %v3002
      %v3004 = vrot.slane %v402, 5
      %v3005 = vrot.slane %v405, 6
      %v3006 = vor.u32 %v3004, %v3005
      %v3007 = vrot.slane %v3006, 4
      %v3008 = vrot.slane %v415, 5
      %v3009 = vrot.slane %v411, 6
      %v3010 = vor.u32 %v3008, %v3009
      %v3011 = vsel %vm2928, %v3007, %v3010
      %v3012 = vrot.slane %v3010, 4
      %v3013 = vshrl.u32 %v195, 16
      %v3015 = vrot.slane %v3013, 5
      %v3016 = vrot.slane %v421, 6
      %v3017 = vor.u32 %v3015, %v3016
      %v3018 = vsel %vm2928, %v3012, %v3017
      %v3019 = vrot.slane %v426, 5
      %v3020 = vrot.slane %v429, 6
      %v3021 = vor.u32 %v3019, %v3020
      %v3022 = vrot.slane %v3021, 4
      %v3023 = vrot.slane %v439, 5
      %v3024 = vrot.slane %v435, 6
      %v3025 = vor.u32 %v3023, %v3024
      %v3026 = vsel %vm2928, %v3022, %v3025
      %v3027 = vrot.slane %v3025, 4
      %v3028 = vshrl.u32 %v198, 16
      %v3030 = vrot.slane %v3028, 5
      %v3031 = vrot.slane %v445, 6
      %v3032 = vor.u32 %v3030, %v3031
      %v3033 = vsel %vm2928, %v3027, %v3032
      %v3034 = vrot.slane %v450, 5
      %v3035 = vrot.slane %v453, 6
      %v3036 = vor.u32 %v3034, %v3035
      %v3037 = vrot.slane %v3036, 4
      %v3038 = vrot.slane %v463, 5
      %v3039 = vrot.slane %v459, 6
      %v3040 = vor.u32 %v3038, %v3039
      %v3041 = vsel %vm2928, %v3037, %v3040
      %v3042 = vrot.slane %v3040, 4
      %v3043 = vshrl.u32 %v201, 16
      %v3045 = vrot.slane %v3043, 5
      %v3046 = vrot.slane %v469, 6
      %v3047 = vor.u32 %v3045, %v3046
      %v3048 = vsel %vm2928, %v3042, %v3047
      %v3049 = vrot.slane %v474, 5
      %v3050 = vrot.slane %v477, 6
      %v3051 = vor.u32 %v3049, %v3050
      %v3052 = vrot.slane %v3051, 4
      %v3053 = vrot.slane %v487, 5
      %v3054 = vrot.slane %v483, 6
      %v3055 = vor.u32 %v3053, %v3054
      %v3056 = vsel %vm2928, %v3052, %v3055
      %v3057 = vrot.slane %v3055, 4
      %v3058 = vshrl.u32 %v204, 16
      %v3060 = vrot.slane %v3058, 5
      %v3061 = vrot.slane %v493, 6
      %v3062 = vor.u32 %v3060, %v3061
      %v3063 = vsel %vm2928, %v3057, %v3062
      %v3064 = vrot.slane %v498, 5
      %v3065 = vrot.slane %v501, 6
      %v3066 = vor.u32 %v3064, %v3065
      %v3067 = vrot.slane %v3066, 4
      %v3068 = vrot.slane %v511, 5
      %v3069 = vrot.slane %v507, 6
      %v3070 = vor.u32 %v3068, %v3069
      %v3071 = vsel %vm2928, %v3067, %v3070
      %v3072 = vrot.slane %v3070, 4
      %v3073 = vshrl.u32 %v207, 16
      %v3075 = vrot.slane %v3073, 5
      %v3076 = vrot.slane %v517, 6
      %v3077 = vor.u32 %v3075, %v3076
      %v3078 = vsel %vm2928, %v3072, %v3077
      %v3079 = vrot.slane %v522, 5
      %v3080 = vrot.slane %v525, 6
      %v3081 = vor.u32 %v3079, %v3080
      %v3082 = vrot.slane %v3081, 4
      %v3083 = vrot.slane %v535, 5
      %v3084 = vrot.slane %v531, 6
      %v3085 = vor.u32 %v3083, %v3084
      %v3086 = vsel %vm2928, %v3082, %v3085
      %v3087 = vrot.slane %v3085, 4
      %v3088 = vshrl.u32 %v210, 16
      %v3090 = vrot.slane %v3088, 5
      %v3091 = vrot.slane %v541, 6
      %v3092 = vor.u32 %v3090, %v3091
      %v3093 = vsel %vm2928, %v3087, %v3092
      %v3094 = vrot.slane %v546, 5
      %v3095 = vrot.slane %v549, 6
      %v3096 = vor.u32 %v3094, %v3095
      %v3097 = vrot.slane %v3096, 4
      %v3098 = vrot.slane %v559, 5
      %v3099 = vrot.slane %v555, 6
      %v3100 = vor.u32 %v3098, %v3099
      %v3101 = vsel %vm2928, %v3097, %v3100
      %v3102 = vrot.slane %v3100, 4
      %v3103 = vshrl.u32 %v213, 16
      %v3105 = vrot.slane %v3103, 5
      %v3106 = vrot.slane %v565, 6
      %v3107 = vor.u32 %v3105, %v3106
      %v3108 = vsel %vm2928, %v3102, %v3107
      %v3109 = vrot.slane %v570, 5
      %v3110 = vrot.slane %v573, 6
      %v3111 = vor.u32 %v3109, %v3110
      %v3112 = vrot.slane %v3111, 4
      %v3113 = vrot.slane %v583, 5
      %v3114 = vrot.slane %v579, 6
      %v3115 = vor.u32 %v3113, %v3114
      %v3116 = vsel %vm2928, %v3112, %v3115
      %v3117 = vrot.slane %v3115, 4
      %v3118 = vshrl.u32 %v216, 16
      %v3120 = vrot.slane %v3118, 5
      %v3121 = vrot.slane %v589, 6
      %v3122 = vor.u32 %v3120, %v3121
      %v3123 = vsel %vm2928, %v3117, %v3122
      %v3124 = vrot.slane %v594, 5
      %v3125 = vrot.slane %v597, 6
      %v3126 = vor.u32 %v3124, %v3125
      %v3127 = vrot.slane %v3126, 4
      %v3128 = vrot.slane %v607, 5
      %v3129 = vrot.slane %v603, 6
      %v3130 = vor.u32 %v3128, %v3129
      %v3131 = vsel %vm2928, %v3127, %v3130
      %v3132 = vrot.slane %v3130, 4
      %v3133 = vshrl.u32 %v219, 16
      %v3135 = vrot.slane %v3133, 5
      %v3136 = vrot.slane %v613, 6
      %v3137 = vor.u32 %v3135, %v3136
      %v3138 = vsel %vm2928, %v3132, %v3137
      %v3139 = vrot.slane %v618, 5
      %v3140 = vrot.slane %v621, 6
      %v3141 = vor.u32 %v3139, %v3140
      %v3142 = vrot.slane %v3141, 4
      %v3143 = vrot.slane %v631, 5
      %v3144 = vrot.slane %v627, 6
      %v3145 = vor.u32 %v3143, %v3144
      %v3146 = vsel %vm2928, %v3142, %v3145
      %v3147 = vrot.slane %v3145, 4
      %v3148 = vshrl.u32 %v222, 16
      %v3150 = vrot.slane %v3148, 5
      %v3151 = vrot.slane %v637, 6
      %v3152 = vor.u32 %v3150, %v3151
      %v3153 = vsel %vm2928, %v3147, %v3152
      %v3154 = vrot.slane %v642, 5
      %v3155 = vrot.slane %v645, 6
      %v3156 = vor.u32 %v3154, %v3155
      %v3157 = vrot.slane %v3156, 4
      %v3158 = vrot.slane %v655, 5
      %v3159 = vrot.slane %v651, 6
      %v3160 = vor.u32 %v3158, %v3159
      %v3161 = vsel %vm2928, %v3157, %v3160
      %v3162 = vrot.slane %v3160, 4
      %v3163 = vshrl.u32 %v225, 16
      %v3165 = vrot.slane %v3163, 5
      %v3166 = vrot.slane %v661, 6
      %v3167 = vor.u32 %v3165, %v3166
      %v3168 = vsel %vm2928, %v3162, %v3167
      %v3169 = vrot.slane %v666, 5
      %v3170 = vrot.slane %v669, 6
      %v3171 = vor.u32 %v3169, %v3170
      %v3172 = vrot.slane %v3171, 4
      %v3173 = vrot.slane %v679, 5
      %v3174 = vrot.slane %v675, 6
      %v3175 = vor.u32 %v3173, %v3174
      %v3176 = vsel %vm2928, %v3172, %v3175
      %v3177 = vrot.slane %v3175, 4
      %v3178 = vshrl.u32 %v228, 16
      %v3180 = vrot.slane %v3178, 5
      %v3181 = vrot.slane %v685, 6
      %v3182 = vor.u32 %v3180, %v3181
      %v3183 = vsel %vm2928, %v3177, %v3182
      %v3184 = vrot.slane %v690, 5
      %v3185 = vrot.slane %v693, 6
      %v3186 = vor.u32 %v3184, %v3185
      %v3187 = vrot.slane %v3186, 4
      %v3188 = vrot.slane %v703, 5
      %v3189 = vrot.slane %v699, 6
      %v3190 = vor.u32 %v3188, %v3189
      %v3191 = vsel %vm2928, %v3187, %v3190
      %v3192 = vrot.slane %v3190, 4
      %v3193 = vshrl.u32 %v231, 16
      %v3195 = vrot.slane %v3193, 5
      %v3196 = vrot.slane %v709, 6
      %v3197 = vor.u32 %v3195, %v3196
      %v3198 = vsel %vm2928, %v3192, %v3197
      %v3199 = vrot.slane %v714, 5
      %v3200 = vrot.slane %v717, 6
      %v3201 = vor.u32 %v3199, %v3200
      %v3202 = vrot.slane %v3201, 4
      %v3203 = vrot.slane %v727, 5
      %v3204 = vrot.slane %v723, 6
      %v3205 = vor.u32 %v3203, %v3204
      %v3206 = vsel %vm2928, %v3202, %v3205
      %v3207 = vrot.slane %v3205, 4
      %v3208 = vshrl.u32 %v234, 16
      %v3210 = vrot.slane %v3208, 5
      %v3211 = vrot.slane %v733, 6
      %v3212 = vor.u32 %v3210, %v3211
      %v3213 = vsel %vm2928, %v3207, %v3212
      %v3214 = vrot.slane %v738, 5
      %v3215 = vrot.slane %v741, 6
      %v3216 = vor.u32 %v3214, %v3215
      %v3217 = vrot.slane %v3216, 4
      %v3218 = vrot.slane %v751, 5
      %v3219 = vrot.slane %v747, 6
      %v3220 = vor.u32 %v3218, %v3219
      %v3221 = vsel %vm2928, %v3217, %v3220
      %v3222 = vrot.slane %v3220, 4
      %v3223 = vshrl.u32 %v237, 16
      %v3225 = vrot.slane %v3223, 5
      %v3226 = vrot.slane %v757, 6
      %v3227 = vor.u32 %v3225, %v3226
      %v3228 = vsel %vm2928, %v3222, %v3227
      %v3229 = vrot.slane %v762, 5
      %v3230 = vrot.slane %v765, 6
      %v3231 = vor.u32 %v3229, %v3230
      %v3232 = vrot.slane %v3231, 4
      %v3233 = vrot.slane %v775, 5
      %v3234 = vrot.slane %v771, 6
      %v3235 = vor.u32 %v3233, %v3234
      %v3236 = vsel %vm2928, %v3232, %v3235
      %v3237 = vrot.slane %v3235, 4
      %v3238 = vshrl.u32 %v240, 16
      %v3240 = vrot.slane %v3238, 5
      %v3241 = vrot.slane %v781, 6
      %v3242 = vor.u32 %v3240, %v3241
      %v3243 = vsel %vm2928, %v3237, %v3242
      %v3244 = vrot.slane %v786, 5
      %v3245 = vrot.slane %v789, 6
      %v3246 = vor.u32 %v3244, %v3245
      %v3247 = vrot.slane %v3246, 4
      %v3248 = vrot.slane %v799, 5
      %v3249 = vrot.slane %v795, 6
      %v3250 = vor.u32 %v3248, %v3249
      %v3251 = vsel %vm2928, %v3247, %v3250
      %v3252 = vrot.slane %v3250, 4
      %v3253 = vshrl.u32 %v243, 16
      %v3255 = vrot.slane %v3253, 5
      %v3256 = vrot.slane %v805, 6
      %v3257 = vor.u32 %v3255, %v3256
      %v3258 = vsel %vm2928, %v3252, %v3257
      %v3259 = vrot.slane %v810, 5
      %v3260 = vrot.slane %v813, 6
      %v3261 = vor.u32 %v3259, %v3260
      %v3262 = vrot.slane %v3261, 4
      %v3263 = vrot.slane %v823, 5
      %v3264 = vrot.slane %v819, 6
      %v3265 = vor.u32 %v3263, %v3264
      %v3266 = vsel %vm2928, %v3262, %v3265
      %v3267 = vrot.slane %v3265, 4
      %v3268 = vshrl.u32 %v246, 16
      %v3270 = vrot.slane %v3268, 5
      %v3271 = vrot.slane %v829, 6
      %v3272 = vor.u32 %v3270, %v3271
      %v3273 = vsel %vm2928, %v3267, %v3272
      %v3274 = vrot.slane %v834, 5
      %v3275 = vrot.slane %v837, 6
      %v3276 = vor.u32 %v3274, %v3275
      %v3277 = vrot.slane %v3276, 4
      %v3278 = vrot.slane %v847, 5
      %v3279 = vrot.slane %v843, 6
      %v3280 = vor.u32 %v3278, %v3279
      %v3281 = vsel %vm2928, %v3277, %v3280
      %v3282 = vrot.slane %v3280, 4
      %v3283 = vshrl.u32 %v249, 16
      %v3285 = vrot.slane %v3283, 5
      %v3286 = vrot.slane %v853, 6
      %v3287 = vor.u32 %v3285, %v3286
      %v3288 = vsel %vm2928, %v3282, %v3287
      %v3289 = vrot.slane %v858, 5
      %v3290 = vrot.slane %v861, 6
      %v3291 = vor.u32 %v3289, %v3290
      %v3292 = vrot.slane %v3291, 4
      %v3293 = vrot.slane %v871, 5
      %v3294 = vrot.slane %v867, 6
      %v3295 = vor.u32 %v3293, %v3294
      %v3296 = vsel %vm2928, %v3292, %v3295
      %v3297 = vrot.slane %v3295, 4
      %v3298 = vshrl.u32 %v252, 16
      %v3300 = vrot.slane %v3298, 5
      %v3301 = vrot.slane %v877, 6
      %v3302 = vor.u32 %v3300, %v3301
      %v3303 = vsel %vm2928, %v3297, %v3302
      %v3304 = vrot.slane %v882, 5
      %v3305 = vrot.slane %v885, 6
      %v3306 = vor.u32 %v3304, %v3305
      %v3307 = vrot.slane %v3306, 4
      %v3308 = vrot.slane %v895, 5
      %v3309 = vrot.slane %v891, 6
      %v3310 = vor.u32 %v3308, %v3309
      %v3311 = vsel %vm2928, %v3307, %v3310
      %v3312 = vrot.slane %v3310, 4
      %v3313 = vshrl.u32 %v255, 16
      %v3315 = vrot.slane %v3313, 5
      %v3316 = vrot.slane %v901, 6
      %v3317 = vor.u32 %v3315, %v3316
      %v3318 = vsel %vm2928, %v3312, %v3317
      %v3319 = vrot.slane %v906, 5
      %v3320 = vrot.slane %v909, 6
      %v3321 = vor.u32 %v3319, %v3320
      %v3322 = vrot.slane %v3321, 4
      %v3323 = vrot.slane %v919, 5
      %v3324 = vrot.slane %v915, 6
      %v3325 = vor.u32 %v3323, %v3324
      %v3326 = vsel %vm2928, %v3322, %v3325
      %v3327 = vrot.slane %v3325, 4
      %v3328 = vshrl.u32 %v258, 16
      %v3330 = vrot.slane %v3328, 5
      %v3331 = vrot.slane %v925, 6
      %v3332 = vor.u32 %v3330, %v3331
      %v3333 = vsel %vm2928, %v3327, %v3332
      %v3334 = vrot.slane %v930, 5
      %v3335 = vrot.slane %v933, 6
      %v3336 = vor.u32 %v3334, %v3335
      %v3337 = vrot.slane %v3336, 4
      %v3338 = vrot.slane %v943, 5
      %v3339 = vrot.slane %v939, 6
      %v3340 = vor.u32 %v3338, %v3339
      %v3341 = vsel %vm2928, %v3337, %v3340
      %v3342 = vrot.slane %v3340, 4
      %v3343 = vshrl.u32 %v261, 16
      %v3345 = vrot.slane %v3343, 5
      %v3346 = vrot.slane %v949, 6
      %v3347 = vor.u32 %v3345, %v3346
      %v3348 = vsel %vm2928, %v3342, %v3347
      %v3349 = vrot.slane %v954, 5
      %v3350 = vrot.slane %v957, 6
      %v3351 = vor.u32 %v3349, %v3350
      %v3352 = vrot.slane %v3351, 4
      %v3353 = vrot.slane %v967, 5
      %v3354 = vrot.slane %v963, 6
      %v3355 = vor.u32 %v3353, %v3354
      %v3356 = vsel %vm2928, %v3352, %v3355
      %v3357 = vrot.slane %v3355, 4
      %v3358 = vshrl.u32 %v264, 16
      %v3360 = vrot.slane %v3358, 5
      %v3361 = vrot.slane %v973, 6
      %v3362 = vor.u32 %v3360, %v3361
      %v3363 = vsel %vm2928, %v3357, %v3362
      %v3364 = vrot.slane %v978, 5
      %v3365 = vrot.slane %v981, 6
      %v3366 = vor.u32 %v3364, %v3365
      %v3367 = vrot.slane %v3366, 4
      %v3368 = vrot.slane %v991, 5
      %v3369 = vrot.slane %v987, 6
      %v3370 = vor.u32 %v3368, %v3369
      %v3371 = vsel %vm2928, %v3367, %v3370
      %v3372 = vrot.slane %v3370, 4
      %v3373 = vshrl.u32 %v267, 16
      %v3375 = vrot.slane %v3373, 5
      %v3376 = vrot.slane %v997, 6
      %v3377 = vor.u32 %v3375, %v3376
      %v3378 = vsel %vm2928, %v3372, %v3377
      %v3379 = vrot.slane %v1002, 5
      %v3380 = vrot.slane %v1005, 6
      %v3381 = vor.u32 %v3379, %v3380
      %v3382 = vrot.slane %v3381, 4
      %v3383 = vrot.slane %v1015, 5
      %v3384 = vrot.slane %v1011, 6
      %v3385 = vor.u32 %v3383, %v3384
      %v3386 = vsel %vm2928, %v3382, %v3385
      %v3387 = vrot.slane %v3385, 4
      %v3388 = vshrl.u32 %v270, 16
      %v3390 = vrot.slane %v3388, 5
      %v3391 = vrot.slane %v1021, 6
      %v3392 = vor.u32 %v3390, %v3391
      %v3393 = vsel %vm2928, %v3387, %v3392
      %v3394 = vrot.slane %v1026, 5
      %v3395 = vrot.slane %v1029, 6
      %v3396 = vor.u32 %v3394, %v3395
      %v3397 = vrot.slane %v3396, 4
      %v3398 = vrot.slane %v1039, 5
      %v3399 = vrot.slane %v1035, 6
      %v3400 = vor.u32 %v3398, %v3399
      %v3401 = vsel %vm2928, %v3397, %v3400
      %v3402 = vrot.slane %v3400, 4
      %v3403 = vshrl.u32 %v273, 16
      %v3405 = vrot.slane %v3403, 5
      %v3406 = vrot.slane %v1045, 6
      %v3407 = vor.u32 %v3405, %v3406
      %v3408 = vsel %vm2928, %v3402, %v3407
      %s3409 = scalar_lea.vmem %s1, 48
      %v3410 = vld [vmem:[%s3409] sm:$0xf]
      %v3411 = vld [vmem:[%s3409 + $0x4] sm:$0xf]
      %v3412 = vld [vmem:[%s3409 + $0x8] sm:$0xf]
      %v3413 = vld [vmem:[%s3409 + $0xc] sm:$0xf]
      %v3414 = vunpack.c.l.b16 %v2936
      %v3415 = vunpack.c.l.b16 %v2943
      %v3416 = vunpack.c.l.b16 %v2951
      %v3417 = vunpack.c.l.b16 %v2958
      %v3418 = vunpack.c.l.b16 %v2966
      %v3419 = vunpack.c.l.b16 %v2973
      %v3420 = vunpack.c.l.b16 %v2981
      %v3421 = vunpack.c.l.b16 %v2988
      %v3422 = vunpack.c.l.b16 %v2996
      %v3423 = vunpack.c.l.b16 %v3003
      %v3424 = vunpack.c.l.b16 %v3011
      %v3425 = vunpack.c.l.b16 %v3018
      %v3426 = vunpack.c.l.b16 %v3026
      %v3427 = vunpack.c.l.b16 %v3033
      %v3428 = vunpack.c.l.b16 %v3041
      %v3429 = vunpack.c.l.b16 %v3048
      %v3430 = vunpack.c.l.b16 %v3056
      %v3431 = vunpack.c.l.b16 %v3063
      %v3432 = vunpack.c.l.b16 %v3071
      %v3433 = vunpack.c.l.b16 %v3078
      %v3434 = vunpack.c.l.b16 %v3086
      %v3435 = vunpack.c.l.b16 %v3093
      %v3436 = vunpack.c.l.b16 %v3101
      %v3437 = vunpack.c.l.b16 %v3108
      %v3438 = vunpack.c.l.b16 %v3116
      %v3439 = vunpack.c.l.b16 %v3123
      %v3440 = vunpack.c.l.b16 %v3131
      %v3441 = vunpack.c.l.b16 %v3138
      %v3442 = vunpack.c.l.b16 %v3146
      %v3443 = vunpack.c.l.b16 %v3153
      %v3444 = vunpack.c.l.b16 %v3161
      %v3445 = vunpack.c.l.b16 %v3168
      %v3446 = vunpack.c.l.b16 %v3176
      %v3447 = vunpack.c.l.b16 %v3183
      %v3448 = vunpack.c.l.b16 %v3191
      %v3449 = vunpack.c.l.b16 %v3198
      %v3450 = vunpack.c.l.b16 %v3206
      %v3451 = vunpack.c.l.b16 %v3213
      %v3452 = vunpack.c.l.b16 %v3221
      %v3453 = vunpack.c.l.b16 %v3228
      %v3454 = vunpack.c.l.b16 %v3236
      %v3455 = vunpack.c.l.b16 %v3243
      %v3456 = vunpack.c.l.b16 %v3251
      %v3457 = vunpack.c.l.b16 %v3258
      %v3458 = vunpack.c.l.b16 %v3266
      %v3459 = vunpack.c.l.b16 %v3273
      %v3460 = vunpack.c.l.b16 %v3281
      %v3461 = vunpack.c.l.b16 %v3288
      %v3462 = vunpack.c.l.b16 %v3296
      %v3463 = vunpack.c.l.b16 %v3303
      %v3464 = vunpack.c.l.b16 %v3311
      %v3465 = vunpack.c.l.b16 %v3318
      %v3466 = vunpack.c.l.b16 %v3326
      %v3467 = vunpack.c.l.b16 %v3333
      %v3468 = vunpack.c.l.b16 %v3341
      %v3469 = vunpack.c.l.b16 %v3348
      %v3470 = vunpack.c.l.b16 %v3356
      %v3471 = vunpack.c.l.b16 %v3363
      %v3472 = vunpack.c.l.b16 %v3371
      %v3473 = vunpack.c.l.b16 %v3378
      %v3474 = vunpack.c.l.b16 %v3386
      %v3475 = vunpack.c.l.b16 %v3393
      %v3476 = vunpack.c.l.b16 %v3401
      %v3477 = vunpack.c.l.b16 %v3408
      %v3478 = vpack.c.b16 %v3415, %v3414
      %v3479 = vpack.c.b16 %v3417, %v3416
      %v3480 = vpack.c.b16 %v3419, %v3418
      %v3481 = vpack.c.b16 %v3421, %v3420
      %v3482 = vpack.c.b16 %v3423, %v3422
      %v3483 = vpack.c.b16 %v3425, %v3424
      %v3484 = vpack.c.b16 %v3427, %v3426
      %v3485 = vpack.c.b16 %v3429, %v3428
      %v3486 = vpack.c.b16 %v3431, %v3430
      %v3487 = vpack.c.b16 %v3433, %v3432
      %v3488 = vpack.c.b16 %v3435, %v3434
      %v3489 = vpack.c.b16 %v3437, %v3436
      %v3490 = vpack.c.b16 %v3439, %v3438
      %v3491 = vpack.c.b16 %v3441, %v3440
      %v3492 = vpack.c.b16 %v3443, %v3442
      %v3493 = vpack.c.b16 %v3445, %v3444
      %v3494 = vpack.c.b16 %v3447, %v3446
      %v3495 = vpack.c.b16 %v3449, %v3448
      %v3496 = vpack.c.b16 %v3451, %v3450
      %v3497 = vpack.c.b16 %v3453, %v3452
      %v3498 = vpack.c.b16 %v3455, %v3454
      %v3499 = vpack.c.b16 %v3457, %v3456
      %v3500 = vpack.c.b16 %v3459, %v3458
      %v3501 = vpack.c.b16 %v3461, %v3460
      %v3502 = vpack.c.b16 %v3463, %v3462
      %v3503 = vpack.c.b16 %v3465, %v3464
      %v3504 = vpack.c.b16 %v3467, %v3466
      %v3505 = vpack.c.b16 %v3469, %v3468
      %v3506 = vpack.c.b16 %v3471, %v3470
      %v3507 = vpack.c.b16 %v3473, %v3472
      %v3508 = vpack.c.b16 %v3475, %v3474
      %v3509 = vpack.c.b16 %v3477, %v3476
      %v3514 = vunpack.c.l.b16 %v3410
      %v3515 = vunpack.c.l.b16 %v3411
      %v3516 = vunpack.c.l.b16 %v3412
      %v3517 = vunpack.c.l.b16 %v3413
      %v3518 = vpack.c.b16 %v3515, %v3514
      %v3519 = vpack.c.b16 %v3517, %v3516
      %v3523 = vsel %vm1162, %v3478, 0
      %v3526 = vsel %vm1162, %v3479, 0
      %v3529 = vsel %vm1162, %v3480, 0
      %v3532 = vsel %vm1162, %v3481, 0
      %v3535 = vsel %vm1162, %v3482, 0
      %v3538 = vsel %vm1162, %v3483, 0
      %v3541 = vsel %vm1162, %v3484, 0
      %v3544 = vsel %vm1162, %v3485, 0
      %v3547 = vsel %vm1162, %v3486, 0
      %v3550 = vsel %vm1162, %v3487, 0
      %v3553 = vsel %vm1162, %v3488, 0
      %v3556 = vsel %vm1162, %v3489, 0
      %v3559 = vsel %vm1162, %v3490, 0
      %v3562 = vsel %vm1162, %v3491, 0
      %v3565 = vsel %vm1162, %v3492, 0
      %v3568 = vsel %vm1162, %v3493, 0
      %v3571 = vsel %vm1162, %v3494, 0
      %v3574 = vsel %vm1162, %v3495, 0
      %v3577 = vsel %vm1162, %v3496, 0
      %v3580 = vsel %vm1162, %v3497, 0
      %v3583 = vsel %vm1162, %v3498, 0
      %v3586 = vsel %vm1162, %v3499, 0
      %v3589 = vsel %vm1162, %v3500, 0
      %v3592 = vsel %vm1162, %v3501, 0
      %v3595 = vsel %vm1162, %v3502, 0
      %v3598 = vsel %vm1162, %v3503, 0
      %v3601 = vsel %vm1162, %v3504, 0
      %v3604 = vsel %vm1162, %v3505, 0
      %v3607 = vsel %vm1162, %v3506, 0
      %v3610 = vsel %vm1162, %v3507, 0
      %v3613 = vsel %vm1162, %v3508, 0
      %v3616 = vsel %vm1162, %v3509, 0
      %3618 = vmatprep.subr.bf16.mxu0 0
      %3619 = vmatpush1.bf16.msra.mxu0 %v3518
      %3620 = vmatprep.subr.bf16.mxu0 0
      %3621 = vmatpush1.bf16.msra.mxu0 %v3519
      %3622 = vmatprep.subr.bf16.mxu0 0
      %3623 = vmatpush1.bf16.msra.mxu0 0
      %3624 = vmatprep.subr.bf16.mxu0 0
      %3625 = vmatpush1.bf16.msra.mxu0 0
      %3626 = vmatprep.subr.bf16.mxu0 0
      %3627 = vmatpush1.bf16.msra.mxu0 0
      %3628 = vmatprep.subr.bf16.mxu0 0
      %3629 = vmatpush1.bf16.msra.mxu0 0
      %3630 = vmatprep.subr.bf16.mxu0 0
      %3631 = vmatpush1.bf16.msra.mxu0 0
      %3632 = vmatprep.subr.bf16.mxu0 0
      %3633 = vmatpush1.bf16.msra.mxu0 0
      %3634 = vmatprep.subr.bf16.mxu0 0
      %3635 = vmatpush1.bf16.msra.mxu0 0
      %3636 = vmatprep.subr.bf16.mxu0 0
      %3637 = vmatpush1.bf16.msra.mxu0 0
      %3638 = vmatprep.subr.bf16.mxu0 0
      %3639 = vmatpush1.bf16.msra.mxu0 0
      %3640 = vmatprep.subr.bf16.mxu0 0
      %3641 = vmatpush1.bf16.msra.mxu0 0
      %3642 = vmatprep.subr.bf16.mxu0 0
      %3643 = vmatpush1.bf16.msra.mxu0 0
      %3644 = vmatprep.subr.bf16.mxu0 0
      %3645 = vmatpush1.bf16.msra.mxu0 0
      %3646 = vmatprep.subr.bf16.mxu0 0
      %3647 = vmatpush1.bf16.msra.mxu0 0
      %3648 = vmatprep.subr.bf16.mxu0 0
      %3649 = vmatpush1.bf16.msra.mxu0 0
      %3650 = vmatprep.mubr.bf16.mxu0 0
      %3651 = vmatmul.mubr.bf16.gmra.mrb[0].mxu0 %v3523
      %v3652 = vpop.f32.mrb[0].mxu0
      %v3653 = vadd.f32 0.0, %v3652
      %v3654 = vpop.f32.mrb[0].mxu0
      %v3655 = vpop.f32.mrb[0].mxu0
      %v3656 = vadd.f32 0.0, %v3655
      %v3657 = vpop.f32.mrb[0].mxu0
      %3658 = vmatprep.mubr.bf16.mxu0 0
      %3659 = vmatmul.mubr.bf16.gmra.mrb[0].mxu0 %v3526
      %v3660 = vpop.f32.mrb[0].mxu0
      %v3661 = vadd.f32 0.0, %v3660
      %v3662 = vpop.f32.mrb[0].mxu0
      %v3663 = vpop.f32.mrb[0].mxu0
      %v3664 = vadd.f32 0.0, %v3663
      %v3665 = vpop.f32.mrb[0].mxu0
      %3666 = vmatprep.mubr.bf16.mxu0 0
      %3667 = vmatmul.mubr.bf16.gmra.mrb[0].mxu0 %v3529
      %v3668 = vpop.f32.mrb[0].mxu0
      %v3669 = vadd.f32 0.0, %v3668
      %v3670 = vpop.f32.mrb[0].mxu0
      %v3671 = vpop.f32.mrb[0].mxu0
      %v3672 = vadd.f32 0.0, %v3671
      %v3673 = vpop.f32.mrb[0].mxu0
      %3674 = vmatprep.mubr.bf16.mxu0 0
      %3675 = vmatmul.mubr.bf16.gmra.mrb[0].mxu0 %v3532
      %v3676 = vpop.f32.mrb[0].mxu0
      %v3677 = vadd.f32 0.0, %v3676
      %v3678 = vpop.f32.mrb[0].mxu0
      %v3679 = vpop.f32.mrb[0].mxu0
      %v3680 = vadd.f32 0.0, %v3679
      %v3681 = vpop.f32.mrb[0].mxu0
      %3682 = vmatprep.mubr.bf16.mxu0 0
      %3683 = vmatmul.mubr.bf16.gmra.mrb[0].mxu0 %v3535
      %v3684 = vpop.f32.mrb[0].mxu0
      %v3685 = vadd.f32 0.0, %v3684
      %v3686 = vpop.f32.mrb[0].mxu0
      %v3687 = vpop.f32.mrb[0].mxu0
      %v3688 = vadd.f32 0.0, %v3687
      %v3689 = vpop.f32.mrb[0].mxu0
      %3690 = vmatprep.mubr.bf16.mxu0 0
      %3691 = vmatmul.mubr.bf16.gmra.mrb[0].mxu0 %v3538
      %v3692 = vpop.f32.mrb[0].mxu0
      %v3693 = vadd.f32 0.0, %v3692
      %v3694 = vpop.f32.mrb[0].mxu0
      %v3695 = vpop.f32.mrb[0].mxu0
      %v3696 = vadd.f32 0.0, %v3695
      %v3697 = vpop.f32.mrb[0].mxu0
      %3698 = vmatprep.mubr.bf16.mxu0 0
      %3699 = vmatmul.mubr.bf16.gmra.mrb[0].mxu0 %v3541
      %v3700 = vpop.f32.mrb[0].mxu0
      %v3701 = vadd.f32 0.0, %v3700
      %v3702 = vpop.f32.mrb[0].mxu0
      %v3703 = vpop.f32.mrb[0].mxu0
      %v3704 = vadd.f32 0.0, %v3703
      %v3705 = vpop.f32.mrb[0].mxu0
      %3706 = vmatprep.mubr.bf16.mxu0 0
      %3707 = vmatmul.mubr.bf16.gmra.mrb[0].mxu0 %v3544
      %v3708 = vpop.f32.mrb[0].mxu0
      %v3709 = vadd.f32 0.0, %v3708
      %v3710 = vpop.f32.mrb[0].mxu0
      %v3711 = vpop.f32.mrb[0].mxu0
      %v3712 = vadd.f32 0.0, %v3711
      %v3713 = vpop.f32.mrb[0].mxu0
      %3714 = vmatprep.mubr.bf16.mxu0 0
      %3715 = vmatmul.mubr.bf16.gmra.mrb[0].mxu0 %v3547
      %v3716 = vpop.f32.mrb[0].mxu0
      %v3717 = vadd.f32 0.0, %v3716
      %v3718 = vpop.f32.mrb[0].mxu0
      %v3719 = vpop.f32.mrb[0].mxu0
      %v3720 = vadd.f32 0.0, %v3719
      %v3721 = vpop.f32.mrb[0].mxu0
      %3722 = vmatprep.mubr.bf16.mxu0 0
      %3723 = vmatmul.mubr.bf16.gmra.mrb[0].mxu0 %v3550
      %v3724 = vpop.f32.mrb[0].mxu0
      %v3725 = vadd.f32 0.0, %v3724
      %v3726 = vpop.f32.mrb[0].mxu0
      %v3727 = vpop.f32.mrb[0].mxu0
      %v3728 = vadd.f32 0.0, %v3727
      %v3729 = vpop.f32.mrb[0].mxu0
      %3730 = vmatprep.mubr.bf16.mxu0 0
      %3731 = vmatmul.mubr.bf16.gmra.mrb[0].mxu0 %v3553
      %v3732 = vpop.f32.mrb[0].mxu0
      %v3733 = vadd.f32 0.0, %v3732
      %v3734 = vpop.f32.mrb[0].mxu0
      %v3735 = vpop.f32.mrb[0].mxu0
      %v3736 = vadd.f32 0.0, %v3735
      %v3737 = vpop.f32.mrb[0].mxu0
      %3738 = vmatprep.mubr.bf16.mxu0 0
      %3739 = vmatmul.mubr.bf16.gmra.mrb[0].mxu0 %v3556
      %v3740 = vpop.f32.mrb[0].mxu0
      %v3741 = vadd.f32 0.0, %v3740
      %v3742 = vpop.f32.mrb[0].mxu0
      %v3743 = vpop.f32.mrb[0].mxu0
      %v3744 = vadd.f32 0.0, %v3743
      %v3745 = vpop.f32.mrb[0].mxu0
      %3746 = vmatprep.mubr.bf16.mxu0 0
      %3747 = vmatmul.mubr.bf16.gmra.mrb[0].mxu0 %v3559
      %v3748 = vpop.f32.mrb[0].mxu0
      %v3749 = vadd.f32 0.0, %v3748
      %v3750 = vpop.f32.mrb[0].mxu0
      %v3751 = vpop.f32.mrb[0].mxu0
      %v3752 = vadd.f32 0.0, %v3751
      %v3753 = vpop.f32.mrb[0].mxu0
      %3754 = vmatprep.mubr.bf16.mxu0 0
      %3755 = vmatmul.mubr.bf16.gmra.mrb[0].mxu0 %v3562
      %v3756 = vpop.f32.mrb[0].mxu0
      %v3757 = vadd.f32 0.0, %v3756
      %v3758 = vpop.f32.mrb[0].mxu0
      %v3759 = vpop.f32.mrb[0].mxu0
      %v3760 = vadd.f32 0.0, %v3759
      %v3761 = vpop.f32.mrb[0].mxu0
      %3762 = vmatprep.mubr.bf16.mxu0 0
      %3763 = vmatmul.mubr.bf16.gmra.mrb[0].mxu0 %v3565
      %v3764 = vpop.f32.mrb[0].mxu0
      %v3765 = vadd.f32 0.0, %v3764
      %v3766 = vpop.f32.mrb[0].mxu0
      %v3767 = vpop.f32.mrb[0].mxu0
      %v3768 = vadd.f32 0.0, %v3767
      %v3769 = vpop.f32.mrb[0].mxu0
      %3770 = vmatprep.mubr.bf16.mxu0 0
      %3771 = vmatmul.mubr.bf16.gmra.mrb[0].mxu0 %v3568
      %v3772 = vpop.f32.mrb[0].mxu0
      %v3773 = vadd.f32 0.0, %v3772
      %v3774 = vpop.f32.mrb[0].mxu0
      %v3775 = vpop.f32.mrb[0].mxu0
      %v3776 = vadd.f32 0.0, %v3775
      %v3777 = vpop.f32.mrb[0].mxu0
      %3778 = vmatprep.mubr.bf16.mxu0 0
      %3779 = vmatmul.mubr.bf16.gmra.mrb[0].mxu0 %v3571
      %v3780 = vpop.f32.mrb[0].mxu0
      %v3781 = vadd.f32 0.0, %v3780
      %v3782 = vpop.f32.mrb[0].mxu0
      %v3783 = vpop.f32.mrb[0].mxu0
      %v3784 = vadd.f32 0.0, %v3783
      %v3785 = vpop.f32.mrb[0].mxu0
      %3786 = vmatprep.mubr.bf16.mxu0 0
      %3787 = vmatmul.mubr.bf16.gmra.mrb[0].mxu0 %v3574
      %v3788 = vpop.f32.mrb[0].mxu0
      %v3789 = vadd.f32 0.0, %v3788
      %v3790 = vpop.f32.mrb[0].mxu0
      %v3791 = vpop.f32.mrb[0].mxu0
      %v3792 = vadd.f32 0.0, %v3791
      %v3793 = vpop.f32.mrb[0].mxu0
      %3794 = vmatprep.mubr.bf16.mxu0 0
      %3795 = vmatmul.mubr.bf16.gmra.mrb[0].mxu0 %v3577
      %v3796 = vpop.f32.mrb[0].mxu0
      %v3797 = vadd.f32 0.0, %v3796
      %v3798 = vpop.f32.mrb[0].mxu0
      %v3799 = vpop.f32.mrb[0].mxu0
      %v3800 = vadd.f32 0.0, %v3799
      %v3801 = vpop.f32.mrb[0].mxu0
      %3802 = vmatprep.mubr.bf16.mxu0 0
      %3803 = vmatmul.mubr.bf16.gmra.mrb[0].mxu0 %v3580
      %v3804 = vpop.f32.mrb[0].mxu0
      %v3805 = vadd.f32 0.0, %v3804
      %v3806 = vpop.f32.mrb[0].mxu0
      %v3807 = vpop.f32.mrb[0].mxu0
      %v3808 = vadd.f32 0.0, %v3807
      %v3809 = vpop.f32.mrb[0].mxu0
      %3810 = vmatprep.mubr.bf16.mxu0 0
      %3811 = vmatmul.mubr.bf16.gmra.mrb[0].mxu0 %v3583
      %v3812 = vpop.f32.mrb[0].mxu0
      %v3813 = vadd.f32 0.0, %v3812
      %v3814 = vpop.f32.mrb[0].mxu0
      %v3815 = vpop.f32.mrb[0].mxu0
      %v3816 = vadd.f32 0.0, %v3815
      %v3817 = vpop.f32.mrb[0].mxu0
      %3818 = vmatprep.mubr.bf16.mxu0 0
      %3819 = vmatmul.mubr.bf16.gmra.mrb[0].mxu0 %v3586
      %v3820 = vpop.f32.mrb[0].mxu0
      %v3821 = vadd.f32 0.0, %v3820
      %v3822 = vpop.f32.mrb[0].mxu0
      %v3823 = vpop.f32.mrb[0].mxu0
      %v3824 = vadd.f32 0.0, %v3823
      %v3825 = vpop.f32.mrb[0].mxu0
      %3826 = vmatprep.mubr.bf16.mxu0 0
      %3827 = vmatmul.mubr.bf16.gmra.mrb[0].mxu0 %v3589
      %v3828 = vpop.f32.mrb[0].mxu0
      %v3829 = vadd.f32 0.0, %v3828
      %v3830 = vpop.f32.mrb[0].mxu0
      %v3831 = vpop.f32.mrb[0].mxu0
      %v3832 = vadd.f32 0.0, %v3831
      %v3833 = vpop.f32.mrb[0].mxu0
      %3834 = vmatprep.mubr.bf16.mxu0 0
      %3835 = vmatmul.mubr.bf16.gmra.mrb[0].mxu0 %v3592
      %v3836 = vpop.f32.mrb[0].mxu0
      %v3837 = vadd.f32 0.0, %v3836
      %v3838 = vpop.f32.mrb[0].mxu0
      %v3839 = vpop.f32.mrb[0].mxu0
      %v3840 = vadd.f32 0.0, %v3839
      %v3841 = vpop.f32.mrb[0].mxu0
      %3842 = vmatprep.mubr.bf16.mxu0 0
      %3843 = vmatmul.mubr.bf16.gmra.mrb[0].mxu0 %v3595
      %v3844 = vpop.f32.mrb[0].mxu0
      %v3845 = vadd.f32 0.0, %v3844
      %v3846 = vpop.f32.mrb[0].mxu0
      %v3847 = vpop.f32.mrb[0].mxu0
      %v3848 = vadd.f32 0.0, %v3847
      %v3849 = vpop.f32.mrb[0].mxu0
      %3850 = vmatprep.mubr.bf16.mxu0 0
      %3851 = vmatmul.mubr.bf16.gmra.mrb[0].mxu0 %v3598
      %v3852 = vpop.f32.mrb[0].mxu0
      %v3853 = vadd.f32 0.0, %v3852
      %v3854 = vpop.f32.mrb[0].mxu0
      %v3855 = vpop.f32.mrb[0].mxu0
      %v3856 = vadd.f32 0.0, %v3855
      %v3857 = vpop.f32.mrb[0].mxu0
      %3858 = vmatprep.mubr.bf16.mxu0 0
      %3859 = vmatmul.mubr.bf16.gmra.mrb[0].mxu0 %v3601
      %v3860 = vpop.f32.mrb[0].mxu0
      %v3861 = vadd.f32 0.0, %v3860
      %v3862 = vpop.f32.mrb[0].mxu0
      %v3863 = vpop.f32.mrb[0].mxu0
      %v3864 = vadd.f32 0.0, %v3863
      %v3865 = vpop.f32.mrb[0].mxu0
      %3866 = vmatprep.mubr.bf16.mxu0 0
      %3867 = vmatmul.mubr.bf16.gmra.mrb[0].mxu0 %v3604
      %v3868 = vpop.f32.mrb[0].mxu0
      %v3869 = vadd.f32 0.0, %v3868
      %v3870 = vpop.f32.mrb[0].mxu0
      %v3871 = vpop.f32.mrb[0].mxu0
      %v3872 = vadd.f32 0.0, %v3871
      %v3873 = vpop.f32.mrb[0].mxu0
      %3874 = vmatprep.mubr.bf16.mxu0 0
      %3875 = vmatmul.mubr.bf16.gmra.mrb[0].mxu0 %v3607
      %v3876 = vpop.f32.mrb[0].mxu0
      %v3877 = vadd.f32 0.0, %v3876
      %v3878 = vpop.f32.mrb[0].mxu0
      %v3879 = vpop.f32.mrb[0].mxu0
      %v3880 = vadd.f32 0.0, %v3879
      %v3881 = vpop.f32.mrb[0].mxu0
      %3882 = vmatprep.mubr.bf16.mxu0 0
      %3883 = vmatmul.mubr.bf16.gmra.mrb[0].mxu0 %v3610
      %v3884 = vpop.f32.mrb[0].mxu0
      %v3885 = vadd.f32 0.0, %v3884
      %v3886 = vpop.f32.mrb[0].mxu0
      %v3887 = vpop.f32.mrb[0].mxu0
      %v3888 = vadd.f32 0.0, %v3887
      %v3889 = vpop.f32.mrb[0].mxu0
      %3890 = vmatprep.mubr.bf16.mxu0 0
      %3891 = vmatmul.mubr.bf16.gmra.mrb[0].mxu0 %v3613
      %v3892 = vpop.f32.mrb[0].mxu0
      %v3893 = vadd.f32 0.0, %v3892
      %v3894 = vpop.f32.mrb[0].mxu0
      %v3895 = vpop.f32.mrb[0].mxu0
      %v3896 = vadd.f32 0.0, %v3895
      %v3897 = vpop.f32.mrb[0].mxu0
      %3898 = vmatprep.mubr.bf16.mxu0 0
      %3899 = vmatmul.mubr.bf16.gmra.mrb[0].mxu0 %v3616
      %v3900 = vpop.f32.mrb[0].mxu0
      %v3901 = vadd.f32 0.0, %v3900
      %v3902 = vpop.f32.mrb[0].mxu0
      %v3903 = vpop.f32.mrb[0].mxu0
      %v3904 = vadd.f32 0.0, %v3903
      %v3905 = vpop.f32.mrb[0].mxu0
      %3906 = vdwg.mxu0
      %v3907 = vadd.f32 %v2862, %v3653
      %v3908 = vadd.f32 %v2863, %v3656
      %v3909 = vadd.f32 %v2864, %v3661
      %v3910 = vadd.f32 %v2865, %v3664
      %v3911 = vadd.f32 %v2866, %v3669
      %v3912 = vadd.f32 %v2867, %v3672
      %v3913 = vadd.f32 %v2868, %v3677
      %v3914 = vadd.f32 %v2869, %v3680
      %v3915 = vadd.f32 %v2870, %v3685
      %v3916 = vadd.f32 %v2871, %v3688
      %v3917 = vadd.f32 %v2872, %v3693
      %v3918 = vadd.f32 %v2873, %v3696
      %v3919 = vadd.f32 %v2874, %v3701
      %v3920 = vadd.f32 %v2875, %v3704
      %v3921 = vadd.f32 %v2876, %v3709
      %v3922 = vadd.f32 %v2877, %v3712
      %v3923 = vadd.f32 %v2878, %v3717
      %v3924 = vadd.f32 %v2879, %v3720
      %v3925 = vadd.f32 %v2880, %v3725
      %v3926 = vadd.f32 %v2881, %v3728
      %v3927 = vadd.f32 %v2882, %v3733
      %v3928 = vadd.f32 %v2883, %v3736
      %v3929 = vadd.f32 %v2884, %v3741
      %v3930 = vadd.f32 %v2885, %v3744
      %v3931 = vadd.f32 %v2886, %v3749
      %v3932 = vadd.f32 %v2887, %v3752
      %v3933 = vadd.f32 %v2888, %v3757
      %v3934 = vadd.f32 %v2889, %v3760
      %v3935 = vadd.f32 %v2890, %v3765
      %v3936 = vadd.f32 %v2891, %v3768
      %v3937 = vadd.f32 %v2892, %v3773
      %v3938 = vadd.f32 %v2893, %v3776
      %v3939 = vadd.f32 %v2894, %v3781
      %v3940 = vadd.f32 %v2895, %v3784
      %v3941 = vadd.f32 %v2896, %v3789
      %v3942 = vadd.f32 %v2897, %v3792
      %v3943 = vadd.f32 %v2898, %v3797
      %v3944 = vadd.f32 %v2899, %v3800
      %v3945 = vadd.f32 %v2900, %v3805
      %v3946 = vadd.f32 %v2901, %v3808
      %v3947 = vadd.f32 %v2902, %v3813
      %v3948 = vadd.f32 %v2903, %v3816
      %v3949 = vadd.f32 %v2904, %v3821
      %v3950 = vadd.f32 %v2905, %v3824
      %v3951 = vadd.f32 %v2906, %v3829
      %v3952 = vadd.f32 %v2907, %v3832
      %v3953 = vadd.f32 %v2908, %v3837
      %v3954 = vadd.f32 %v2909, %v3840
      %v3955 = vadd.f32 %v2910, %v3845
      %v3956 = vadd.f32 %v2911, %v3848
      %v3957 = vadd.f32 %v2912, %v3853
      %v3958 = vadd.f32 %v2913, %v3856
      %v3959 = vadd.f32 %v2914, %v3861
      %v3960 = vadd.f32 %v2915, %v3864
      %v3961 = vadd.f32 %v2916, %v3869
      %v3962 = vadd.f32 %v2917, %v3872
      %v3963 = vadd.f32 %v2918, %v3877
      %v3964 = vadd.f32 %v2919, %v3880
      %v3965 = vadd.f32 %v2920, %v3885
      %v3966 = vadd.f32 %v2921, %v3888
      %v3967 = vadd.f32 %v2922, %v3893
      %v3968 = vadd.f32 %v2923, %v3896
      %v3969 = vadd.f32 %v2924, %v3901
      %v3970 = vadd.f32 %v2925, %v3904
      %vm3971 = vcmask 1041408
      %vm3972 = vcmask 1045508
      %vm3973 = vmor %vm3971, %vm3972
      %v3974 = vrot.slane %v178, 6
      %v3975 = vrot.slane %v3974, 4
      %v3976 = vrot.slane %v179, 6
      %v3977 = vsel %vm3973, %v3975, %v3976
      %v3978 = vrot.slane %v3976, 4
      %v3979 = vrot.slane %v180, 6
      %v3980 = vsel %vm3973, %v3978, %v3979
      %v3981 = vrot.slane %v181, 6
      %v3982 = vrot.slane %v3981, 4
      %v3983 = vrot.slane %v182, 6
      %v3984 = vsel %vm3973, %v3982, %v3983
      %v3985 = vrot.slane %v3983, 4
      %v3986 = vrot.slane %v183, 6
      %v3987 = vsel %vm3973, %v3985, %v3986
      %v3988 = vrot.slane %v184, 6
      %v3989 = vrot.slane %v3988, 4
      %v3990 = vrot.slane %v185, 6
      %v3991 = vsel %vm3973, %v3989, %v3990
      %v3992 = vrot.slane %v3990, 4
      %v3993 = vrot.slane %v186, 6
      %v3994 = vsel %vm3973, %v3992, %v3993
      %v3995 = vrot.slane %v187, 6
      %v3996 = vrot.slane %v3995, 4
      %v3997 = vrot.slane %v188, 6
      %v3998 = vsel %vm3973, %v3996, %v3997
      %v3999 = vrot.slane %v3997, 4
      %v4000 = vrot.slane %v189, 6
      %v4001 = vsel %vm3973, %v3999, %v4000
      %v4002 = vrot.slane %v190, 6
      %v4003 = vrot.slane %v4002, 4
      %v4004 = vrot.slane %v191, 6
      %v4005 = vsel %vm3973, %v4003, %v4004
      %v4006 = vrot.slane %v4004, 4
      %v4007 = vrot.slane %v192, 6
      %v4008 = vsel %vm3973, %v4006, %v4007
      %v4009 = vrot.slane %v193, 6
      %v4010 = vrot.slane %v4009, 4
      %v4011 = vrot.slane %v194, 6
      %v4012 = vsel %vm3973, %v4010, %v4011
      %v4013 = vrot.slane %v4011, 4
      %v4014 = vrot.slane %v195, 6
      %v4015 = vsel %vm3973, %v4013, %v4014
      %v4016 = vrot.slane %v196, 6
      %v4017 = vrot.slane %v4016, 4
      %v4018 = vrot.slane %v197, 6
      %v4019 = vsel %vm3973, %v4017, %v4018
      %v4020 = vrot.slane %v4018, 4
      %v4021 = vrot.slane %v198, 6
      %v4022 = vsel %vm3973, %v4020, %v4021
      %v4023 = vrot.slane %v199, 6
      %v4024 = vrot.slane %v4023, 4
      %v4025 = vrot.slane %v200, 6
      %v4026 = vsel %vm3973, %v4024, %v4025
      %v4027 = vrot.slane %v4025, 4
      %v4028 = vrot.slane %v201, 6
      %v4029 = vsel %vm3973, %v4027, %v4028
      %v4030 = vrot.slane %v202, 6
      %v4031 = vrot.slane %v4030, 4
      %v4032 = vrot.slane %v203, 6
      %v4033 = vsel %vm3973, %v4031, %v4032
      %v4034 = vrot.slane %v4032, 4
      %v4035 = vrot.slane %v204, 6
      %v4036 = vsel %vm3973, %v4034, %v4035
      %v4037 = vrot.slane %v205, 6
      %v4038 = vrot.slane %v4037, 4
      %v4039 = vrot.slane %v206, 6
      %v4040 = vsel %vm3973, %v4038, %v4039
      %v4041 = vrot.slane %v4039, 4
      %v4042 = vrot.slane %v207, 6
      %v4043 = vsel %vm3973, %v4041, %v4042
      %v4044 = vrot.slane %v208, 6
      %v4045 = vrot.slane %v4044, 4
      %v4046 = vrot.slane %v209, 6
      %v4047 = vsel %vm3973, %v4045, %v4046
      %v4048 = vrot.slane %v4046, 4
      %v4049 = vrot.slane %v210, 6
      %v4050 = vsel %vm3973, %v4048, %v4049
      %v4051 = vrot.slane %v211, 6
      %v4052 = vrot.slane %v4051, 4
      %v4053 = vrot.slane %v212, 6
      %v4054 = vsel %vm3973, %v4052, %v4053
      %v4055 = vrot.slane %v4053, 4
      %v4056 = vrot.slane %v213, 6
      %v4057 = vsel %vm3973, %v4055, %v4056
      %v4058 = vrot.slane %v214, 6
      %v4059 = vrot.slane %v4058, 4
      %v4060 = vrot.slane %v215, 6
      %v4061 = vsel %vm3973, %v4059, %v4060
      %v4062 = vrot.slane %v4060, 4
      %v4063 = vrot.slane %v216, 6
      %v4064 = vsel %vm3973, %v4062, %v4063
      %v4065 = vrot.slane %v217, 6
      %v4066 = vrot.slane %v4065, 4
      %v4067 = vrot.slane %v218, 6
      %v4068 = vsel %vm3973, %v4066, %v4067
      %v4069 = vrot.slane %v4067, 4
      %v4070 = vrot.slane %v219, 6
      %v4071 = vsel %vm3973, %v4069, %v4070
      %v4072 = vrot.slane %v220, 6
      %v4073 = vrot.slane %v4072, 4
      %v4074 = vrot.slane %v221, 6
      %v4075 = vsel %vm3973, %v4073, %v4074
      %v4076 = vrot.slane %v4074, 4
      %v4077 = vrot.slane %v222, 6
      %v4078 = vsel %vm3973, %v4076, %v4077
      %v4079 = vrot.slane %v223, 6
      %v4080 = vrot.slane %v4079, 4
      %v4081 = vrot.slane %v224, 6
      %v4082 = vsel %vm3973, %v4080, %v4081
      %v4083 = vrot.slane %v4081, 4
      %v4084 = vrot.slane %v225, 6
      %v4085 = vsel %vm3973, %v4083, %v4084
      %v4086 = vrot.slane %v226, 6
      %v4087 = vrot.slane %v4086, 4
      %v4088 = vrot.slane %v227, 6
      %v4089 = vsel %vm3973, %v4087, %v4088
      %v4090 = vrot.slane %v4088, 4
      %v4091 = vrot.slane %v228, 6
      %v4092 = vsel %vm3973, %v4090, %v4091
      %v4093 = vrot.slane %v229, 6
      %v4094 = vrot.slane %v4093, 4
      %v4095 = vrot.slane %v230, 6
      %v4096 = vsel %vm3973, %v4094, %v4095
      %v4097 = vrot.slane %v4095, 4
      %v4098 = vrot.slane %v231, 6
      %v4099 = vsel %vm3973, %v4097, %v4098
      %v4100 = vrot.slane %v232, 6
      %v4101 = vrot.slane %v4100, 4
      %v4102 = vrot.slane %v233, 6
      %v4103 = vsel %vm3973, %v4101, %v4102
      %v4104 = vrot.slane %v4102, 4
      %v4105 = vrot.slane %v234, 6
      %v4106 = vsel %vm3973, %v4104, %v4105
      %v4107 = vrot.slane %v235, 6
      %v4108 = vrot.slane %v4107, 4
      %v4109 = vrot.slane %v236, 6
      %v4110 = vsel %vm3973, %v4108, %v4109
      %v4111 = vrot.slane %v4109, 4
      %v4112 = vrot.slane %v237, 6
      %v4113 = vsel %vm3973, %v4111, %v4112
      %v4114 = vrot.slane %v238, 6
      %v4115 = vrot.slane %v4114, 4
      %v4116 = vrot.slane %v239, 6
      %v4117 = vsel %vm3973, %v4115, %v4116
      %v4118 = vrot.slane %v4116, 4
      %v4119 = vrot.slane %v240, 6
      %v4120 = vsel %vm3973, %v4118, %v4119
      %v4121 = vrot.slane %v241, 6
      %v4122 = vrot.slane %v4121, 4
      %v4123 = vrot.slane %v242, 6
      %v4124 = vsel %vm3973, %v4122, %v4123
      %v4125 = vrot.slane %v4123, 4
      %v4126 = vrot.slane %v243, 6
      %v4127 = vsel %vm3973, %v4125, %v4126
      %v4128 = vrot.slane %v244, 6
      %v4129 = vrot.slane %v4128, 4
      %v4130 = vrot.slane %v245, 6
      %v4131 = vsel %vm3973, %v4129, %v4130
      %v4132 = vrot.slane %v4130, 4
      %v4133 = vrot.slane %v246, 6
      %v4134 = vsel %vm3973, %v4132, %v4133
      %v4135 = vrot.slane %v247, 6
      %v4136 = vrot.slane %v4135, 4
      %v4137 = vrot.slane %v248, 6
      %v4138 = vsel %vm3973, %v4136, %v4137
      %v4139 = vrot.slane %v4137, 4
      %v4140 = vrot.slane %v249, 6
      %v4141 = vsel %vm3973, %v4139, %v4140
      %v4142 = vrot.slane %v250, 6
      %v4143 = vrot.slane %v4142, 4
      %v4144 = vrot.slane %v251, 6
      %v4145 = vsel %vm3973, %v4143, %v4144
      %v4146 = vrot.slane %v4144, 4
      %v4147 = vrot.slane %v252, 6
      %v4148 = vsel %vm3973, %v4146, %v4147
      %v4149 = vrot.slane %v253, 6
      %v4150 = vrot.slane %v4149, 4
      %v4151 = vrot.slane %v254, 6
      %v4152 = vsel %vm3973, %v4150, %v4151
      %v4153 = vrot.slane %v4151, 4
      %v4154 = vrot.slane %v255, 6
      %v4155 = vsel %vm3973, %v4153, %v4154
      %v4156 = vrot.slane %v256, 6
      %v4157 = vrot.slane %v4156, 4
      %v4158 = vrot.slane %v257, 6
      %v4159 = vsel %vm3973, %v4157, %v4158
      %v4160 = vrot.slane %v4158, 4
      %v4161 = vrot.slane %v258, 6
      %v4162 = vsel %vm3973, %v4160, %v4161
      %v4163 = vrot.slane %v259, 6
      %v4164 = vrot.slane %v4163, 4
      %v4165 = vrot.slane %v260, 6
      %v4166 = vsel %vm3973, %v4164, %v4165
      %v4167 = vrot.slane %v4165, 4
      %v4168 = vrot.slane %v261, 6
      %v4169 = vsel %vm3973, %v4167, %v4168
      %v4170 = vrot.slane %v262, 6
      %v4171 = vrot.slane %v4170, 4
      %v4172 = vrot.slane %v263, 6
      %v4173 = vsel %vm3973, %v4171, %v4172
      %v4174 = vrot.slane %v4172, 4
      %v4175 = vrot.slane %v264, 6
      %v4176 = vsel %vm3973, %v4174, %v4175
      %v4177 = vrot.slane %v265, 6
      %v4178 = vrot.slane %v4177, 4
      %v4179 = vrot.slane %v266, 6
      %v4180 = vsel %vm3973, %v4178, %v4179
      %v4181 = vrot.slane %v4179, 4
      %v4182 = vrot.slane %v267, 6
      %v4183 = vsel %vm3973, %v4181, %v4182
      %v4184 = vrot.slane %v268, 6
      %v4185 = vrot.slane %v4184, 4
      %v4186 = vrot.slane %v269, 6
      %v4187 = vsel %vm3973, %v4185, %v4186
      %v4188 = vrot.slane %v4186, 4
      %v4189 = vrot.slane %v270, 6
      %v4190 = vsel %vm3973, %v4188, %v4189
      %v4191 = vrot.slane %v271, 6
      %v4192 = vrot.slane %v4191, 4
      %v4193 = vrot.slane %v272, 6
      %v4194 = vsel %vm3973, %v4192, %v4193
      %v4195 = vrot.slane %v4193, 4
      %v4196 = vrot.slane %v273, 6
      %v4197 = vsel %vm3973, %v4195, %v4196
      %s4198 = scalar_lea.vmem %s1, 64
      %v4199 = vld [vmem:[%s4198] sm:$0xf]
      %v4200 = vld [vmem:[%s4198 + $0x4] sm:$0xf]
      %v4201 = vld [vmem:[%s4198 + $0x8] sm:$0xf]
      %v4202 = vld [vmem:[%s4198 + $0xc] sm:$0xf]
      %v4203 = vunpack.c.l.b16 %v3977
      %v4204 = vunpack.c.l.b16 %v3980
      %v4205 = vunpack.c.l.b16 %v3984
      %v4206 = vunpack.c.l.b16 %v3987
      %v4207 = vunpack.c.l.b16 %v3991
      %v4208 = vunpack.c.l.b16 %v3994
      %v4209 = vunpack.c.l.b16 %v3998
      %v4210 = vunpack.c.l.b16 %v4001
      %v4211 = vunpack.c.l.b16 %v4005
      %v4212 = vunpack.c.l.b16 %v4008
      %v4213 = vunpack.c.l.b16 %v4012
      %v4214 = vunpack.c.l.b16 %v4015
      %v4215 = vunpack.c.l.b16 %v4019
      %v4216 = vunpack.c.l.b16 %v4022
      %v4217 = vunpack.c.l.b16 %v4026
      %v4218 = vunpack.c.l.b16 %v4029
      %v4219 = vunpack.c.l.b16 %v4033
      %v4220 = vunpack.c.l.b16 %v4036
      %v4221 = vunpack.c.l.b16 %v4040
      %v4222 = vunpack.c.l.b16 %v4043
      %v4223 = vunpack.c.l.b16 %v4047
      %v4224 = vunpack.c.l.b16 %v4050
      %v4225 = vunpack.c.l.b16 %v4054
      %v4226 = vunpack.c.l.b16 %v4057
      %v4227 = vunpack.c.l.b16 %v4061
      %v4228 = vunpack.c.l.b16 %v4064
      %v4229 = vunpack.c.l.b16 %v4068
      %v4230 = vunpack.c.l.b16 %v4071
      %v4231 = vunpack.c.l.b16 %v4075
      %v4232 = vunpack.c.l.b16 %v4078
      %v4233 = vunpack.c.l.b16 %v4082
      %v4234 = vunpack.c.l.b16 %v4085
      %v4235 = vunpack.c.l.b16 %v4089
      %v4236 = vunpack.c.l.b16 %v4092
      %v4237 = vunpack.c.l.b16 %v4096
      %v4238 = vunpack.c.l.b16 %v4099
      %v4239 = vunpack.c.l.b16 %v4103
      %v4240 = vunpack.c.l.b16 %v4106
      %v4241 = vunpack.c.l.b16 %v4110
      %v4242 = vunpack.c.l.b16 %v4113
      %v4243 = vunpack.c.l.b16 %v4117
      %v4244 = vunpack.c.l.b16 %v4120
      %v4245 = vunpack.c.l.b16 %v4124
      %v4246 = vunpack.c.l.b16 %v4127
      %v4247 = vunpack.c.l.b16 %v4131
      %v4248 = vunpack.c.l.b16 %v4134
      %v4249 = vunpack.c.l.b16 %v4138
      %v4250 = vunpack.c.l.b16 %v4141
      %v4251 = vunpack.c.l.b16 %v4145
      %v4252 = vunpack.c.l.b16 %v4148
      %v4253 = vunpack.c.l.b16 %v4152
      %v4254 = vunpack.c.l.b16 %v4155
      %v4255 = vunpack.c.l.b16 %v4159
      %v4256 = vunpack.c.l.b16 %v4162
      %v4257 = vunpack.c.l.b16 %v4166
      %v4258 = vunpack.c.l.b16 %v4169
      %v4259 = vunpack.c.l.b16 %v4173
      %v4260 = vunpack.c.l.b16 %v4176
      %v4261 = vunpack.c.l.b16 %v4180
      %v4262 = vunpack.c.l.b16 %v4183
      %v4263 = vunpack.c.l.b16 %v4187
      %v4264 = vunpack.c.l.b16 %v4190
      %v4265 = vunpack.c.l.b16 %v4194
      %v4266 = vunpack.c.l.b16 %v4197
      %v4267 = vpack.c.b16 %v4204, %v4203
      %v4268 = vpack.c.b16 %v4206, %v4205
      %v4269 = vpack.c.b16 %v4208, %v4207
      %v4270 = vpack.c.b16 %v4210, %v4209
      %v4271 = vpack.c.b16 %v4212, %v4211
      %v4272 = vpack.c.b16 %v4214, %v4213
      %v4273 = vpack.c.b16 %v4216, %v4215
      %v4274 = vpack.c.b16 %v4218, %v4217
      %v4275 = vpack.c.b16 %v4220, %v4219
      %v4276 = vpack.c.b16 %v4222, %v4221
      %v4277 = vpack.c.b16 %v4224, %v4223
      %v4278 = vpack.c.b16 %v4226, %v4225
      %v4279 = vpack.c.b16 %v4228, %v4227
      %v4280 = vpack.c.b16 %v4230, %v4229
      %v4281 = vpack.c.b16 %v4232, %v4231
      %v4282 = vpack.c.b16 %v4234, %v4233
      %v4283 = vpack.c.b16 %v4236, %v4235
      %v4284 = vpack.c.b16 %v4238, %v4237
      %v4285 = vpack.c.b16 %v4240, %v4239
      %v4286 = vpack.c.b16 %v4242, %v4241
      %v4287 = vpack.c.b16 %v4244, %v4243
      %v4288 = vpack.c.b16 %v4246, %v4245
      %v4289 = vpack.c.b16 %v4248, %v4247
      %v4290 = vpack.c.b16 %v4250, %v4249
      %v4291 = vpack.c.b16 %v4252, %v4251
      %v4292 = vpack.c.b16 %v4254, %v4253
      %v4293 = vpack.c.b16 %v4256, %v4255
      %v4294 = vpack.c.b16 %v4258, %v4257
      %v4295 = vpack.c.b16 %v4260, %v4259
      %v4296 = vpack.c.b16 %v4262, %v4261
      %v4297 = vpack.c.b16 %v4264, %v4263
      %v4298 = vpack.c.b16 %v4266, %v4265
      %v4303 = vunpack.c.l.b16 %v4199
      %v4304 = vunpack.c.l.b16 %v4200
      %v4305 = vunpack.c.l.b16 %v4201
      %v4306 = vunpack.c.l.b16 %v4202
      %v4307 = vpack.c.b16 %v4304, %v4303
      %v4308 = vpack.c.b16 %v4306, %v4305
      %v4312 = vsel %vm1162, %v4267, 0
      %v4315 = vsel %vm1162, %v4268, 0
      %v4318 = vsel %vm1162, %v4269, 0
      %v4321 = vsel %vm1162, %v4270, 0
      %v4324 = vsel %vm1162, %v4271, 0
      %v4327 = vsel %vm1162, %v4272, 0
      %v4330 = vsel %vm1162, %v4273, 0
      %v4333 = vsel %vm1162, %v4274, 0
      %v4336 = vsel %vm1162, %v4275, 0
      %v4339 = vsel %vm1162, %v4276, 0
      %v4342 = vsel %vm1162, %v4277, 0
      %v4345 = vsel %vm1162, %v4278, 0
      %v4348 = vsel %vm1162, %v4279, 0
      %v4351 = vsel %vm1162, %v4280, 0
      %v4354 = vsel %vm1162, %v4281, 0
      %v4357 = vsel %vm1162, %v4282, 0
      %v4360 = vsel %vm1162, %v4283, 0
      %v4363 = vsel %vm1162, %v4284, 0
      %v4366 = vsel %vm1162, %v4285, 0
      %v4369 = vsel %vm1162, %v4286, 0
      %v4372 = vsel %vm1162, %v4287, 0
      %v4375 = vsel %vm1162, %v4288, 0
      %v4378 = vsel %vm1162, %v4289, 0
      %v4381 = vsel %vm1162, %v4290, 0
      %v4384 = vsel %vm1162, %v4291, 0
      %v4387 = vsel %vm1162, %v4292, 0
      %v4390 = vsel %vm1162, %v4293, 0
      %v4393 = vsel %vm1162, %v4294, 0
      %v4396 = vsel %vm1162, %v4295, 0
      %v4399 = vsel %vm1162, %v4296, 0
      %v4402 = vsel %vm1162, %v4297, 0
      %v4405 = vsel %vm1162, %v4298, 0
      %4407 = vmatprep.subr.bf16.mxu0 0
      %4408 = vmatpush1.bf16.msra.mxu0 %v4307
      %4409 = vmatprep.subr.bf16.mxu0 0
      %4410 = vmatpush1.bf16.msra.mxu0 %v4308
      %4411 = vmatprep.subr.bf16.mxu0 0
      %4412 = vmatpush1.bf16.msra.mxu0 0
      %4413 = vmatprep.subr.bf16.mxu0 0
      %4414 = vmatpush1.bf16.msra.mxu0 0
      %4415 = vmatprep.subr.bf16.mxu0 0
      %4416 = vmatpush1.bf16.msra.mxu0 0
      %4417 = vmatprep.subr.bf16.mxu0 0
      %4418 = vmatpush1.bf16.msra.mxu0 0
      %4419 = vmatprep.subr.bf16.mxu0 0
      %4420 = vmatpush1.bf16.msra.mxu0 0
      %4421 = vmatprep.subr.bf16.mxu0 0
      %4422 = vmatpush1.bf16.msra.mxu0 0
      %4423 = vmatprep.subr.bf16.mxu0 0
      %4424 = vmatpush1.bf16.msra.mxu0 0
      %4425 = vmatprep.subr.bf16.mxu0 0
      %4426 = vmatpush1.bf16.msra.mxu0 0
      %4427 = vmatprep.subr.bf16.mxu0 0
      %4428 = vmatpush1.bf16.msra.mxu0 0
      %4429 = vmatprep.subr.bf16.mxu0 0
      %4430 = vmatpush1.bf16.msra.mxu0 0
      %4431 = vmatprep.subr.bf16.mxu0 0
      %4432 = vmatpush1.bf16.msra.mxu0 0
      %4433 = vmatprep.subr.bf16.mxu0 0
      %4434 = vmatpush1.bf16.msra.mxu0 0
      %4435 = vmatprep.subr.bf16.mxu0 0
      %4436 = vmatpush1.bf16.msra.mxu0 0
      %4437 = vmatprep.subr.bf16.mxu0 0
      %4438 = vmatpush1.bf16.msra.mxu0 0
      %4439 = vmatprep.mubr.bf16.mxu0 0
      %4440 = vmatmul.mubr.bf16.gmra.mrb[0].mxu0 %v4312
      %v4441 = vpop.f32.mrb[0].mxu0
      %v4442 = vadd.f32 0.0, %v4441
      %v4443 = vpop.f32.mrb[0].mxu0
      %v4444 = vpop.f32.mrb[0].mxu0
      %v4445 = vadd.f32 0.0, %v4444
      %v4446 = vpop.f32.mrb[0].mxu0
      %4447 = vmatprep.mubr.bf16.mxu0 0
      %4448 = vmatmul.mubr.bf16.gmra.mrb[0].mxu0 %v4315
      %v4449 = vpop.f32.mrb[0].mxu0
      %v4450 = vadd.f32 0.0, %v4449
      %v4451 = vpop.f32.mrb[0].mxu0
      %v4452 = vpop.f32.mrb[0].mxu0
      %v4453 = vadd.f32 0.0, %v4452
      %v4454 = vpop.f32.mrb[0].mxu0
      %4455 = vmatprep.mubr.bf16.mxu0 0
      %4456 = vmatmul.mubr.bf16.gmra.mrb[0].mxu0 %v4318
      %v4457 = vpop.f32.mrb[0].mxu0
      %v4458 = vadd.f32 0.0, %v4457
      %v4459 = vpop.f32.mrb[0].mxu0
      %v4460 = vpop.f32.mrb[0].mxu0
      %v4461 = vadd.f32 0.0, %v4460
      %v4462 = vpop.f32.mrb[0].mxu0
      %4463 = vmatprep.mubr.bf16.mxu0 0
      %4464 = vmatmul.mubr.bf16.gmra.mrb[0].mxu0 %v4321
      %v4465 = vpop.f32.mrb[0].mxu0
      %v4466 = vadd.f32 0.0, %v4465
      %v4467 = vpop.f32.mrb[0].mxu0
      %v4468 = vpop.f32.mrb[0].mxu0
      %v4469 = vadd.f32 0.0, %v4468
      %v4470 = vpop.f32.mrb[0].mxu0
      %4471 = vmatprep.mubr.bf16.mxu0 0
      %4472 = vmatmul.mubr.bf16.gmra.mrb[0].mxu0 %v4324
      %v4473 = vpop.f32.mrb[0].mxu0
      %v4474 = vadd.f32 0.0, %v4473
      %v4475 = vpop.f32.mrb[0].mxu0
      %v4476 = vpop.f32.mrb[0].mxu0
      %v4477 = vadd.f32 0.0, %v4476
      %v4478 = vpop.f32.mrb[0].mxu0
      %4479 = vmatprep.mubr.bf16.mxu0 0
      %4480 = vmatmul.mubr.bf16.gmra.mrb[0].mxu0 %v4327
      %v4481 = vpop.f32.mrb[0].mxu0
      %v4482 = vadd.f32 0.0, %v4481
      %v4483 = vpop.f32.mrb[0].mxu0
      %v4484 = vpop.f32.mrb[0].mxu0
      %v4485 = vadd.f32 0.0, %v4484
      %v4486 = vpop.f32.mrb[0].mxu0
      %4487 = vmatprep.mubr.bf16.mxu0 0
      %4488 = vmatmul.mubr.bf16.gmra.mrb[0].mxu0 %v4330
      %v4489 = vpop.f32.mrb[0].mxu0
      %v4490 = vadd.f32 0.0, %v4489
      %v4491 = vpop.f32.mrb[0].mxu0
      %v4492 = vpop.f32.mrb[0].mxu0
      %v4493 = vadd.f32 0.0, %v4492
      %v4494 = vpop.f32.mrb[0].mxu0
      %4495 = vmatprep.mubr.bf16.mxu0 0
      %4496 = vmatmul.mubr.bf16.gmra.mrb[0].mxu0 %v4333
      %v4497 = vpop.f32.mrb[0].mxu0
      %v4498 = vadd.f32 0.0, %v4497
      %v4499 = vpop.f32.mrb[0].mxu0
      %v4500 = vpop.f32.mrb[0].mxu0
      %v4501 = vadd.f32 0.0, %v4500
      %v4502 = vpop.f32.mrb[0].mxu0
      %4503 = vmatprep.mubr.bf16.mxu0 0
      %4504 = vmatmul.mubr.bf16.gmra.mrb[0].mxu0 %v4336
      %v4505 = vpop.f32.mrb[0].mxu0
      %v4506 = vadd.f32 0.0, %v4505
      %v4507 = vpop.f32.mrb[0].mxu0
      %v4508 = vpop.f32.mrb[0].mxu0
      %v4509 = vadd.f32 0.0, %v4508
      %v4510 = vpop.f32.mrb[0].mxu0
      %4511 = vmatprep.mubr.bf16.mxu0 0
      %4512 = vmatmul.mubr.bf16.gmra.mrb[0].mxu0 %v4339
      %v4513 = vpop.f32.mrb[0].mxu0
      %v4514 = vadd.f32 0.0, %v4513
      %v4515 = vpop.f32.mrb[0].mxu0
      %v4516 = vpop.f32.mrb[0].mxu0
      %v4517 = vadd.f32 0.0, %v4516
      %v4518 = vpop.f32.mrb[0].mxu0
      %4519 = vmatprep.mubr.bf16.mxu0 0
      %4520 = vmatmul.mubr.bf16.gmra.mrb[0].mxu0 %v4342
      %v4521 = vpop.f32.mrb[0].mxu0
      %v4522 = vadd.f32 0.0, %v4521
      %v4523 = vpop.f32.mrb[0].mxu0
      %v4524 = vpop.f32.mrb[0].mxu0
      %v4525 = vadd.f32 0.0, %v4524
      %v4526 = vpop.f32.mrb[0].mxu0
      %4527 = vmatprep.mubr.bf16.mxu0 0
      %4528 = vmatmul.mubr.bf16.gmra.mrb[0].mxu0 %v4345
      %v4529 = vpop.f32.mrb[0].mxu0
      %v4530 = vadd.f32 0.0, %v4529
      %v4531 = vpop.f32.mrb[0].mxu0
      %v4532 = vpop.f32.mrb[0].mxu0
      %v4533 = vadd.f32 0.0, %v4532
      %v4534 = vpop.f32.mrb[0].mxu0
      %4535 = vmatprep.mubr.bf16.mxu0 0
      %4536 = vmatmul.mubr.bf16.gmra.mrb[0].mxu0 %v4348
      %v4537 = vpop.f32.mrb[0].mxu0
      %v4538 = vadd.f32 0.0, %v4537
      %v4539 = vpop.f32.mrb[0].mxu0
      %v4540 = vpop.f32.mrb[0].mxu0
      %v4541 = vadd.f32 0.0, %v4540
      %v4542 = vpop.f32.mrb[0].mxu0
      %4543 = vmatprep.mubr.bf16.mxu0 0
      %4544 = vmatmul.mubr.bf16.gmra.mrb[0].mxu0 %v4351
      %v4545 = vpop.f32.mrb[0].mxu0
      %v4546 = vadd.f32 0.0, %v4545
      %v4547 = vpop.f32.mrb[0].mxu0
      %v4548 = vpop.f32.mrb[0].mxu0
      %v4549 = vadd.f32 0.0, %v4548
      %v4550 = vpop.f32.mrb[0].mxu0
      %4551 = vmatprep.mubr.bf16.mxu0 0
      %4552 = vmatmul.mubr.bf16.gmra.mrb[0].mxu0 %v4354
      %v4553 = vpop.f32.mrb[0].mxu0
      %v4554 = vadd.f32 0.0, %v4553
      %v4555 = vpop.f32.mrb[0].mxu0
      %v4556 = vpop.f32.mrb[0].mxu0
      %v4557 = vadd.f32 0.0, %v4556
      %v4558 = vpop.f32.mrb[0].mxu0
      %4559 = vmatprep.mubr.bf16.mxu0 0
      %4560 = vmatmul.mubr.bf16.gmra.mrb[0].mxu0 %v4357
      %v4561 = vpop.f32.mrb[0].mxu0
      %v4562 = vadd.f32 0.0, %v4561
      %v4563 = vpop.f32.mrb[0].mxu0
      %v4564 = vpop.f32.mrb[0].mxu0
      %v4565 = vadd.f32 0.0, %v4564
      %v4566 = vpop.f32.mrb[0].mxu0
      %4567 = vmatprep.mubr.bf16.mxu0 0
      %4568 = vmatmul.mubr.bf16.gmra.mrb[0].mxu0 %v4360
      %v4569 = vpop.f32.mrb[0].mxu0
      %v4570 = vadd.f32 0.0, %v4569
      %v4571 = vpop.f32.mrb[0].mxu0
      %v4572 = vpop.f32.mrb[0].mxu0
      %v4573 = vadd.f32 0.0, %v4572
      %v4574 = vpop.f32.mrb[0].mxu0
      %4575 = vmatprep.mubr.bf16.mxu0 0
      %4576 = vmatmul.mubr.bf16.gmra.mrb[0].mxu0 %v4363
      %v4577 = vpop.f32.mrb[0].mxu0
      %v4578 = vadd.f32 0.0, %v4577
      %v4579 = vpop.f32.mrb[0].mxu0
      %v4580 = vpop.f32.mrb[0].mxu0
      %v4581 = vadd.f32 0.0, %v4580
      %v4582 = vpop.f32.mrb[0].mxu0
      %4583 = vmatprep.mubr.bf16.mxu0 0
      %4584 = vmatmul.mubr.bf16.gmra.mrb[0].mxu0 %v4366
      %v4585 = vpop.f32.mrb[0].mxu0
      %v4586 = vadd.f32 0.0, %v4585
      %v4587 = vpop.f32.mrb[0].mxu0
      %v4588 = vpop.f32.mrb[0].mxu0
      %v4589 = vadd.f32 0.0, %v4588
      %v4590 = vpop.f32.mrb[0].mxu0
      %4591 = vmatprep.mubr.bf16.mxu0 0
      %4592 = vmatmul.mubr.bf16.gmra.mrb[0].mxu0 %v4369
      %v4593 = vpop.f32.mrb[0].mxu0
      %v4594 = vadd.f32 0.0, %v4593
      %v4595 = vpop.f32.mrb[0].mxu0
      %v4596 = vpop.f32.mrb[0].mxu0
      %v4597 = vadd.f32 0.0, %v4596
      %v4598 = vpop.f32.mrb[0].mxu0
      %4599 = vmatprep.mubr.bf16.mxu0 0
      %4600 = vmatmul.mubr.bf16.gmra.mrb[0].mxu0 %v4372
      %v4601 = vpop.f32.mrb[0].mxu0
      %v4602 = vadd.f32 0.0, %v4601
      %v4603 = vpop.f32.mrb[0].mxu0
      %v4604 = vpop.f32.mrb[0].mxu0
      %v4605 = vadd.f32 0.0, %v4604
      %v4606 = vpop.f32.mrb[0].mxu0
      %4607 = vmatprep.mubr.bf16.mxu0 0
      %4608 = vmatmul.mubr.bf16.gmra.mrb[0].mxu0 %v4375
      %v4609 = vpop.f32.mrb[0].mxu0
      %v4610 = vadd.f32 0.0, %v4609
      %v4611 = vpop.f32.mrb[0].mxu0
      %v4612 = vpop.f32.mrb[0].mxu0
      %v4613 = vadd.f32 0.0, %v4612
      %v4614 = vpop.f32.mrb[0].mxu0
      %4615 = vmatprep.mubr.bf16.mxu0 0
      %4616 = vmatmul.mubr.bf16.gmra.mrb[0].mxu0 %v4378
      %v4617 = vpop.f32.mrb[0].mxu0
      %v4618 = vadd.f32 0.0, %v4617
      %v4619 = vpop.f32.mrb[0].mxu0
      %v4620 = vpop.f32.mrb[0].mxu0
      %v4621 = vadd.f32 0.0, %v4620
      %v4622 = vpop.f32.mrb[0].mxu0
      %4623 = vmatprep.mubr.bf16.mxu0 0
      %4624 = vmatmul.mubr.bf16.gmra.mrb[0].mxu0 %v4381
      %v4625 = vpop.f32.mrb[0].mxu0
      %v4626 = vadd.f32 0.0, %v4625
      %v4627 = vpop.f32.mrb[0].mxu0
      %v4628 = vpop.f32.mrb[0].mxu0
      %v4629 = vadd.f32 0.0, %v4628
      %v4630 = vpop.f32.mrb[0].mxu0
      %4631 = vmatprep.mubr.bf16.mxu0 0
      %4632 = vmatmul.mubr.bf16.gmra.mrb[0].mxu0 %v4384
      %v4633 = vpop.f32.mrb[0].mxu0
      %v4634 = vadd.f32 0.0, %v4633
      %v4635 = vpop.f32.mrb[0].mxu0
      %v4636 = vpop.f32.mrb[0].mxu0
      %v4637 = vadd.f32 0.0, %v4636
      %v4638 = vpop.f32.mrb[0].mxu0
      %4639 = vmatprep.mubr.bf16.mxu0 0
      %4640 = vmatmul.mubr.bf16.gmra.mrb[0].mxu0 %v4387
      %v4641 = vpop.f32.mrb[0].mxu0
      %v4642 = vadd.f32 0.0, %v4641
      %v4643 = vpop.f32.mrb[0].mxu0
      %v4644 = vpop.f32.mrb[0].mxu0
      %v4645 = vadd.f32 0.0, %v4644
      %v4646 = vpop.f32.mrb[0].mxu0
      %4647 = vmatprep.mubr.bf16.mxu0 0
      %4648 = vmatmul.mubr.bf16.gmra.mrb[0].mxu0 %v4390
      %v4649 = vpop.f32.mrb[0].mxu0
      %v4650 = vadd.f32 0.0, %v4649
      %v4651 = vpop.f32.mrb[0].mxu0
      %v4652 = vpop.f32.mrb[0].mxu0
      %v4653 = vadd.f32 0.0, %v4652
      %v4654 = vpop.f32.mrb[0].mxu0
      %4655 = vmatprep.mubr.bf16.mxu0 0
      %4656 = vmatmul.mubr.bf16.gmra.mrb[0].mxu0 %v4393
      %v4657 = vpop.f32.mrb[0].mxu0
      %v4658 = vadd.f32 0.0, %v4657
      %v4659 = vpop.f32.mrb[0].mxu0
      %v4660 = vpop.f32.mrb[0].mxu0
      %v4661 = vadd.f32 0.0, %v4660
      %v4662 = vpop.f32.mrb[0].mxu0
      %4663 = vmatprep.mubr.bf16.mxu0 0
      %4664 = vmatmul.mubr.bf16.gmra.mrb[0].mxu0 %v4396
      %v4665 = vpop.f32.mrb[0].mxu0
      %v4666 = vadd.f32 0.0, %v4665
      %v4667 = vpop.f32.mrb[0].mxu0
      %v4668 = vpop.f32.mrb[0].mxu0
      %v4669 = vadd.f32 0.0, %v4668
      %v4670 = vpop.f32.mrb[0].mxu0
      %4671 = vmatprep.mubr.bf16.mxu0 0
      %4672 = vmatmul.mubr.bf16.gmra.mrb[0].mxu0 %v4399
      %v4673 = vpop.f32.mrb[0].mxu0
      %v4674 = vadd.f32 0.0, %v4673
      %v4675 = vpop.f32.mrb[0].mxu0
      %v4676 = vpop.f32.mrb[0].mxu0
      %v4677 = vadd.f32 0.0, %v4676
      %v4678 = vpop.f32.mrb[0].mxu0
      %4679 = vmatprep.mubr.bf16.mxu0 0
      %4680 = vmatmul.mubr.bf16.gmra.mrb[0].mxu0 %v4402
      %v4681 = vpop.f32.mrb[0].mxu0
      %v4682 = vadd.f32 0.0, %v4681
      %v4683 = vpop.f32.mrb[0].mxu0
      %v4684 = vpop.f32.mrb[0].mxu0
      %v4685 = vadd.f32 0.0, %v4684
      %v4686 = vpop.f32.mrb[0].mxu0
      %4687 = vmatprep.mubr.bf16.mxu0 0
      %4688 = vmatmul.mubr.bf16.gmra.mrb[0].mxu0 %v4405
      %v4689 = vpop.f32.mrb[0].mxu0
      %v4690 = vadd.f32 0.0, %v4689
      %v4691 = vpop.f32.mrb[0].mxu0
      %v4692 = vpop.f32.mrb[0].mxu0
      %v4693 = vadd.f32 0.0, %v4692
      %v4694 = vpop.f32.mrb[0].mxu0
      %4695 = vdwg.mxu0
      %v4696 = vadd.f32 %v3907, %v4442
      %v4697 = vadd.f32 %v3908, %v4445
      %v4698 = vadd.f32 %v3909, %v4450
      %v4699 = vadd.f32 %v3910, %v4453
      %v4700 = vadd.f32 %v3911, %v4458
      %v4701 = vadd.f32 %v3912, %v4461
      %v4702 = vadd.f32 %v3913, %v4466
      %v4703 = vadd.f32 %v3914, %v4469
      %v4704 = vadd.f32 %v3915, %v4474
      %v4705 = vadd.f32 %v3916, %v4477
      %v4706 = vadd.f32 %v3917, %v4482
      %v4707 = vadd.f32 %v3918, %v4485
      %v4708 = vadd.f32 %v3919, %v4490
      %v4709 = vadd.f32 %v3920, %v4493
      %v4710 = vadd.f32 %v3921, %v4498
      %v4711 = vadd.f32 %v3922, %v4501
      %v4712 = vadd.f32 %v3923, %v4506
      %v4713 = vadd.f32 %v3924, %v4509
      %v4714 = vadd.f32 %v3925, %v4514
      %v4715 = vadd.f32 %v3926, %v4517
      %v4716 = vadd.f32 %v3927, %v4522
      %v4717 = vadd.f32 %v3928, %v4525
      %v4718 = vadd.f32 %v3929, %v4530
      %v4719 = vadd.f32 %v3930, %v4533
      %v4720 = vadd.f32 %v3931, %v4538
      %v4721 = vadd.f32 %v3932, %v4541
      %v4722 = vadd.f32 %v3933, %v4546
      %v4723 = vadd.f32 %v3934, %v4549
      %v4724 = vadd.f32 %v3935, %v4554
      %v4725 = vadd.f32 %v3936, %v4557
      %v4726 = vadd.f32 %v3937, %v4562
      %v4727 = vadd.f32 %v3938, %v4565
      %v4728 = vadd.f32 %v3939, %v4570
      %v4729 = vadd.f32 %v3940, %v4573
      %v4730 = vadd.f32 %v3941, %v4578
      %v4731 = vadd.f32 %v3942, %v4581
      %v4732 = vadd.f32 %v3943, %v4586
      %v4733 = vadd.f32 %v3944, %v4589
      %v4734 = vadd.f32 %v3945, %v4594
      %v4735 = vadd.f32 %v3946, %v4597
      %v4736 = vadd.f32 %v3947, %v4602
      %v4737 = vadd.f32 %v3948, %v4605
      %v4738 = vadd.f32 %v3949, %v4610
      %v4739 = vadd.f32 %v3950, %v4613
      %v4740 = vadd.f32 %v3951, %v4618
      %v4741 = vadd.f32 %v3952, %v4621
      %v4742 = vadd.f32 %v3953, %v4626
      %v4743 = vadd.f32 %v3954, %v4629
      %v4744 = vadd.f32 %v3955, %v4634
      %v4745 = vadd.f32 %v3956, %v4637
      %v4746 = vadd.f32 %v3957, %v4642
      %v4747 = vadd.f32 %v3958, %v4645
      %v4748 = vadd.f32 %v3959, %v4650
      %v4749 = vadd.f32 %v3960, %v4653
      %v4750 = vadd.f32 %v3961, %v4658
      %v4751 = vadd.f32 %v3962, %v4661
      %v4752 = vadd.f32 %v3963, %v4666
      %v4753 = vadd.f32 %v3964, %v4669
      %v4754 = vadd.f32 %v3965, %v4674
      %v4755 = vadd.f32 %v3966, %v4677
      %v4756 = vadd.f32 %v3967, %v4682
      %v4757 = vadd.f32 %v3968, %v4685
      %v4758 = vadd.f32 %v3969, %v4690
      %v4759 = vadd.f32 %v3970, %v4693
      %v4760 = vld [vmem:[%s2] sm:$0x1]
      %v4762 = vlaneseq
      %v4763 = vshrl.u32 %v4762, 7
      %v4764 = vsub.s32 0, %v4763
      %v4765 = vrot.slane %v4760, %v4764
      %v4767 = vadd.f32 %v4696, %v4765
      %v4768 = vadd.f32 %v4697, %v4765
      %v4769 = vadd.f32 %v4698, %v4765
      %v4770 = vadd.f32 %v4699, %v4765
      %v4771 = vadd.f32 %v4700, %v4765
      %v4772 = vadd.f32 %v4701, %v4765
      %v4773 = vadd.f32 %v4702, %v4765
      %v4774 = vadd.f32 %v4703, %v4765
      %v4775 = vadd.f32 %v4704, %v4765
      %v4776 = vadd.f32 %v4705, %v4765
      %v4777 = vadd.f32 %v4706, %v4765
      %v4778 = vadd.f32 %v4707, %v4765
      %v4779 = vadd.f32 %v4708, %v4765
      %v4780 = vadd.f32 %v4709, %v4765
      %v4781 = vadd.f32 %v4710, %v4765
      %v4782 = vadd.f32 %v4711, %v4765
      %v4783 = vadd.f32 %v4712, %v4765
      %v4784 = vadd.f32 %v4713, %v4765
      %v4785 = vadd.f32 %v4714, %v4765
      %v4786 = vadd.f32 %v4715, %v4765
      %v4787 = vadd.f32 %v4716, %v4765
      %v4788 = vadd.f32 %v4717, %v4765
      %v4789 = vadd.f32 %v4718, %v4765
      %v4790 = vadd.f32 %v4719, %v4765
      %v4791 = vadd.f32 %v4720, %v4765
      %v4792 = vadd.f32 %v4721, %v4765
      %v4793 = vadd.f32 %v4722, %v4765
      %v4794 = vadd.f32 %v4723, %v4765
      %v4795 = vadd.f32 %v4724, %v4765
      %v4796 = vadd.f32 %v4725, %v4765
      %v4797 = vadd.f32 %v4726, %v4765
      %v4798 = vadd.f32 %v4727, %v4765
      %v4799 = vadd.f32 %v4728, %v4765
      %v4800 = vadd.f32 %v4729, %v4765
      %v4801 = vadd.f32 %v4730, %v4765
      %v4802 = vadd.f32 %v4731, %v4765
      %v4803 = vadd.f32 %v4732, %v4765
      %v4804 = vadd.f32 %v4733, %v4765
      %v4805 = vadd.f32 %v4734, %v4765
      %v4806 = vadd.f32 %v4735, %v4765
      %v4807 = vadd.f32 %v4736, %v4765
      %v4808 = vadd.f32 %v4737, %v4765
      %v4809 = vadd.f32 %v4738, %v4765
      %v4810 = vadd.f32 %v4739, %v4765
      %v4811 = vadd.f32 %v4740, %v4765
      %v4812 = vadd.f32 %v4741, %v4765
      %v4813 = vadd.f32 %v4742, %v4765
      %v4814 = vadd.f32 %v4743, %v4765
      %v4815 = vadd.f32 %v4744, %v4765
      %v4816 = vadd.f32 %v4745, %v4765
      %v4817 = vadd.f32 %v4746, %v4765
      %v4818 = vadd.f32 %v4747, %v4765
      %v4819 = vadd.f32 %v4748, %v4765
      %v4820 = vadd.f32 %v4749, %v4765
      %v4821 = vadd.f32 %v4750, %v4765
      %v4822 = vadd.f32 %v4751, %v4765
      %v4823 = vadd.f32 %v4752, %v4765
      %v4824 = vadd.f32 %v4753, %v4765
      %v4825 = vadd.f32 %v4754, %v4765
      %v4826 = vadd.f32 %v4755, %v4765
      %v4827 = vadd.f32 %v4756, %v4765
      %v4828 = vadd.f32 %v4757, %v4765
      %v4829 = vadd.f32 %v4758, %v4765
      %v4830 = vadd.f32 %v4759, %v4765
      %v4831 = vmax.f32 %v4767, 0.0
      %v4832 = vmax.f32 %v4768, 0.0
      %v4833 = vmax.f32 %v4769, 0.0
      %v4834 = vmax.f32 %v4770, 0.0
      %v4835 = vmax.f32 %v4771, 0.0
      %v4836 = vmax.f32 %v4772, 0.0
      %v4837 = vmax.f32 %v4773, 0.0
      %v4838 = vmax.f32 %v4774, 0.0
      %v4839 = vmax.f32 %v4775, 0.0
      %v4840 = vmax.f32 %v4776, 0.0
      %v4841 = vmax.f32 %v4777, 0.0
      %v4842 = vmax.f32 %v4778, 0.0
      %v4843 = vmax.f32 %v4779, 0.0
      %v4844 = vmax.f32 %v4780, 0.0
      %v4845 = vmax.f32 %v4781, 0.0
      %v4846 = vmax.f32 %v4782, 0.0
      %v4847 = vmax.f32 %v4783, 0.0
      %v4848 = vmax.f32 %v4784, 0.0
      %v4849 = vmax.f32 %v4785, 0.0
      %v4850 = vmax.f32 %v4786, 0.0
      %v4851 = vmax.f32 %v4787, 0.0
      %v4852 = vmax.f32 %v4788, 0.0
      %v4853 = vmax.f32 %v4789, 0.0
      %v4854 = vmax.f32 %v4790, 0.0
      %v4855 = vmax.f32 %v4791, 0.0
      %v4856 = vmax.f32 %v4792, 0.0
      %v4857 = vmax.f32 %v4793, 0.0
      %v4858 = vmax.f32 %v4794, 0.0
      %v4859 = vmax.f32 %v4795, 0.0
      %v4860 = vmax.f32 %v4796, 0.0
      %v4861 = vmax.f32 %v4797, 0.0
      %v4862 = vmax.f32 %v4798, 0.0
      %v4863 = vmax.f32 %v4799, 0.0
      %v4864 = vmax.f32 %v4800, 0.0
      %v4865 = vmax.f32 %v4801, 0.0
      %v4866 = vmax.f32 %v4802, 0.0
      %v4867 = vmax.f32 %v4803, 0.0
      %v4868 = vmax.f32 %v4804, 0.0
      %v4869 = vmax.f32 %v4805, 0.0
      %v4870 = vmax.f32 %v4806, 0.0
      %v4871 = vmax.f32 %v4807, 0.0
      %v4872 = vmax.f32 %v4808, 0.0
      %v4873 = vmax.f32 %v4809, 0.0
      %v4874 = vmax.f32 %v4810, 0.0
      %v4875 = vmax.f32 %v4811, 0.0
      %v4876 = vmax.f32 %v4812, 0.0
      %v4877 = vmax.f32 %v4813, 0.0
      %v4878 = vmax.f32 %v4814, 0.0
      %v4879 = vmax.f32 %v4815, 0.0
      %v4880 = vmax.f32 %v4816, 0.0
      %v4881 = vmax.f32 %v4817, 0.0
      %v4882 = vmax.f32 %v4818, 0.0
      %v4883 = vmax.f32 %v4819, 0.0
      %v4884 = vmax.f32 %v4820, 0.0
      %v4885 = vmax.f32 %v4821, 0.0
      %v4886 = vmax.f32 %v4822, 0.0
      %v4887 = vmax.f32 %v4823, 0.0
      %v4888 = vmax.f32 %v4824, 0.0
      %v4889 = vmax.f32 %v4825, 0.0
      %v4890 = vmax.f32 %v4826, 0.0
      %v4891 = vmax.f32 %v4827, 0.0
      %v4892 = vmax.f32 %v4828, 0.0
      %v4893 = vmax.f32 %v4829, 0.0
      %v4894 = vmax.f32 %v4830, 0.0
      %vm4895 = vcmask 130048
      %v4896 = vsel %vm4895, %v4831, 0.0
      %v4897 = vsel %vm4895, %v4832, 0.0
      %v4898 = vadd.f32 %v4896, %v4897
      %v4899 = vrot.slane %v4898, 4
      %v4900 = vadd.f32 %v4898, %v4899
      %v4901 = vrot.slane %v4900, 2
      %v4902 = vadd.f32 %v4900, %v4901
      %v4903 = vrot.slane %v4902, 1
      %v4904 = vadd.f32 %v4902, %v4903
      %v4905 = vsel %vm4895, %v4833, 0.0
      %v4906 = vsel %vm4895, %v4834, 0.0
      %v4907 = vadd.f32 %v4905, %v4906
      %v4908 = vrot.slane %v4907, 4
      %v4909 = vadd.f32 %v4907, %v4908
      %v4910 = vrot.slane %v4909, 2
      %v4911 = vadd.f32 %v4909, %v4910
      %v4912 = vrot.slane %v4911, 1
      %v4913 = vadd.f32 %v4911, %v4912
      %v4914 = vsel %vm4895, %v4835, 0.0
      %v4915 = vsel %vm4895, %v4836, 0.0
      %v4916 = vadd.f32 %v4914, %v4915
      %v4917 = vrot.slane %v4916, 4
      %v4918 = vadd.f32 %v4916, %v4917
      %v4919 = vrot.slane %v4918, 2
      %v4920 = vadd.f32 %v4918, %v4919
      %v4921 = vrot.slane %v4920, 1
      %v4922 = vadd.f32 %v4920, %v4921
      %v4923 = vsel %vm4895, %v4837, 0.0
      %v4924 = vsel %vm4895, %v4838, 0.0
      %v4925 = vadd.f32 %v4923, %v4924
      %v4926 = vrot.slane %v4925, 4
      %v4927 = vadd.f32 %v4925, %v4926
      %v4928 = vrot.slane %v4927, 2
      %v4929 = vadd.f32 %v4927, %v4928
      %v4930 = vrot.slane %v4929, 1
      %v4931 = vadd.f32 %v4929, %v4930
      %v4932 = vsel %vm4895, %v4839, 0.0
      %v4933 = vsel %vm4895, %v4840, 0.0
      %v4934 = vadd.f32 %v4932, %v4933
      %v4935 = vrot.slane %v4934, 4
      %v4936 = vadd.f32 %v4934, %v4935
      %v4937 = vrot.slane %v4936, 2
      %v4938 = vadd.f32 %v4936, %v4937
      %v4939 = vrot.slane %v4938, 1
      %v4940 = vadd.f32 %v4938, %v4939
      %v4941 = vsel %vm4895, %v4841, 0.0
      %v4942 = vsel %vm4895, %v4842, 0.0
      %v4943 = vadd.f32 %v4941, %v4942
      %v4944 = vrot.slane %v4943, 4
      %v4945 = vadd.f32 %v4943, %v4944
      %v4946 = vrot.slane %v4945, 2
      %v4947 = vadd.f32 %v4945, %v4946
      %v4948 = vrot.slane %v4947, 1
      %v4949 = vadd.f32 %v4947, %v4948
      %v4950 = vsel %vm4895, %v4843, 0.0
      %v4951 = vsel %vm4895, %v4844, 0.0
      %v4952 = vadd.f32 %v4950, %v4951
      %v4953 = vrot.slane %v4952, 4
      %v4954 = vadd.f32 %v4952, %v4953
      %v4955 = vrot.slane %v4954, 2
      %v4956 = vadd.f32 %v4954, %v4955
      %v4957 = vrot.slane %v4956, 1
      %v4958 = vadd.f32 %v4956, %v4957
      %v4959 = vsel %vm4895, %v4845, 0.0
      %v4960 = vsel %vm4895, %v4846, 0.0
      %v4961 = vadd.f32 %v4959, %v4960
      %v4962 = vrot.slane %v4961, 4
      %v4963 = vadd.f32 %v4961, %v4962
      %v4964 = vrot.slane %v4963, 2
      %v4965 = vadd.f32 %v4963, %v4964
      %v4966 = vrot.slane %v4965, 1
      %v4967 = vadd.f32 %v4965, %v4966
      %v4968 = vsel %vm4895, %v4847, 0.0
      %v4969 = vsel %vm4895, %v4848, 0.0
      %v4970 = vadd.f32 %v4968, %v4969
      %v4971 = vrot.slane %v4970, 4
      %v4972 = vadd.f32 %v4970, %v4971
      %v4973 = vrot.slane %v4972, 2
      %v4974 = vadd.f32 %v4972, %v4973
      %v4975 = vrot.slane %v4974, 1
      %v4976 = vadd.f32 %v4974, %v4975
      %v4977 = vsel %vm4895, %v4849, 0.0
      %v4978 = vsel %vm4895, %v4850, 0.0
      %v4979 = vadd.f32 %v4977, %v4978
      %v4980 = vrot.slane %v4979, 4
      %v4981 = vadd.f32 %v4979, %v4980
      %v4982 = vrot.slane %v4981, 2
      %v4983 = vadd.f32 %v4981, %v4982
      %v4984 = vrot.slane %v4983, 1
      %v4985 = vadd.f32 %v4983, %v4984
      %v4986 = vsel %vm4895, %v4851, 0.0
      %v4987 = vsel %vm4895, %v4852, 0.0
      %v4988 = vadd.f32 %v4986, %v4987
      %v4989 = vrot.slane %v4988, 4
      %v4990 = vadd.f32 %v4988, %v4989
      %v4991 = vrot.slane %v4990, 2
      %v4992 = vadd.f32 %v4990, %v4991
      %v4993 = vrot.slane %v4992, 1
      %v4994 = vadd.f32 %v4992, %v4993
      %v4995 = vsel %vm4895, %v4853, 0.0
      %v4996 = vsel %vm4895, %v4854, 0.0
      %v4997 = vadd.f32 %v4995, %v4996
      %v4998 = vrot.slane %v4997, 4
      %v4999 = vadd.f32 %v4997, %v4998
      %v5000 = vrot.slane %v4999, 2
      %v5001 = vadd.f32 %v4999, %v5000
      %v5002 = vrot.slane %v5001, 1
      %v5003 = vadd.f32 %v5001, %v5002
      %v5004 = vsel %vm4895, %v4855, 0.0
      %v5005 = vsel %vm4895, %v4856, 0.0
      %v5006 = vadd.f32 %v5004, %v5005
      %v5007 = vrot.slane %v5006, 4
      %v5008 = vadd.f32 %v5006, %v5007
      %v5009 = vrot.slane %v5008, 2
      %v5010 = vadd.f32 %v5008, %v5009
      %v5011 = vrot.slane %v5010, 1
      %v5012 = vadd.f32 %v5010, %v5011
      %v5013 = vsel %vm4895, %v4857, 0.0
      %v5014 = vsel %vm4895, %v4858, 0.0
      %v5015 = vadd.f32 %v5013, %v5014
      %v5016 = vrot.slane %v5015, 4
      %v5017 = vadd.f32 %v5015, %v5016
      %v5018 = vrot.slane %v5017, 2
      %v5019 = vadd.f32 %v5017, %v5018
      %v5020 = vrot.slane %v5019, 1
      %v5021 = vadd.f32 %v5019, %v5020
      %v5022 = vsel %vm4895, %v4859, 0.0
      %v5023 = vsel %vm4895, %v4860, 0.0
      %v5024 = vadd.f32 %v5022, %v5023
      %v5025 = vrot.slane %v5024, 4
      %v5026 = vadd.f32 %v5024, %v5025
      %v5027 = vrot.slane %v5026, 2
      %v5028 = vadd.f32 %v5026, %v5027
      %v5029 = vrot.slane %v5028, 1
      %v5030 = vadd.f32 %v5028, %v5029
      %v5031 = vsel %vm4895, %v4861, 0.0
      %v5032 = vsel %vm4895, %v4862, 0.0
      %v5033 = vadd.f32 %v5031, %v5032
      %v5034 = vrot.slane %v5033, 4
      %v5035 = vadd.f32 %v5033, %v5034
      %v5036 = vrot.slane %v5035, 2
      %v5037 = vadd.f32 %v5035, %v5036
      %v5038 = vrot.slane %v5037, 1
      %v5039 = vadd.f32 %v5037, %v5038
      %v5040 = vsel %vm4895, %v4863, 0.0
      %v5041 = vsel %vm4895, %v4864, 0.0
      %v5042 = vadd.f32 %v5040, %v5041
      %v5043 = vrot.slane %v5042, 4
      %v5044 = vadd.f32 %v5042, %v5043
      %v5045 = vrot.slane %v5044, 2
      %v5046 = vadd.f32 %v5044, %v5045
      %v5047 = vrot.slane %v5046, 1
      %v5048 = vadd.f32 %v5046, %v5047
      %v5049 = vsel %vm4895, %v4865, 0.0
      %v5050 = vsel %vm4895, %v4866, 0.0
      %v5051 = vadd.f32 %v5049, %v5050
      %v5052 = vrot.slane %v5051, 4
      %v5053 = vadd.f32 %v5051, %v5052
      %v5054 = vrot.slane %v5053, 2
      %v5055 = vadd.f32 %v5053, %v5054
      %v5056 = vrot.slane %v5055, 1
      %v5057 = vadd.f32 %v5055, %v5056
      %v5058 = vsel %vm4895, %v4867, 0.0
      %v5059 = vsel %vm4895, %v4868, 0.0
      %v5060 = vadd.f32 %v5058, %v5059
      %v5061 = vrot.slane %v5060, 4
      %v5062 = vadd.f32 %v5060, %v5061
      %v5063 = vrot.slane %v5062, 2
      %v5064 = vadd.f32 %v5062, %v5063
      %v5065 = vrot.slane %v5064, 1
      %v5066 = vadd.f32 %v5064, %v5065
      %v5067 = vsel %vm4895, %v4869, 0.0
      %v5068 = vsel %vm4895, %v4870, 0.0
      %v5069 = vadd.f32 %v5067, %v5068
      %v5070 = vrot.slane %v5069, 4
      %v5071 = vadd.f32 %v5069, %v5070
      %v5072 = vrot.slane %v5071, 2
      %v5073 = vadd.f32 %v5071, %v5072
      %v5074 = vrot.slane %v5073, 1
      %v5075 = vadd.f32 %v5073, %v5074
      %v5076 = vsel %vm4895, %v4871, 0.0
      %v5077 = vsel %vm4895, %v4872, 0.0
      %v5078 = vadd.f32 %v5076, %v5077
      %v5079 = vrot.slane %v5078, 4
      %v5080 = vadd.f32 %v5078, %v5079
      %v5081 = vrot.slane %v5080, 2
      %v5082 = vadd.f32 %v5080, %v5081
      %v5083 = vrot.slane %v5082, 1
      %v5084 = vadd.f32 %v5082, %v5083
      %v5085 = vsel %vm4895, %v4873, 0.0
      %v5086 = vsel %vm4895, %v4874, 0.0
      %v5087 = vadd.f32 %v5085, %v5086
      %v5088 = vrot.slane %v5087, 4
      %v5089 = vadd.f32 %v5087, %v5088
      %v5090 = vrot.slane %v5089, 2
      %v5091 = vadd.f32 %v5089, %v5090
      %v5092 = vrot.slane %v5091, 1
      %v5093 = vadd.f32 %v5091, %v5092
      %v5094 = vsel %vm4895, %v4875, 0.0
      %v5095 = vsel %vm4895, %v4876, 0.0
      %v5096 = vadd.f32 %v5094, %v5095
      %v5097 = vrot.slane %v5096, 4
      %v5098 = vadd.f32 %v5096, %v5097
      %v5099 = vrot.slane %v5098, 2
      %v5100 = vadd.f32 %v5098, %v5099
      %v5101 = vrot.slane %v5100, 1
      %v5102 = vadd.f32 %v5100, %v5101
      %v5103 = vsel %vm4895, %v4877, 0.0
      %v5104 = vsel %vm4895, %v4878, 0.0
      %v5105 = vadd.f32 %v5103, %v5104
      %v5106 = vrot.slane %v5105, 4
      %v5107 = vadd.f32 %v5105, %v5106
      %v5108 = vrot.slane %v5107, 2
      %v5109 = vadd.f32 %v5107, %v5108
      %v5110 = vrot.slane %v5109, 1
      %v5111 = vadd.f32 %v5109, %v5110
      %v5112 = vsel %vm4895, %v4879, 0.0
      %v5113 = vsel %vm4895, %v4880, 0.0
      %v5114 = vadd.f32 %v5112, %v5113
      %v5115 = vrot.slane %v5114, 4
      %v5116 = vadd.f32 %v5114, %v5115
      %v5117 = vrot.slane %v5116, 2
      %v5118 = vadd.f32 %v5116, %v5117
      %v5119 = vrot.slane %v5118, 1
      %v5120 = vadd.f32 %v5118, %v5119
      %v5121 = vsel %vm4895, %v4881, 0.0
      %v5122 = vsel %vm4895, %v4882, 0.0
      %v5123 = vadd.f32 %v5121, %v5122
      %v5124 = vrot.slane %v5123, 4
      %v5125 = vadd.f32 %v5123, %v5124
      %v5126 = vrot.slane %v5125, 2
      %v5127 = vadd.f32 %v5125, %v5126
      %v5128 = vrot.slane %v5127, 1
      %v5129 = vadd.f32 %v5127, %v5128
      %v5130 = vsel %vm4895, %v4883, 0.0
      %v5131 = vsel %vm4895, %v4884, 0.0
      %v5132 = vadd.f32 %v5130, %v5131
      %v5133 = vrot.slane %v5132, 4
      %v5134 = vadd.f32 %v5132, %v5133
      %v5135 = vrot.slane %v5134, 2
      %v5136 = vadd.f32 %v5134, %v5135
      %v5137 = vrot.slane %v5136, 1
      %v5138 = vadd.f32 %v5136, %v5137
      %v5139 = vsel %vm4895, %v4885, 0.0
      %v5140 = vsel %vm4895, %v4886, 0.0
      %v5141 = vadd.f32 %v5139, %v5140
      %v5142 = vrot.slane %v5141, 4
      %v5143 = vadd.f32 %v5141, %v5142
      %v5144 = vrot.slane %v5143, 2
      %v5145 = vadd.f32 %v5143, %v5144
      %v5146 = vrot.slane %v5145, 1
      %v5147 = vadd.f32 %v5145, %v5146
      %v5148 = vsel %vm4895, %v4887, 0.0
      %v5149 = vsel %vm4895, %v4888, 0.0
      %v5150 = vadd.f32 %v5148, %v5149
      %v5151 = vrot.slane %v5150, 4
      %v5152 = vadd.f32 %v5150, %v5151
      %v5153 = vrot.slane %v5152, 2
      %v5154 = vadd.f32 %v5152, %v5153
      %v5155 = vrot.slane %v5154, 1
      %v5156 = vadd.f32 %v5154, %v5155
      %v5157 = vsel %vm4895, %v4889, 0.0
      %v5158 = vsel %vm4895, %v4890, 0.0
      %v5159 = vadd.f32 %v5157, %v5158
      %v5160 = vrot.slane %v5159, 4
      %v5161 = vadd.f32 %v5159, %v5160
      %v5162 = vrot.slane %v5161, 2
      %v5163 = vadd.f32 %v5161, %v5162
      %v5164 = vrot.slane %v5163, 1
      %v5165 = vadd.f32 %v5163, %v5164
      %v5166 = vsel %vm4895, %v4891, 0.0
      %v5167 = vsel %vm4895, %v4892, 0.0
      %v5168 = vadd.f32 %v5166, %v5167
      %v5169 = vrot.slane %v5168, 4
      %v5170 = vadd.f32 %v5168, %v5169
      %v5171 = vrot.slane %v5170, 2
      %v5172 = vadd.f32 %v5170, %v5171
      %v5173 = vrot.slane %v5172, 1
      %v5174 = vadd.f32 %v5172, %v5173
      %v5175 = vsel %vm4895, %v4893, 0.0
      %v5176 = vsel %vm4895, %v4894, 0.0
      %v5177 = vadd.f32 %v5175, %v5176
      %v5178 = vrot.slane %v5177, 4
      %v5179 = vadd.f32 %v5177, %v5178
      %v5180 = vrot.slane %v5179, 2
      %v5181 = vadd.f32 %v5179, %v5180
      %v5182 = vrot.slane %v5181, 1
      %v5183 = vadd.f32 %v5181, %v5182
      %v5184 = vmul.f32 %v4904, 0.0625
      %v5185 = vmul.f32 %v4913, 0.0625
      %v5186 = vmul.f32 %v4922, 0.0625
      %v5187 = vmul.f32 %v4931, 0.0625
      %v5188 = vmul.f32 %v4940, 0.0625
      %v5189 = vmul.f32 %v4949, 0.0625
      %v5190 = vmul.f32 %v4958, 0.0625
      %v5191 = vmul.f32 %v4967, 0.0625
      %v5192 = vmul.f32 %v4976, 0.0625
      %v5193 = vmul.f32 %v4985, 0.0625
      %v5194 = vmul.f32 %v4994, 0.0625
      %v5195 = vmul.f32 %v5003, 0.0625
      %v5196 = vmul.f32 %v5012, 0.0625
      %v5197 = vmul.f32 %v5021, 0.0625
      %v5198 = vmul.f32 %v5030, 0.0625
      %v5199 = vmul.f32 %v5039, 0.0625
      %v5200 = vmul.f32 %v5048, 0.0625
      %v5201 = vmul.f32 %v5057, 0.0625
      %v5202 = vmul.f32 %v5066, 0.0625
      %v5203 = vmul.f32 %v5075, 0.0625
      %v5204 = vmul.f32 %v5084, 0.0625
      %v5205 = vmul.f32 %v5093, 0.0625
      %v5206 = vmul.f32 %v5102, 0.0625
      %v5207 = vmul.f32 %v5111, 0.0625
      %v5208 = vmul.f32 %v5120, 0.0625
      %v5209 = vmul.f32 %v5129, 0.0625
      %v5210 = vmul.f32 %v5138, 0.0625
      %v5211 = vmul.f32 %v5147, 0.0625
      %v5212 = vmul.f32 %v5156, 0.0625
      %v5213 = vmul.f32 %v5165, 0.0625
      %v5214 = vmul.f32 %v5174, 0.0625
      %v5215 = vmul.f32 %v5183, 0.0625
      %v5216 = vmul.f32 %v5184, %v5184
      %v5217 = vmul.f32 %v5185, %v5185
      %v5218 = vmul.f32 %v5186, %v5186
      %v5219 = vmul.f32 %v5187, %v5187
      %v5220 = vmul.f32 %v5188, %v5188
      %v5221 = vmul.f32 %v5189, %v5189
      %v5222 = vmul.f32 %v5190, %v5190
      %v5223 = vmul.f32 %v5191, %v5191
      %v5224 = vmul.f32 %v5192, %v5192
      %v5225 = vmul.f32 %v5193, %v5193
      %v5226 = vmul.f32 %v5194, %v5194
      %v5227 = vmul.f32 %v5195, %v5195
      %v5228 = vmul.f32 %v5196, %v5196
      %v5229 = vmul.f32 %v5197, %v5197
      %v5230 = vmul.f32 %v5198, %v5198
      %v5231 = vmul.f32 %v5199, %v5199
      %v5232 = vmul.f32 %v5200, %v5200
      %v5233 = vmul.f32 %v5201, %v5201
      %v5234 = vmul.f32 %v5202, %v5202
      %v5235 = vmul.f32 %v5203, %v5203
      %v5236 = vmul.f32 %v5204, %v5204
      %v5237 = vmul.f32 %v5205, %v5205
      %v5238 = vmul.f32 %v5206, %v5206
      %v5239 = vmul.f32 %v5207, %v5207
      %v5240 = vmul.f32 %v5208, %v5208
      %v5241 = vmul.f32 %v5209, %v5209
      %v5242 = vmul.f32 %v5210, %v5210
      %v5243 = vmul.f32 %v5211, %v5211
      %v5244 = vmul.f32 %v5212, %v5212
      %v5245 = vmul.f32 %v5213, %v5213
      %v5246 = vmul.f32 %v5214, %v5214
      %v5247 = vmul.f32 %v5215, %v5215
      %vm5280 = vcmask 1041409
      %v5281 = vsel %vm5280, %v5217, %v5216
      %vm5282 = vcmask 1042434
      %v5283 = vsel %vm5282, %v5218, %v5281
      %vm5284 = vcmask 1043459
      %v5285 = vsel %vm5284, %v5219, %v5283
      %vm5286 = vcmask 1044484
      %v5287 = vsel %vm5286, %v5220, %v5285
      %vm5288 = vcmask 1045509
      %v5289 = vsel %vm5288, %v5221, %v5287
      %vm5290 = vcmask 1046534
      %v5291 = vsel %vm5290, %v5222, %v5289
      %vm5292 = vcmask 1047559
      %v5293 = vsel %vm5292, %v5223, %v5291
      %v5294 = vsel %vm5280, %v5225, %v5224
      %v5295 = vsel %vm5282, %v5226, %v5294
      %v5296 = vsel %vm5284, %v5227, %v5295
      %v5297 = vsel %vm5286, %v5228, %v5296
      %v5298 = vsel %vm5288, %v5229, %v5297
      %v5299 = vsel %vm5290, %v5230, %v5298
      %v5300 = vsel %vm5292, %v5231, %v5299
      %v5301 = vsel %vm5280, %v5233, %v5232
      %v5302 = vsel %vm5282, %v5234, %v5301
      %v5303 = vsel %vm5284, %v5235, %v5302
      %v5304 = vsel %vm5286, %v5236, %v5303
      %v5305 = vsel %vm5288, %v5237, %v5304
      %v5306 = vsel %vm5290, %v5238, %v5305
      %v5307 = vsel %vm5292, %v5239, %v5306
      %v5308 = vsel %vm5280, %v5241, %v5240
      %v5309 = vsel %vm5282, %v5242, %v5308
      %v5310 = vsel %vm5284, %v5243, %v5309
      %v5311 = vsel %vm5286, %v5244, %v5310
      %v5312 = vsel %vm5288, %v5245, %v5311
      %v5313 = vsel %vm5290, %v5246, %v5312
      %v5314 = vsel %vm5292, %v5247, %v5313
      %v5319 = vsel %vm4895, %v5293, 0.0
      %5320 = vadd.xlane.f32.xlu0 %v5319
      %v5321 = vpop.xlane.xlu0 %5320
      %v5322 = vsel %vm4895, %v5300, 0.0
      %5323 = vadd.xlane.f32.xlu0 %v5322
      %v5324 = vpop.xlane.xlu0 %5323
      %v5325 = vsel %vm4895, %v5307, 0.0
      %5326 = vadd.xlane.f32.xlu0 %v5325
      %v5327 = vpop.xlane.xlu0 %5326
      %v5328 = vsel %vm4895, %v5314, 0.0
      %5329 = vadd.xlane.f32.xlu0 %v5328
      %v5330 = vpop.xlane.xlu0 %5329
      %v5331 = vmax.f32 %v5321, 1e-24
      %v5332 = vmax.f32 %v5324, 1e-24
      %v5333 = vmax.f32 %v5327, 1e-24
      %v5334 = vmax.f32 %v5330, 1e-24
      %v5335 = vrsqrt.pop %v5331
      %v5336 = vrsqrt.pop %v5332
      %v5337 = vrsqrt.pop %v5333
      %v5338 = vrsqrt.pop %v5334
      %v5343 = vrot.slane %v5335, 1
      %v5344 = vrot.slane %v5335, 2
      %v5345 = vrot.slane %v5335, 3
      %v5346 = vrot.slane %v5335, 4
      %v5347 = vrot.slane %v5335, 5
      %v5348 = vrot.slane %v5335, 6
      %v5349 = vrot.slane %v5335, 7
      %v5350 = vrot.slane %v5336, 1
      %v5351 = vrot.slane %v5336, 2
      %v5352 = vrot.slane %v5336, 3
      %v5353 = vrot.slane %v5336, 4
      %v5354 = vrot.slane %v5336, 5
      %v5355 = vrot.slane %v5336, 6
      %v5356 = vrot.slane %v5336, 7
      %v5357 = vrot.slane %v5337, 1
      %v5358 = vrot.slane %v5337, 2
      %v5359 = vrot.slane %v5337, 3
      %v5360 = vrot.slane %v5337, 4
      %v5361 = vrot.slane %v5337, 5
      %v5362 = vrot.slane %v5337, 6
      %v5363 = vrot.slane %v5337, 7
      %v5364 = vrot.slane %v5338, 1
      %v5365 = vrot.slane %v5338, 2
      %v5366 = vrot.slane %v5338, 3
      %v5367 = vrot.slane %v5338, 4
      %v5368 = vrot.slane %v5338, 5
      %v5369 = vrot.slane %v5338, 6
      %v5370 = vrot.slane %v5338, 7
      %v5403 = vmul.f32 %v5184, %v5335
      %v5404 = vmul.f32 %v5185, %v5343
      %v5405 = vmul.f32 %v5186, %v5344
      %v5406 = vmul.f32 %v5187, %v5345
      %v5407 = vmul.f32 %v5188, %v5346
      %v5408 = vmul.f32 %v5189, %v5347
      %v5409 = vmul.f32 %v5190, %v5348
      %v5410 = vmul.f32 %v5191, %v5349
      %v5411 = vmul.f32 %v5192, %v5336
      %v5412 = vmul.f32 %v5193, %v5350
      %v5413 = vmul.f32 %v5194, %v5351
      %v5414 = vmul.f32 %v5195, %v5352
      %v5415 = vmul.f32 %v5196, %v5353
      %v5416 = vmul.f32 %v5197, %v5354
      %v5417 = vmul.f32 %v5198, %v5355
      %v5418 = vmul.f32 %v5199, %v5356
      %v5419 = vmul.f32 %v5200, %v5337
      %v5420 = vmul.f32 %v5201, %v5357
      %v5421 = vmul.f32 %v5202, %v5358
      %v5422 = vmul.f32 %v5203, %v5359
      %v5423 = vmul.f32 %v5204, %v5360
      %v5424 = vmul.f32 %v5205, %v5361
      %v5425 = vmul.f32 %v5206, %v5362
      %v5426 = vmul.f32 %v5207, %v5363
      %v5427 = vmul.f32 %v5208, %v5338
      %v5428 = vmul.f32 %v5209, %v5364
      %v5429 = vmul.f32 %v5210, %v5365
      %v5430 = vmul.f32 %v5211, %v5366
      %v5431 = vmul.f32 %v5212, %v5367
      %v5432 = vmul.f32 %v5213, %v5368
      %v5433 = vmul.f32 %v5214, %v5369
      %v5434 = vmul.f32 %v5215, %v5370
      %v5467 = vrot.slane %v5404, 7
      %v5468 = vsel %vm5280, %v5467, %v5403
      %v5469 = vrot.slane %v5405, 6
      %v5470 = vsel %vm5282, %v5469, %v5468
      %v5471 = vrot.slane %v5406, 5
      %v5472 = vsel %vm5284, %v5471, %v5470
      %v5473 = vrot.slane %v5407, 4
      %v5474 = vsel %vm5286, %v5473, %v5472
      %v5475 = vrot.slane %v5408, 3
      %v5476 = vsel %vm5288, %v5475, %v5474
      %v5477 = vrot.slane %v5409, 2
      %v5478 = vsel %vm5290, %v5477, %v5476
      %v5479 = vrot.slane %v5410, 1
      %v5480 = vsel %vm5292, %v5479, %v5478
      %v5481 = vrot.slane %v5412, 7
      %v5482 = vsel %vm5280, %v5481, %v5411
      %v5483 = vrot.slane %v5413, 6
      %v5484 = vsel %vm5282, %v5483, %v5482
      %v5485 = vrot.slane %v5414, 5
      %v5486 = vsel %vm5284, %v5485, %v5484
      %v5487 = vrot.slane %v5415, 4
      %v5488 = vsel %vm5286, %v5487, %v5486
      %v5489 = vrot.slane %v5416, 3
      %v5490 = vsel %vm5288, %v5489, %v5488
      %v5491 = vrot.slane %v5417, 2
      %v5492 = vsel %vm5290, %v5491, %v5490
      %v5493 = vrot.slane %v5418, 1
      %v5494 = vsel %vm5292, %v5493, %v5492
      %v5495 = vrot.slane %v5420, 7
      %v5496 = vsel %vm5280, %v5495, %v5419
      %v5497 = vrot.slane %v5421, 6
      %v5498 = vsel %vm5282, %v5497, %v5496
      %v5499 = vrot.slane %v5422, 5
      %v5500 = vsel %vm5284, %v5499, %v5498
      %v5501 = vrot.slane %v5423, 4
      %v5502 = vsel %vm5286, %v5501, %v5500
      %v5503 = vrot.slane %v5424, 3
      %v5504 = vsel %vm5288, %v5503, %v5502
      %v5505 = vrot.slane %v5425, 2
      %v5506 = vsel %vm5290, %v5505, %v5504
      %v5507 = vrot.slane %v5426, 1
      %v5508 = vsel %vm5292, %v5507, %v5506
      %v5509 = vrot.slane %v5428, 7
      %v5510 = vsel %vm5280, %v5509, %v5427
      %v5511 = vrot.slane %v5429, 6
      %v5512 = vsel %vm5282, %v5511, %v5510
      %v5513 = vrot.slane %v5430, 5
      %v5514 = vsel %vm5284, %v5513, %v5512
      %v5515 = vrot.slane %v5431, 4
      %v5516 = vsel %vm5286, %v5515, %v5514
      %v5517 = vrot.slane %v5432, 3
      %v5518 = vsel %vm5288, %v5517, %v5516
      %v5519 = vrot.slane %v5433, 2
      %v5520 = vsel %vm5290, %v5519, %v5518
      %v5521 = vrot.slane %v5434, 1
      %v5522 = vsel %vm5292, %v5521, %v5520
      %5527 = vst.msk [vmem:[%s175] sm:$0xff] %vm4895, %v5480
      %5528 = vst.msk [vmem:[%s175 + $0x8] sm:$0xff] %vm4895, %v5494
      %5529 = vst.msk [vmem:[%s175 + $0x10] sm:$0xff] %vm4895, %v5508
      %5530 = vst.msk [vmem:[%s175 + $0x18] sm:$0xff] %vm4895, %v5522
      %s5531 = smul.u32 4, %s14
      %p5532 = scmp.lt.s32.totalorder %s5531, 7
      %s5533 = scalar_select %p5532, %s5531, 7
      %s5534 = smul.addr %s5533, 8
      %s5535 = scalar_lea.vmem %s3, %s5534
      // Predicated region
      $region33: #{tpu_custom_call.1} parent=31 // pred_check
        %p5536 = pneg %p100
      $region34: #{tpu_custom_call.1} parent=31 // pred_check_branch
        %5538 = sbr.rel (%p5536) target = $region36
      $region35: #{tpu_custom_call.1} parent=31 // pred_region
        %s5539 = smul.u32 4, %s14
      $region36: #{tpu_custom_call.1} parent=31 // pred_fallthru
        _
    $region32: #{tpu_custom_call.1} parent=5 // pred_fallthru
      _
    %p5540 = scmp.le.s32.totalorder 2, %s9
    // Predicated region
    $region37: #{tpu_custom_call.1} parent=5 // pred_check
      %p5541 = pneg %p5540
    $region38: #{tpu_custom_call.1} parent=5 // pred_check_branch
      %5543 = sbr.rel (%p5541) target = $region40
    $region39: #{tpu_custom_call.1} parent=5 // pred_region
      %s5544 = ssub.s32 %s9, 2
      // Predicated region
      $region41: #{tpu_custom_call.1} parent=39 // pred_check
        %p5545 = pneg %p106
      $region42: #{tpu_custom_call.1} parent=39 // pred_check_branch
        %5547 = sbr.rel (%p5545) target = $region44
      $region43: #{tpu_custom_call.1} parent=39 // pred_region
        %s5548 = smul.u32 4, %s15
        %p5549 = scmp.lt.s32.totalorder %s5548, 7
        %s5550 = scalar_select %p5549, %s5548, 7
        %s5551 = smul.addr %s5550, 8
        %s5552 = scalar_lea.vmem %s3, %s5551
      $region44: #{tpu_custom_call.1} parent=39 // pred_fallthru
        _
    $region40: #{tpu_custom_call.1} parent=5 // pred_fallthru
      _
  $region6: #{tpu_custom_call.1} parent=0 // loop_footer
    %s13 = sadd.s32 1, %s9
  $region7: #{tpu_custom_call.1} parent=0 // loop_footer_branch
    %8 = sbr.rel target = $region3
  $region8: #{tpu_custom_call.1} parent=0 // loop_exit
    _

</llo_original>
